<compile_context>
chip_gen: v5e
topology: v5e:2x2
jax: 0.10.0
libtpu: 0.0.40
codegen_flags: <defaults>
</compile_context>

<pallas_src>
import functools
import math

import jax
import jax.numpy as jnp
from jax.experimental import pallas as pl
from jax.experimental.pallas import tpu as pltpu


def _round_up(x, m):
    return (x + m - 1) // m * m


def _pick_vmem_limit():
    # Per-generation VMEM budget: ~60% of physical, clamped to [32, 96] MiB.
    try:
        cap = int(pltpu.get_tpu_info().vmem_capacity_bytes)
        return max(32 * 1024 * 1024, min(96 * 1024 * 1024, int(cap * 0.6)))
    except Exception:
        return 32 * 1024 * 1024


_VMEM_LIMIT = _pick_vmem_limit()


# ---------------------------------------------------------------------------
# In-kernel helpers
# ---------------------------------------------------------------------------
def _ln_rows(y, g, b, n_true, eps):
    # LayerNorm over the last axis. Padded lane columns of y / g / b are exactly zero,
    # so plain sums divided by the true width give correct statistics and padded output
    # columns stay zero.
    mean = jnp.sum(y, axis=-1, keepdims=True) * (1.0 / n_true)
    var = jnp.sum(y * y, axis=-1, keepdims=True) * (1.0 / n_true) - mean * mean
    var = jnp.maximum(var, 0.0)                       # guard E[x^2]-m^2 < 0 in f32
    inv = jax.lax.rsqrt(var + eps)
    return (y - mean) * inv * g + b


# ---------------------------------------------------------------------------
# Pallas kernels
# ---------------------------------------------------------------------------
def _emb_ln_kernel(emb_ref, pos_ref, type_ref, g_ref, b_ref, o_ref, *, n_true, eps):
    # Fused: word/context embeddings + position + token-type, then LayerNorm.
    y = emb_ref[0] + pos_ref[...] + type_ref[...]                 # (Sp, Cp) f32
    o_ref[0] = _ln_rows(y, g_ref[...], b_ref[...], n_true, eps)


def _bert_layer_kernel(h_ref, mask_ref, qkvw_ref, qkvb_ref, ow_ref, ob_ref,
                       g1_ref, b1_ref, fiw_ref, fib_ref, fow_ref, fob_ref,
                       g2_ref, b2_ref, o_ref, *,
                       num_heads, head_dim, n_true, eps, scale):
    # One full BertLayer for one batch row: QKV proj -> MHA -> out-proj+res+LN
    # -> FFN(up,GELU,down)+res+LN.  All matmuls bf16 operands, f32 accumulation.
    h = h_ref[0]                                                  # (Sp, Cp) f32
    cp = h.shape[-1]
    mask = mask_ref[0]                                            # (1, Sp) additive key mask

    # ---- fused QKV projection ----
    qkv = jnp.dot(h.astype(jnp.bfloat16), qkvw_ref[...],
                  preferred_element_type=jnp.float32) + qkvb_ref[...]   # (Sp, 3*Cp)

    # ---- multi-head attention via static lane slices (lane-dense (Sp, C) context) ----
    ctx_heads = []
    for hh in range(num_heads):
        lo = hh * head_dim
        q = qkv[:, lo:lo + head_dim].astype(jnp.bfloat16)                  # (Sp, D)
        k = qkv[:, cp + lo:cp + lo + head_dim].astype(jnp.bfloat16)        # (Sp, D)
        v = qkv[:, 2 * cp + lo:2 * cp + lo + head_dim].astype(jnp.bfloat16)
        s = jnp.einsum("qd,kd->qk", q, k,
                       preferred_element_type=jnp.float32) * scale + mask  # (Sp, Sp)
        s = s - jnp.max(s, axis=-1, keepdims=True)
        p = jnp.exp(s)
        p = p * pl.reciprocal(jnp.sum(p, axis=-1, keepdims=True), approx=True)
        ctx_heads.append(jnp.dot(p.astype(jnp.bfloat16), v,
                                 preferred_element_type=jnp.float32))      # (Sp, D)
    ctx = jnp.concatenate(ctx_heads, axis=-1)                              # (Sp, C_true)

    # ---- attention out-projection + residual + LayerNorm ----
    attn_out = jnp.dot(ctx.astype(jnp.bfloat16), ow_ref[...],
                       preferred_element_type=jnp.float32) + ob_ref[...]
    h1 = _ln_rows(attn_out + h, g1_ref[...], b1_ref[...], n_true, eps)

    # ---- FFN up + GELU, FFN down + residual + LayerNorm ----
    up = jnp.dot(h1.astype(jnp.bfloat16), fiw_ref[...],
                 preferred_element_type=jnp.float32) + fib_ref[...]
    # TODO(synk): tanh-approx GELU; HF/PyTorch BERT uses the exact erf GELU.
    up = jax.nn.gelu(up, approximate=True)
    down = jnp.dot(up.astype(jnp.bfloat16), fow_ref[...],
                   preferred_element_type=jnp.float32) + fob_ref[...]
    o_ref[0] = _ln_rows(down + h1, g2_ref[...], b2_ref[...], n_true, eps)


def _mlp_proj_kernel(x_ref, w1_ref, w2_ref, o_ref):
    # proj = Linear(no bias) -> GELU -> Linear(no bias)
    xh = jnp.dot(x_ref[...].astype(jnp.bfloat16), w1_ref[...],
                 preferred_element_type=jnp.float32)
    xh = jax.nn.gelu(xh, approximate=True)
    o_ref[...] = jnp.dot(xh.astype(jnp.bfloat16), w2_ref[...],
                         preferred_element_type=jnp.float32)


# ---------------------------------------------------------------------------
# pallas_call wrappers (operate on the lane-padded layouts; no per-call pad/slice)
# ---------------------------------------------------------------------------
def embeddings_ln(emb, pos, type0, gamma, beta, *, n_true, eps):
    B, Sp, Cp = emb.shape
    return pl.pallas_call(
        functools.partial(_emb_ln_kernel, n_true=float(n_true), eps=eps),
        out_shape=jax.ShapeDtypeStruct((B, Sp, Cp), jnp.float32),
        grid=(B,),
        in_specs=[
            pl.BlockSpec((1, Sp, Cp), lambda b: (b, 0, 0)),
            pl.BlockSpec((Sp, Cp), lambda b: (0, 0)),
            pl.BlockSpec((1, Cp), lambda b: (0, 0)),
            pl.BlockSpec((1, Cp), lambda b: (0, 0)),
            pl.BlockSpec((1, Cp), lambda b: (0, 0)),
        ],
        out_specs=pl.BlockSpec((1, Sp, Cp), lambda b: (b, 0, 0)),
        compiler_params=pltpu.CompilerParams(
            dimension_semantics=("parallel",), vmem_limit_bytes=_VMEM_LIMIT),
    )(emb, pos, type0, gamma, beta)


def bert_layer(h, add_mask, lp, *, num_heads, head_dim, n_true, eps):
    B, Sp, Cp = h.shape
    Cw = lp["o_w"].shape[0]
    Ip = lp["fi_w"].shape[1]
    kernel = functools.partial(
        _bert_layer_kernel, num_heads=num_heads, head_dim=head_dim,
        n_true=float(n_true), eps=eps, scale=1.0 / math.sqrt(head_dim))
    return pl.pallas_call(
        kernel,
        out_shape=jax.ShapeDtypeStruct((B, Sp, Cp), jnp.float32),
        grid=(B,),
        in_specs=[
            pl.BlockSpec((1, Sp, Cp), lambda b: (b, 0, 0)),      # h
            pl.BlockSpec((1, 1, Sp), lambda b: (b, 0, 0)),       # additive key mask
            pl.BlockSpec((Cp, 3 * Cp), lambda b: (0, 0)),        # qkv_w  (bf16, resident)
            pl.BlockSpec((1, 3 * Cp), lambda b: (0, 0)),         # qkv_b
            pl.BlockSpec((Cw, Cp), lambda b: (0, 0)),            # o_w    (bf16)
            pl.BlockSpec((1, Cp), lambda b: (0, 0)),             # o_b
            pl.BlockSpec((1, Cp), lambda b: (0, 0)),             # ln1_g
            pl.BlockSpec((1, Cp), lambda b: (0, 0)),             # ln1_b
            pl.BlockSpec((Cp, Ip), lambda b: (0, 0)),            # ffn_in_w  (bf16)
            pl.BlockSpec((1, Ip), lambda b: (0, 0)),             # ffn_in_b
            pl.BlockSpec((Ip, Cp), lambda b: (0, 0)),            # ffn_out_w (bf16)
            pl.BlockSpec((1, Cp), lambda b: (0, 0)),             # ffn_out_b
            pl.BlockSpec((1, Cp), lambda b: (0, 0)),             # ln2_g
            pl.BlockSpec((1, Cp), lambda b: (0, 0)),             # ln2_b
        ],
        out_specs=pl.BlockSpec((1, Sp, Cp), lambda b: (b, 0, 0)),
        compiler_params=pltpu.CompilerParams(
            dimension_semantics=("parallel",), vmem_limit_bytes=_VMEM_LIMIT),
    )(h, add_mask, lp["qkv_w"], lp["qkv_b"], lp["o_w"], lp["o_b"],
      lp["ln1_g"], lp["ln1_b"], lp["fi_w"], lp["fi_b"], lp["fo_w"], lp["fo_b"],
      lp["ln2_g"], lp["ln2_b"])


def mlp_proj(pooled, w1, w2):
    Bp, Cp = pooled.shape
    Hp = w1.shape[1]
    Op = w2.shape[1]
    return pl.pallas_call(
        _mlp_proj_kernel,
        out_shape=jax.ShapeDtypeStruct((Bp, Op), jnp.float32),
        grid=(1,),
        in_specs=[
            pl.BlockSpec((Bp, Cp), lambda i: (0, 0)),
            pl.BlockSpec((Cp, Hp), lambda i: (0, 0)),
            pl.BlockSpec((Hp, Op), lambda i: (0, 0)),
        ],
        out_specs=pl.BlockSpec((Bp, Op), lambda i: (0, 0)),
        compiler_params=pltpu.CompilerParams(
            dimension_semantics=("arbitrary",), vmem_limit_bytes=_VMEM_LIMIT),
    )(pooled, w1, w2)


# ---------------------------------------------------------------------------
# Parameter init (deterministic, synthetic, BERT-style) and one-time prep
# ---------------------------------------------------------------------------
def init_params(key, cfg):
    C, I = cfg["hidden"], cfg["intermediate"]

    def nrm(k, shape):
        return 0.02 * jax.random.normal(k, shape, jnp.float32)

    keys = iter(jax.random.split(key, 64))
    params = {
        "word_emb": nrm(next(keys), (cfg["vocab"], C)),
        "pos_emb": nrm(next(keys), (cfg["max_pos"], C)),
        "type_emb": nrm(next(keys), (2, C)),
        "emb_ln_g": jnp.ones((C,), jnp.float32),
        "emb_ln_b": jnp.zeros((C,), jnp.float32),
        "proj_w1": nrm(next(keys), (C, cfg["proj_hidden"])),
        "proj_w2": nrm(next(keys), (cfg["proj_hidden"], cfg["output_dim"])),
        "layers": [],
    }
    for _ in range(cfg["num_layers"]):
        params["layers"].append({
            "qkv_w": nrm(next(keys), (C, 3 * C)),            # [Wq | Wk | Wv]
            "qkv_b": jnp.zeros((3 * C,), jnp.float32),
            "attn_o_w": nrm(next(keys), (C, C)),
            "attn_o_b": jnp.zeros((C,), jnp.float32),
            "attn_ln_g": jnp.ones((C,), jnp.float32),
            "attn_ln_b": jnp.zeros((C,), jnp.float32),
            "ffn_in_w": nrm(next(keys), (C, I)),
            "ffn_in_b": jnp.zeros((I,), jnp.float32),
            "ffn_out_w": nrm(next(keys), (I, C)),
            "ffn_out_b": jnp.zeros((C,), jnp.float32),
            "ffn_ln_g": jnp.ones((C,), jnp.float32),
            "ffn_ln_b": jnp.zeros((C,), jnp.float32),
        })
    return params


def prepare_params(params, cfg, S):
    """Pad all weights ONCE to lane-friendly shapes and cast matmul weights to bf16.
    LN gammas/betas are zero-padded so padded hidden lanes stay exactly zero."""
    C, I = cfg["hidden"], cfg["intermediate"]
    Cp = _round_up(C, 128)
    Ip = _round_up(I, 128)
    Sp = _round_up(S, 8)
    PHp = _round_up(cfg["proj_hidden"], 128)
    ODp = _round_up(cfg["output_dim"], 128)

    def pad2(a, r, c):
        return jnp.pad(a, ((0, r - a.shape[0]), (0, c - a.shape[1])))

    def padrow(v, n):
        return jnp.pad(v, (0, n - v.shape[0])).reshape(1, n)

    prep = {
        "word_emb": params["word_emb"],                                   # gather stays unpadded
        "pos": pad2(params["pos_emb"][:S], Sp, Cp),
        "type0": padrow(params["type_emb"][0], Cp),
        "emb_ln_g": padrow(params["emb_ln_g"], Cp),
        "emb_ln_b": padrow(params["emb_ln_b"], Cp),
        "proj_w1": pad2(params["proj_w1"], Cp, PHp).astype(jnp.bfloat16),
        "proj_w2": pad2(params["proj_w2"], PHp, ODp).astype(jnp.bfloat16),
        "layers": [],
    }
    for lp in params["layers"]:
        wq, wk, wv = lp["qkv_w"][:, :C], lp["qkv_w"][:, C:2 * C], lp["qkv_w"][:, 2 * C:]
        bq, bk, bv = lp["qkv_b"][:C], lp["qkv_b"][C:2 * C], lp["qkv_b"][2 * C:]
        prep["layers"].append({
            "qkv_w": jnp.concatenate(
                [pad2(wq, Cp, Cp), pad2(wk, Cp, Cp), pad2(wv, Cp, Cp)],
                axis=1).astype(jnp.bfloat16),                             # (Cp, 3Cp)
            "qkv_b": jnp.concatenate(
                [padrow(bq, Cp), padrow(bk, Cp), padrow(bv, Cp)], axis=1),
            "o_w": jnp.pad(lp["attn_o_w"], ((0, 0), (0, Cp - C))).astype(jnp.bfloat16),
            "o_b": padrow(lp["attn_o_b"], Cp),
            "ln1_g": padrow(lp["attn_ln_g"], Cp),
            "ln1_b": padrow(lp["attn_ln_b"], Cp),
            "fi_w": pad2(lp["ffn_in_w"], Cp, Ip).astype(jnp.bfloat16),
            "fi_b": padrow(lp["ffn_in_b"], Ip),
            "fo_w": pad2(lp["ffn_out_w"], Ip, Cp).astype(jnp.bfloat16),
            "fo_b": padrow(lp["ffn_out_b"], Cp),
            "ln2_g": padrow(lp["ffn_ln_g"], Cp),
            "ln2_b": padrow(lp["ffn_ln_b"], Cp),
        })
    return prep


# ---------------------------------------------------------------------------
# Shared input construction (embeddings concat + additive attention mask)
# ---------------------------------------------------------------------------
def _build_inputs(word_emb, cfg, input_ids, context):
    K_txt, N1 = input_ids.shape
    B_ctx, N2, C = context.shape
    S = N1 + N2
    B = B_ctx * K_txt
    # TODO(synk): word-embedding gather done with plain-JAX take (no Pallas gather).
    tok = jnp.take(word_emb, input_ids, axis=0)                      # (K, N1, C)
    tok = jnp.broadcast_to(tok[None], (B_ctx, K_txt, N1, C))
    ctx = jnp.broadcast_to(context[:, None], (B_ctx, K_txt, N2, C))
    emb = jnp.concatenate([tok[:, :, :1], ctx, tok[:, :, 1:]], axis=2).reshape(B, S, C)

    # TODO(synk): the PyTorch code hard-codes batch 5 for attn_mask; here it is derived
    #             from input_ids and tiled over the context batch.
    mask_t = (input_ids != cfg["pad_token_id"]).astype(jnp.float32)  # (K, N1)
    attn = jnp.ones((K_txt, S), jnp.float32)
    attn = attn.at[:, 0:1].set(mask_t[:, 0:1])
    attn = attn.at[:, N2 + 1:].set(mask_t[:, 1:])
    attn = jnp.broadcast_to(attn[None], (B_ctx, K_txt, S)).reshape(B, S)
    add_mask = ((1.0 - attn) * (-1e9)).reshape(B, 1, S)              # finite, no 0/0 risk
    return emb, add_mask


# ---------------------------------------------------------------------------
# Forward (matches HFContextTextEncoder.forward, inference mode)
# ---------------------------------------------------------------------------
def hf_context_text_encoder_forward(prep, cfg, input_ids, context):
    K_txt, N1 = input_ids.shape
    B_ctx, N2, C = context.shape
    S = N1 + N2
    B = B_ctx * K_txt
    Sp, Cp = prep["pos"].shape
    H = cfg["num_heads"]
    D = C // H

    emb, add_mask = _build_inputs(prep["word_emb"], cfg, input_ids, context)

    # Pad activations ONCE (sequence -> Sp, lanes -> Cp); keep this layout end-to-end.
    emb = jnp.pad(emb, ((0, 0), (0, Sp - S), (0, Cp - C)))
    add_mask = jnp.pad(add_mask, ((0, 0), (0, 0), (0, Sp - S)), constant_values=-1e9)

    # --- BertEmbeddings: (+pos +type) fused into the LayerNorm kernel --------
    # TODO(synk): dropout layers omitted (inference/eval-mode identity).
    h = embeddings_ln(emb, prep["pos"], prep["type0"], prep["emb_ln_g"],
                      prep["emb_ln_b"], n_true=C, eps=cfg["ln_eps"])

    # --- BERT encoder layers: one fused Pallas kernel per layer --------------
    for lp in prep["layers"]:
        h = bert_layer(h, add_mask, lp, num_heads=H, head_dim=D,
                       n_true=C, eps=cfg["ln_eps"])

    # --- pooler (cls_last_hidden_state_pooler, cls_token_position = 0) -------
    pooled = h[:, 0, :]                                              # (B, Cp), padded lanes 0
    Bp = _round_up(B, 8)
    pooled = jnp.pad(pooled, ((0, Bp - B), (0, 0)))

    # --- MLP projection: Linear(no bias) -> GELU -> Linear(no bias) ----------
    projected = mlp_proj(pooled, prep["proj_w1"], prep["proj_w2"])
    return projected[:B, :cfg["output_dim"]]                         # output_tokens=False


# ---------------------------------------------------------------------------
# Pure-JAX reference (same approximations: tanh GELU, -1e9 mask) for checking
# ---------------------------------------------------------------------------
def _ln_ref(x, g, b, eps):
    mean = x.mean(-1, keepdims=True)
    var = x.var(-1, keepdims=True)
    return (x - mean) * jax.lax.rsqrt(var + eps) * g + b


def reference_forward(params, cfg, input_ids, context):
    C = cfg["hidden"]
    H = cfg["num_heads"]
    D = C // H
    eps = cfg["ln_eps"]
    emb, add_mask = _build_inputs(params["word_emb"], cfg, input_ids, context)
    B, S, _ = emb.shape
    h = emb + params["pos_emb"][:S][None] + params["type_emb"][0][None, None]
    h = _ln_ref(h, params["emb_ln_g"], params["emb_ln_b"], eps)
    for lp in params["layers"]:
        qkv = h @ lp["qkv_w"] + lp["qkv_b"]
        q, k, v = jnp.split(qkv, 3, axis=-1)

        def heads(x):
            return x.reshape(B, S, H, D).transpose(0, 2, 1, 3)

        q, k, v = heads(q), heads(k), heads(v)
        s = jnp.einsum("bhqd,bhkd->bhqk", q, k) / math.sqrt(D) + add_mask[:, :, None, :]
        p = jax.nn.softmax(s, axis=-1)
        ctx = jnp.einsum("bhqk,bhkd->bhqd", p, v).transpose(0, 2, 1, 3).reshape(B, S, C)
        h = _ln_ref(ctx @ lp["attn_o_w"] + lp["attn_o_b"] + h,
                    lp["attn_ln_g"], lp["attn_ln_b"], eps)
        up = jax.nn.gelu(h @ lp["ffn_in_w"] + lp["ffn_in_b"], approximate=True)
        h = _ln_ref(up @ lp["ffn_out_w"] + lp["ffn_out_b"] + h,
                    lp["ffn_ln_g"], lp["ffn_ln_b"], eps)
    pooled = h[:, 0]
    p1 = jax.nn.gelu(pooled @ params["proj_w1"], approximate=True)
    return p1 @ params["proj_w2"]


# ---------------------------------------------------------------------------
if __name__ == "__main__":
    cfg = dict(hidden=64, num_heads=4, num_layers=2, intermediate=256,
               vocab=100, max_pos=64, pad_token_id=0, ln_eps=1e-12,
               output_dim=32, proj_hidden=(64 + 32) // 2)

    key = jax.random.PRNGKey(0)
    kp, kx, kc = jax.random.split(key, 3)
    params = init_params(kp, cfg)

    K_txt, N1, N2, B_ctx = 5, 8, 4, 1
    S = N1 + N2
    input_ids = jax.random.randint(kx, (K_txt, N1), 1, cfg["vocab"], jnp.int32)
    input_ids = input_ids.at[:, -2:].set(cfg["pad_token_id"])        # trailing padding
    context = 0.02 * jax.random.normal(kc, (B_ctx, N2, cfg["hidden"]), jnp.float32)

    prep = prepare_params(params, cfg, S)                            # pad/cast ONCE

    fwd = jax.jit(lambda ids, ctx: hf_context_text_encoder_forward(prep, cfg, ids, ctx))
    out = jax.block_until_ready(fwd(input_ids, context))

    assert out.shape == (B_ctx * K_txt, cfg["output_dim"]), out.shape
    assert bool(jnp.all(jnp.isfinite(out)))

    ref = jax.jit(lambda ids, ctx: reference_forward(params, cfg, ids, ctx))(input_ids, context)
    assert bool(jnp.allclose(out, ref, atol=5e-2, rtol=1e-1)), (
        float(jnp.max(jnp.abs(out - ref))))
    print("KERNEL_OK")
</pallas_src>

<mosaic_0001>
module attributes {stable_mosaic.version = 11 : i64} {
  func.func @_emb_ln_kernel(%arg0: i32, %arg1: memref<1x16x128xf32, #tpu.memory_space<vmem>>, %arg2: memref<16x128xf32, #tpu.memory_space<vmem>>, %arg3: memref<1x128xf32, #tpu.memory_space<vmem>>, %arg4: memref<1x128xf32, #tpu.memory_space<vmem>>, %arg5: memref<1x128xf32, #tpu.memory_space<vmem>>, %arg6: memref<1x16x128xf32, #tpu.memory_space<vmem>>) attributes {dimension_semantics = [#tpu.dimension_semantics<parallel>], iteration_bounds = array<i64: 5>, scalar_prefetch = 0 : i64, scratch_operands = 0 : i64, tpu.core_type = #tpu.core_type<tc>, window_params = [{transform_indices = @transform_0, window_bounds = array<i64: 1, 16, 128>}, {pipeline_mode = #tpu.pipeline_mode<synchronous>, transform_indices = @transform_1, window_bounds = array<i64: 16, 128>}, {pipeline_mode = #tpu.pipeline_mode<synchronous>, transform_indices = @transform_2, window_bounds = array<i64: 1, 128>}, {pipeline_mode = #tpu.pipeline_mode<synchronous>, transform_indices = @transform_3, window_bounds = array<i64: 1, 128>}, {pipeline_mode = #tpu.pipeline_mode<synchronous>, transform_indices = @transform_4, window_bounds = array<i64: 1, 128>}, {transform_indices = @transform_5, window_bounds = array<i64: 1, 16, 128>}]} {
    %c0 = arith.constant 0 : index
    %c0_0 = arith.constant 0 : index
    %c0_1 = arith.constant 0 : index
    %0 = vector.load %arg1[%c0, %c0_0, %c0_1] : memref<1x16x128xf32, #tpu.memory_space<vmem>>, vector<1x16x128xf32>
    %1 = vector.shape_cast %0 : vector<1x16x128xf32> to vector<16x128xf32>
    %c0_2 = arith.constant 0 : index
    %c0_3 = arith.constant 0 : index
    %2 = vector.load %arg2[%c0_2, %c0_3] : memref<16x128xf32, #tpu.memory_space<vmem>>, vector<16x128xf32>
    %3 = arith.addf %1, %2 : vector<16x128xf32>
    %c0_4 = arith.constant 0 : index
    %c0_5 = arith.constant 0 : index
    %4 = vector.load %arg3[%c0_4, %c0_5] : memref<1x128xf32, #tpu.memory_space<vmem>>, vector<1x128xf32>
    %5 = vector.broadcast %4 : vector<1x128xf32> to vector<16x128xf32>
    %6 = arith.addf %3, %5 : vector<16x128xf32>
    %c0_6 = arith.constant 0 : index
    %c0_7 = arith.constant 0 : index
    %7 = vector.load %arg4[%c0_6, %c0_7] : memref<1x128xf32, #tpu.memory_space<vmem>>, vector<1x128xf32>
    %c0_8 = arith.constant 0 : index
    %c0_9 = arith.constant 0 : index
    %8 = vector.load %arg5[%c0_8, %c0_9] : memref<1x128xf32, #tpu.memory_space<vmem>>, vector<1x128xf32>
    %cst = arith.constant dense<0.000000e+00> : vector<16xf32>
    %9 = vector.multi_reduction <add>, %6, %cst [1] : vector<16x128xf32> to vector<16xf32>
    %10 = vector.shape_cast %9 : vector<16xf32> to vector<16x1xf32>
    %cst_10 = arith.constant 1.562500e-02 : f32
    %11 = vector.broadcast %cst_10 : f32 to vector<16x1xf32>
    %12 = arith.mulf %10, %11 : vector<16x1xf32>
    %13 = arith.mulf %6, %6 : vector<16x128xf32>
    %cst_11 = arith.constant dense<0.000000e+00> : vector<16xf32>
    %14 = vector.multi_reduction <add>, %13, %cst_11 [1] : vector<16x128xf32> to vector<16xf32>
    %15 = vector.shape_cast %14 : vector<16xf32> to vector<16x1xf32>
    %cst_12 = arith.constant 1.562500e-02 : f32
    %16 = vector.broadcast %cst_12 : f32 to vector<16x1xf32>
    %17 = arith.mulf %15, %16 : vector<16x1xf32>
    %18 = arith.mulf %12, %12 : vector<16x1xf32>
    %19 = arith.subf %17, %18 : vector<16x1xf32>
    %cst_13 = arith.constant 0.000000e+00 : f32
    %20 = vector.broadcast %cst_13 : f32 to vector<16x1xf32>
    %21 = arith.maximumf %19, %20 : vector<16x1xf32>
    %cst_14 = arith.constant 9.99999996E-13 : f32
    %22 = vector.broadcast %cst_14 : f32 to vector<16x1xf32>
    %23 = arith.addf %21, %22 : vector<16x1xf32>
    %24 = math.rsqrt %23 : vector<16x1xf32>
    %25 = vector.broadcast %12 : vector<16x1xf32> to vector<16x128xf32>
    %26 = arith.subf %6, %25 : vector<16x128xf32>
    %27 = vector.broadcast %24 : vector<16x1xf32> to vector<16x128xf32>
    %28 = arith.mulf %26, %27 : vector<16x128xf32>
    %29 = vector.broadcast %7 : vector<1x128xf32> to vector<16x128xf32>
    %30 = arith.mulf %28, %29 : vector<16x128xf32>
    %31 = vector.broadcast %8 : vector<1x128xf32> to vector<16x128xf32>
    %32 = arith.addf %30, %31 : vector<16x128xf32>
    %c0_15 = arith.constant 0 : index
    %c0_16 = arith.constant 0 : index
    %c0_17 = arith.constant 0 : index
    %33 = vector.load %arg6[%c0_15, %c0_16, %c0_17] : memref<1x16x128xf32, #tpu.memory_space<vmem>>, vector<1x16x128xf32>
    %34 = vector.shape_cast %33 : vector<1x16x128xf32> to vector<16x128xf32>
    %35 = vector.shape_cast %32 : vector<16x128xf32> to vector<1x16x128xf32>
    tpu.vector_store %arg6[%c0_15, %c0_16, %c0_17], %35 {strides = array<i32>} : memref<1x16x128xf32, #tpu.memory_space<vmem>>, vector<1x16x128xf32>,
    return
  }
  func.func @transform_0(%arg0: i32) -> (i32, i32, i32) {
    %c0_i32 = arith.constant 0 : i32
    %c0_i32_0 = arith.constant 0 : i32
    %c0_i32_1 = arith.constant 0 : i32
    return %arg0, %c0_i32, %c0_i32_0 : i32, i32, i32
  }
  func.func @transform_1(%arg0: i32) -> (i32, i32) {
    %c0_i32 = arith.constant 0 : i32
    %c0_i32_0 = arith.constant 0 : i32
    %c0_i32_1 = arith.constant 0 : i32
    return %c0_i32, %c0_i32_0 : i32, i32
  }
  func.func @transform_2(%arg0: i32) -> (i32, i32) {
    %c0_i32 = arith.constant 0 : i32
    %c0_i32_0 = arith.constant 0 : i32
    %c0_i32_1 = arith.constant 0 : i32
    return %c0_i32, %c0_i32_0 : i32, i32
  }
  func.func @transform_3(%arg0: i32) -> (i32, i32) {
    %c0_i32 = arith.constant 0 : i32
    %c0_i32_0 = arith.constant 0 : i32
    %c0_i32_1 = arith.constant 0 : i32
    return %c0_i32, %c0_i32_0 : i32, i32
  }
  func.func @transform_4(%arg0: i32) -> (i32, i32) {
    %c0_i32 = arith.constant 0 : i32
    %c0_i32_0 = arith.constant 0 : i32
    %c0_i32_1 = arith.constant 0 : i32
    return %c0_i32, %c0_i32_0 : i32, i32
  }
  func.func @transform_5(%arg0: i32) -> (i32, i32, i32) {
    %c0_i32 = arith.constant 0 : i32
    %c0_i32_0 = arith.constant 0 : i32
    %c0_i32_1 = arith.constant 0 : i32
    return %arg0, %c0_i32, %c0_i32_0 : i32, i32, i32
  }
}

module attributes {stable_mosaic.version = 11 : i64} {
  func.func @_bert_layer_kernel(%arg0: i32, %arg1: memref<1x16x128xf32, #tpu.memory_space<vmem>>, %arg2: memref<1x1x16xf32, #tpu.memory_space<vmem>>, %arg3: memref<128x384xbf16, #tpu.memory_space<vmem>>, %arg4: memref<1x384xf32, #tpu.memory_space<vmem>>, %arg5: memref<64x128xbf16, #tpu.memory_space<vmem>>, %arg6: memref<1x128xf32, #tpu.memory_space<vmem>>, %arg7: memref<1x128xf32, #tpu.memory_space<vmem>>, %arg8: memref<1x128xf32, #tpu.memory_space<vmem>>, %arg9: memref<128x256xbf16, #tpu.memory_space<vmem>>, %arg10: memref<1x256xf32, #tpu.memory_space<vmem>>, %arg11: memref<256x128xbf16, #tpu.memory_space<vmem>>, %arg12: memref<1x128xf32, #tpu.memory_space<vmem>>, %arg13: memref<1x128xf32, #tpu.memory_space<vmem>>, %arg14: memref<1x128xf32, #tpu.memory_space<vmem>>, %arg15: memref<1x16x128xf32, #tpu.memory_space<vmem>>) attributes {dimension_semantics = [#tpu.dimension_semantics<parallel>], iteration_bounds = array<i64: 5>, scalar_prefetch = 0 : i64, scratch_operands = 0 : i64, tpu.core_type = #tpu.core_type<tc>, window_params = [{transform_indices = @transform_0, window_bounds = array<i64: 1, 16, 128>}, {transform_indices = @transform_1, window_bounds = array<i64: 1, 1, 16>}, {pipeline_mode = #tpu.pipeline_mode<synchronous>, transform_indices = @transform_2, window_bounds = array<i64: 128, 384>}, {pipeline_mode = #tpu.pipeline_mode<synchronous>, transform_indices = @transform_3, window_bounds = array<i64: 1, 384>}, {pipeline_mode = #tpu.pipeline_mode<synchronous>, transform_indices = @transform_4, window_bounds = array<i64: 64, 128>}, {pipeline_mode = #tpu.pipeline_mode<synchronous>, transform_indices = @transform_5, window_bounds = array<i64: 1, 128>}, {pipeline_mode = #tpu.pipeline_mode<synchronous>, transform_indices = @transform_6, window_bounds = array<i64: 1, 128>}, {pipeline_mode = #tpu.pipeline_mode<synchronous>, transform_indices = @transform_7, window_bounds = array<i64: 1, 128>}, {pipeline_mode = #tpu.pipeline_mode<synchronous>, transform_indices = @transform_8, window_bounds = array<i64: 128, 256>}, {pipeline_mode = #tpu.pipeline_mode<synchronous>, transform_indices = @transform_9, window_bounds = array<i64: 1, 256>}, {pipeline_mode = #tpu.pipeline_mode<synchronous>, transform_indices = @transform_10, window_bounds = array<i64: 256, 128>}, {pipeline_mode = #tpu.pipeline_mode<synchronous>, transform_indices = @transform_11, window_bounds = array<i64: 1, 128>}, {pipeline_mode = #tpu.pipeline_mode<synchronous>, transform_indices = @transform_12, window_bounds = array<i64: 1, 128>}, {pipeline_mode = #tpu.pipeline_mode<synchronous>, transform_indices = @transform_13, window_bounds = array<i64: 1, 128>}, {transform_indices = @transform_14, window_bounds = array<i64: 1, 16, 128>}]} {
    %c0 = arith.constant 0 : index
    %c0_0 = arith.constant 0 : index
    %c0_1 = arith.constant 0 : index
    %0 = vector.load %arg1[%c0, %c0_0, %c0_1] : memref<1x16x128xf32, #tpu.memory_space<vmem>>, vector<1x16x128xf32>
    %1 = vector.shape_cast %0 : vector<1x16x128xf32> to vector<16x128xf32>
    %c0_2 = arith.constant 0 : index
    %c0_3 = arith.constant 0 : index
    %c0_4 = arith.constant 0 : index
    %2 = vector.load %arg2[%c0_2, %c0_3, %c0_4] : memref<1x1x16xf32, #tpu.memory_space<vmem>>, vector<1x1x16xf32>
    %3 = vector.shape_cast %2 : vector<1x1x16xf32> to vector<1x16xf32>
    %4 = arith.truncf %1 : vector<16x128xf32> to vector<16x128xbf16>
    %c0_5 = arith.constant 0 : index
    %c0_6 = arith.constant 0 : index
    %5 = vector.load %arg3[%c0_5, %c0_6] : memref<128x384xbf16, #tpu.memory_space<vmem>>, vector<128x384xbf16>
    %cst = arith.constant dense<0.000000e+00> : vector<16x384xf32>
    %6 = tpu.matmul %4, %5, %cst {dimension_numbers = #tpu.dot_dimension_numbers<[1], [0], [0], [1], [0, 0, 1, 1], [], []>} : vector<16x128xbf16>, vector<128x384xbf16>, vector<16x384xf32> -> vector<16x384xf32>
    %c0_7 = arith.constant 0 : index
    %c0_8 = arith.constant 0 : index
    %7 = vector.load %arg4[%c0_7, %c0_8] : memref<1x384xf32, #tpu.memory_space<vmem>>, vector<1x384xf32>
    %8 = vector.broadcast %7 : vector<1x384xf32> to vector<16x384xf32>
    %9 = arith.addf %6, %8 : vector<16x384xf32>
    %10 = vector.extract_strided_slice %9 {offsets = [0, 0], sizes = [16, 16], strides = [1, 1]} : vector<16x384xf32> to vector<16x16xf32>
    %11 = arith.truncf %10 : vector<16x16xf32> to vector<16x16xbf16>
    %12 = vector.extract_strided_slice %9 {offsets = [0, 128], sizes = [16, 16], strides = [1, 1]} : vector<16x384xf32> to vector<16x16xf32>
    %13 = arith.truncf %12 : vector<16x16xf32> to vector<16x16xbf16>
    %14 = vector.extract_strided_slice %9 {offsets = [0, 256], sizes = [16, 16], strides = [1, 1]} : vector<16x384xf32> to vector<16x16xf32>
    %15 = arith.truncf %14 : vector<16x16xf32> to vector<16x16xbf16>
    "tpu.trace_start"() <{level = 10 : i32, message = "qd,kd->qk"}> : () -> ()
    %cst_9 = arith.constant dense<0.000000e+00> : vector<16x16xf32>
    %16 = tpu.matmul %11, %13, %cst_9 {dimension_numbers = #tpu.dot_dimension_numbers<[1], [1], [0], [0], [0, 0, 1, 0], [], []>} : vector<16x16xbf16>, vector<16x16xbf16>, vector<16x16xf32> -> vector<16x16xf32>
    "tpu.trace_stop"() : () -> ()
    %cst_10 = arith.constant 2.500000e-01 : f32
    %17 = vector.broadcast %cst_10 : f32 to vector<16x16xf32>
    %18 = arith.mulf %16, %17 : vector<16x16xf32>
    %19 = vector.broadcast %3 : vector<1x16xf32> to vector<16x16xf32>
    %20 = arith.addf %18, %19 : vector<16x16xf32>
    %cst_11 = arith.constant dense<0xFF800000> : vector<16xf32>
    %21 = vector.multi_reduction <maximumf>, %20, %cst_11 [1] : vector<16x16xf32> to vector<16xf32>
    %22 = vector.shape_cast %21 : vector<16xf32> to vector<16x1xf32>
    %23 = vector.broadcast %22 : vector<16x1xf32> to vector<16x16xf32>
    %24 = arith.subf %20, %23 : vector<16x16xf32>
    %25 = math.exp %24 : vector<16x16xf32>
    %cst_12 = arith.constant dense<0.000000e+00> : vector<16xf32>
    %26 = vector.multi_reduction <add>, %25, %cst_12 [1] : vector<16x16xf32> to vector<16xf32>
    %27 = vector.shape_cast %26 : vector<16xf32> to vector<16x1xf32>
    %28 = tpu.reciprocal %27 {approx = true} : vector<16x1xf32> -> vector<16x1xf32>
    %29 = vector.broadcast %28 : vector<16x1xf32> to vector<16x16xf32>
    %30 = arith.mulf %25, %29 : vector<16x16xf32>
    %31 = arith.truncf %30 : vector<16x16xf32> to vector<16x16xbf16>
    %cst_13 = arith.constant dense<0.000000e+00> : vector<16x16xf32>
    %32 = tpu.matmul %31, %15, %cst_13 {dimension_numbers = #tpu.dot_dimension_numbers<[1], [0], [0], [1], [0, 0, 1, 1], [], []>} : vector<16x16xbf16>, vector<16x16xbf16>, vector<16x16xf32> -> vector<16x16xf32>
    %33 = vector.extract_strided_slice %9 {offsets = [0, 16], sizes = [16, 16], strides = [1, 1]} : vector<16x384xf32> to vector<16x16xf32>
    %34 = arith.truncf %33 : vector<16x16xf32> to vector<16x16xbf16>
    %35 = vector.extract_strided_slice %9 {offsets = [0, 144], sizes = [16, 16], strides = [1, 1]} : vector<16x384xf32> to vector<16x16xf32>
    %36 = arith.truncf %35 : vector<16x16xf32> to vector<16x16xbf16>
    %37 = vector.extract_strided_slice %9 {offsets = [0, 272], sizes = [16, 16], strides = [1, 1]} : vector<16x384xf32> to vector<16x16xf32>
    %38 = arith.truncf %37 : vector<16x16xf32> to vector<16x16xbf16>
    "tpu.trace_start"() <{level = 10 : i32, message = "qd,kd->qk"}> : () -> ()
    %cst_14 = arith.constant dense<0.000000e+00> : vector<16x16xf32>
    %39 = tpu.matmul %34, %36, %cst_14 {dimension_numbers = #tpu.dot_dimension_numbers<[1], [1], [0], [0], [0, 0, 1, 0], [], []>} : vector<16x16xbf16>, vector<16x16xbf16>, vector<16x16xf32> -> vector<16x16xf32>
    "tpu.trace_stop"() : () -> ()
    %cst_15 = arith.constant 2.500000e-01 : f32
    %40 = vector.broadcast %cst_15 : f32 to vector<16x16xf32>
    %41 = arith.mulf %39, %40 : vector<16x16xf32>
    %42 = vector.broadcast %3 : vector<1x16xf32> to vector<16x16xf32>
    %43 = arith.addf %41, %42 : vector<16x16xf32>
    %cst_16 = arith.constant dense<0xFF800000> : vector<16xf32>
    %44 = vector.multi_reduction <maximumf>, %43, %cst_16 [1] : vector<16x16xf32> to vector<16xf32>
    %45 = vector.shape_cast %44 : vector<16xf32> to vector<16x1xf32>
    %46 = vector.broadcast %45 : vector<16x1xf32> to vector<16x16xf32>
    %47 = arith.subf %43, %46 : vector<16x16xf32>
    %48 = math.exp %47 : vector<16x16xf32>
    %cst_17 = arith.constant dense<0.000000e+00> : vector<16xf32>
    %49 = vector.multi_reduction <add>, %48, %cst_17 [1] : vector<16x16xf32> to vector<16xf32>
    %50 = vector.shape_cast %49 : vector<16xf32> to vector<16x1xf32>
    %51 = tpu.reciprocal %50 {approx = true} : vector<16x1xf32> -> vector<16x1xf32>
    %52 = vector.broadcast %51 : vector<16x1xf32> to vector<16x16xf32>
    %53 = arith.mulf %48, %52 : vector<16x16xf32>
    %54 = arith.truncf %53 : vector<16x16xf32> to vector<16x16xbf16>
    %cst_18 = arith.constant dense<0.000000e+00> : vector<16x16xf32>
    %55 = tpu.matmul %54, %38, %cst_18 {dimension_numbers = #tpu.dot_dimension_numbers<[1], [0], [0], [1], [0, 0, 1, 1], [], []>} : vector<16x16xbf16>, vector<16x16xbf16>, vector<16x16xf32> -> vector<16x16xf32>
    %56 = vector.extract_strided_slice %9 {offsets = [0, 32], sizes = [16, 16], strides = [1, 1]} : vector<16x384xf32> to vector<16x16xf32>
    %57 = arith.truncf %56 : vector<16x16xf32> to vector<16x16xbf16>
    %58 = vector.extract_strided_slice %9 {offsets = [0, 160], sizes = [16, 16], strides = [1, 1]} : vector<16x384xf32> to vector<16x16xf32>
    %59 = arith.truncf %58 : vector<16x16xf32> to vector<16x16xbf16>
    %60 = vector.extract_strided_slice %9 {offsets = [0, 288], sizes = [16, 16], strides = [1, 1]} : vector<16x384xf32> to vector<16x16xf32>
    %61 = arith.truncf %60 : vector<16x16xf32> to vector<16x16xbf16>
    "tpu.trace_start"() <{level = 10 : i32, message = "qd,kd->qk"}> : () -> ()
    %cst_19 = arith.constant dense<0.000000e+00> : vector<16x16xf32>
    %62 = tpu.matmul %57, %59, %cst_19 {dimension_numbers = #tpu.dot_dimension_numbers<[1], [1], [0], [0], [0, 0, 1, 0], [], []>} : vector<16x16xbf16>, vector<16x16xbf16>, vector<16x16xf32> -> vector<16x16xf32>
    "tpu.trace_stop"() : () -> ()
    %cst_20 = arith.constant 2.500000e-01 : f32
    %63 = vector.broadcast %cst_20 : f32 to vector<16x16xf32>
    %64 = arith.mulf %62, %63 : vector<16x16xf32>
    %65 = vector.broadcast %3 : vector<1x16xf32> to vector<16x16xf32>
    %66 = arith.addf %64, %65 : vector<16x16xf32>
    %cst_21 = arith.constant dense<0xFF800000> : vector<16xf32>
    %67 = vector.multi_reduction <maximumf>, %66, %cst_21 [1] : vector<16x16xf32> to vector<16xf32>
    %68 = vector.shape_cast %67 : vector<16xf32> to vector<16x1xf32>
    %69 = vector.broadcast %68 : vector<16x1xf32> to vector<16x16xf32>
    %70 = arith.subf %66, %69 : vector<16x16xf32>
    %71 = math.exp %70 : vector<16x16xf32>
    %cst_22 = arith.constant dense<0.000000e+00> : vector<16xf32>
    %72 = vector.multi_reduction <add>, %71, %cst_22 [1] : vector<16x16xf32> to vector<16xf32>
    %73 = vector.shape_cast %72 : vector<16xf32> to vector<16x1xf32>
    %74 = tpu.reciprocal %73 {approx = true} : vector<16x1xf32> -> vector<16x1xf32>
    %75 = vector.broadcast %74 : vector<16x1xf32> to vector<16x16xf32>
    %76 = arith.mulf %71, %75 : vector<16x16xf32>
    %77 = arith.truncf %76 : vector<16x16xf32> to vector<16x16xbf16>
    %cst_23 = arith.constant dense<0.000000e+00> : vector<16x16xf32>
    %78 = tpu.matmul %77, %61, %cst_23 {dimension_numbers = #tpu.dot_dimension_numbers<[1], [0], [0], [1], [0, 0, 1, 1], [], []>} : vector<16x16xbf16>, vector<16x16xbf16>, vector<16x16xf32> -> vector<16x16xf32>
    %79 = vector.extract_strided_slice %9 {offsets = [0, 48], sizes = [16, 16], strides = [1, 1]} : vector<16x384xf32> to vector<16x16xf32>
    %80 = arith.truncf %79 : vector<16x16xf32> to vector<16x16xbf16>
    %81 = vector.extract_strided_slice %9 {offsets = [0, 176], sizes = [16, 16], strides = [1, 1]} : vector<16x384xf32> to vector<16x16xf32>
    %82 = arith.truncf %81 : vector<16x16xf32> to vector<16x16xbf16>
    %83 = vector.extract_strided_slice %9 {offsets = [0, 304], sizes = [16, 16], strides = [1, 1]} : vector<16x384xf32> to vector<16x16xf32>
    %84 = arith.truncf %83 : vector<16x16xf32> to vector<16x16xbf16>
    "tpu.trace_start"() <{level = 10 : i32, message = "qd,kd->qk"}> : () -> ()
    %cst_24 = arith.constant dense<0.000000e+00> : vector<16x16xf32>
    %85 = tpu.matmul %80, %82, %cst_24 {dimension_numbers = #tpu.dot_dimension_numbers<[1], [1], [0], [0], [0, 0, 1, 0], [], []>} : vector<16x16xbf16>, vector<16x16xbf16>, vector<16x16xf32> -> vector<16x16xf32>
    "tpu.trace_stop"() : () -> ()
    %cst_25 = arith.constant 2.500000e-01 : f32
    %86 = vector.broadcast %cst_25 : f32 to vector<16x16xf32>
    %87 = arith.mulf %85, %86 : vector<16x16xf32>
    %88 = vector.broadcast %3 : vector<1x16xf32> to vector<16x16xf32>
    %89 = arith.addf %87, %88 : vector<16x16xf32>
    %cst_26 = arith.constant dense<0xFF800000> : vector<16xf32>
    %90 = vector.multi_reduction <maximumf>, %89, %cst_26 [1] : vector<16x16xf32> to vector<16xf32>
    %91 = vector.shape_cast %90 : vector<16xf32> to vector<16x1xf32>
    %92 = vector.broadcast %91 : vector<16x1xf32> to vector<16x16xf32>
    %93 = arith.subf %89, %92 : vector<16x16xf32>
    %94 = math.exp %93 : vector<16x16xf32>
    %cst_27 = arith.constant dense<0.000000e+00> : vector<16xf32>
    %95 = vector.multi_reduction <add>, %94, %cst_27 [1] : vector<16x16xf32> to vector<16xf32>
    %96 = vector.shape_cast %95 : vector<16xf32> to vector<16x1xf32>
    %97 = tpu.reciprocal %96 {approx = true} : vector<16x1xf32> -> vector<16x1xf32>
    %98 = vector.broadcast %97 : vector<16x1xf32> to vector<16x16xf32>
    %99 = arith.mulf %94, %98 : vector<16x16xf32>
    %100 = arith.truncf %99 : vector<16x16xf32> to vector<16x16xbf16>
    %cst_28 = arith.constant dense<0.000000e+00> : vector<16x16xf32>
    %101 = tpu.matmul %100, %84, %cst_28 {dimension_numbers = #tpu.dot_dimension_numbers<[1], [0], [0], [1], [0, 0, 1, 1], [], []>} : vector<16x16xbf16>, vector<16x16xbf16>, vector<16x16xf32> -> vector<16x16xf32>
    %102 = tpu.concatenate %32, %55, %78, %101 in 1 : vector<16x16xf32>, vector<16x16xf32>, vector<16x16xf32>, vector<16x16xf32> -> vector<16x64xf32>
    %103 = arith.truncf %102 : vector<16x64xf32> to vector<16x64xbf16>
    %c0_29 = arith.constant 0 : index
    %c0_30 = arith.constant 0 : index
    %104 = vector.load %arg5[%c0_29, %c0_30] : memref<64x128xbf16, #tpu.memory_space<vmem>>, vector<64x128xbf16>
    %cst_31 = arith.constant dense<0.000000e+00> : vector<16x128xf32>
    %105 = tpu.matmul %103, %104, %cst_31 {dimension_numbers = #tpu.dot_dimension_numbers<[1], [0], [0], [1], [0, 0, 1, 1], [], []>} : vector<16x64xbf16>, vector<64x128xbf16>, vector<16x128xf32> -> vector<16x128xf32>
    %c0_32 = arith.constant 0 : index
    %c0_33 = arith.constant 0 : index
    %106 = vector.load %arg6[%c0_32, %c0_33] : memref<1x128xf32, #tpu.memory_space<vmem>>, vector<1x128xf32>
    %107 = vector.broadcast %106 : vector<1x128xf32> to vector<16x128xf32>
    %108 = arith.addf %105, %107 : vector<16x128xf32>
    %109 = arith.addf %108, %1 : vector<16x128xf32>
    %c0_34 = arith.constant 0 : index
    %c0_35 = arith.constant 0 : index
    %110 = vector.load %arg7[%c0_34, %c0_35] : memref<1x128xf32, #tpu.memory_space<vmem>>, vector<1x128xf32>
    %c0_36 = arith.constant 0 : index
    %c0_37 = arith.constant 0 : index
    %111 = vector.load %arg8[%c0_36, %c0_37] : memref<1x128xf32, #tpu.memory_space<vmem>>, vector<1x128xf32>
    %cst_38 = arith.constant dense<0.000000e+00> : vector<16xf32>
    %112 = vector.multi_reduction <add>, %109, %cst_38 [1] : vector<16x128xf32> to vector<16xf32>
    %113 = vector.shape_cast %112 : vector<16xf32> to vector<16x1xf32>
    %cst_39 = arith.constant 1.562500e-02 : f32
    %114 = vector.broadcast %cst_39 : f32 to vector<16x1xf32>
    %115 = arith.mulf %113, %114 : vector<16x1xf32>
    %116 = arith.mulf %109, %109 : vector<16x128xf32>
    %cst_40 = arith.constant dense<0.000000e+00> : vector<16xf32>
    %117 = vector.multi_reduction <add>, %116, %cst_40 [1] : vector<16x128xf32> to vector<16xf32>
    %118 = vector.shape_cast %117 : vector<16xf32> to vector<16x1xf32>
    %cst_41 = arith.constant 1.562500e-02 : f32
    %119 = vector.broadcast %cst_41 : f32 to vector<16x1xf32>
    %120 = arith.mulf %118, %119 : vector<16x1xf32>
    %121 = arith.mulf %115, %115 : vector<16x1xf32>
    %122 = arith.subf %120, %121 : vector<16x1xf32>
    %cst_42 = arith.constant 0.000000e+00 : f32
    %123 = vector.broadcast %cst_42 : f32 to vector<16x1xf32>
    %124 = arith.maximumf %122, %123 : vector<16x1xf32>
    %cst_43 = arith.constant 9.99999996E-13 : f32
    %125 = vector.broadcast %cst_43 : f32 to vector<16x1xf32>
    %126 = arith.addf %124, %125 : vector<16x1xf32>
    %127 = math.rsqrt %126 : vector<16x1xf32>
    %128 = vector.broadcast %115 : vector<16x1xf32> to vector<16x128xf32>
    %129 = arith.subf %109, %128 : vector<16x128xf32>
    %130 = vector.broadcast %127 : vector<16x1xf32> to vector<16x128xf32>
    %131 = arith.mulf %129, %130 : vector<16x128xf32>
    %132 = vector.broadcast %110 : vector<1x128xf32> to vector<16x128xf32>
    %133 = arith.mulf %131, %132 : vector<16x128xf32>
    %134 = vector.broadcast %111 : vector<1x128xf32> to vector<16x128xf32>
    %135 = arith.addf %133, %134 : vector<16x128xf32>
    %136 = arith.truncf %135 : vector<16x128xf32> to vector<16x128xbf16>
    %c0_44 = arith.constant 0 : index
    %c0_45 = arith.constant 0 : index
    %137 = vector.load %arg9[%c0_44, %c0_45] : memref<128x256xbf16, #tpu.memory_space<vmem>>, vector<128x256xbf16>
    %cst_46 = arith.constant dense<0.000000e+00> : vector<16x256xf32>
    %138 = tpu.matmul %136, %137, %cst_46 {dimension_numbers = #tpu.dot_dimension_numbers<[1], [0], [0], [1], [0, 0, 1, 1], [], []>} : vector<16x128xbf16>, vector<128x256xbf16>, vector<16x256xf32> -> vector<16x256xf32>
    %c0_47 = arith.constant 0 : index
    %c0_48 = arith.constant 0 : index
    %139 = vector.load %arg10[%c0_47, %c0_48] : memref<1x256xf32, #tpu.memory_space<vmem>>, vector<1x256xf32>
    %140 = vector.broadcast %139 : vector<1x256xf32> to vector<16x256xf32>
    %141 = arith.addf %138, %140 : vector<16x256xf32>
    %142 = arith.mulf %141, %141 : vector<16x256xf32>
    %143 = arith.mulf %141, %142 : vector<16x256xf32>
    %cst_49 = arith.constant 4.471500e-02 : f32
    %144 = vector.broadcast %cst_49 : f32 to vector<16x256xf32>
    %145 = arith.mulf %144, %143 : vector<16x256xf32>
    %146 = arith.addf %141, %145 : vector<16x256xf32>
    %cst_50 = arith.constant 0.797884583 : f32
    %147 = vector.broadcast %cst_50 : f32 to vector<16x256xf32>
    %148 = arith.mulf %147, %146 : vector<16x256xf32>
    %149 = math.tanh %148 : vector<16x256xf32>
    %cst_51 = arith.constant 1.000000e+00 : f32
    %150 = vector.broadcast %cst_51 : f32 to vector<16x256xf32>
    %151 = arith.addf %150, %149 : vector<16x256xf32>
    %cst_52 = arith.constant 5.000000e-01 : f32
    %152 = vector.broadcast %cst_52 : f32 to vector<16x256xf32>
    %153 = arith.mulf %152, %151 : vector<16x256xf32>
    %154 = arith.mulf %141, %153 : vector<16x256xf32>
    %155 = arith.truncf %154 : vector<16x256xf32> to vector<16x256xbf16>
    %c0_53 = arith.constant 0 : index
    %c0_54 = arith.constant 0 : index
    %156 = vector.load %arg11[%c0_53, %c0_54] : memref<256x128xbf16, #tpu.memory_space<vmem>>, vector<256x128xbf16>
    %cst_55 = arith.constant dense<0.000000e+00> : vector<16x128xf32>
    %157 = tpu.matmul %155, %156, %cst_55 {dimension_numbers = #tpu.dot_dimension_numbers<[1], [0], [0], [1], [0, 0, 1, 1], [], []>} : vector<16x256xbf16>, vector<256x128xbf16>, vector<16x128xf32> -> vector<16x128xf32>
    %c0_56 = arith.constant 0 : index
    %c0_57 = arith.constant 0 : index
    %158 = vector.load %arg12[%c0_56, %c0_57] : memref<1x128xf32, #tpu.memory_space<vmem>>, vector<1x128xf32>
    %159 = vector.broadcast %158 : vector<1x128xf32> to vector<16x128xf32>
    %160 = arith.addf %157, %159 : vector<16x128xf32>
    %161 = arith.addf %160, %135 : vector<16x128xf32>
    %c0_58 = arith.constant 0 : index
    %c0_59 = arith.constant 0 : index
    %162 = vector.load %arg13[%c0_58, %c0_59] : memref<1x128xf32, #tpu.memory_space<vmem>>, vector<1x128xf32>
    %c0_60 = arith.constant 0 : index
    %c0_61 = arith.constant 0 : index
    %163 = vector.load %arg14[%c0_60, %c0_61] : memref<1x128xf32, #tpu.memory_space<vmem>>, vector<1x128xf32>
    %cst_62 = arith.constant dense<0.000000e+00> : vector<16xf32>
    %164 = vector.multi_reduction <add>, %161, %cst_62 [1] : vector<16x128xf32> to vector<16xf32>
    %165 = vector.shape_cast %164 : vector<16xf32> to vector<16x1xf32>
    %cst_63 = arith.constant 1.562500e-02 : f32
    %166 = vector.broadcast %cst_63 : f32 to vector<16x1xf32>
    %167 = arith.mulf %165, %166 : vector<16x1xf32>
    %168 = arith.mulf %161, %161 : vector<16x128xf32>
    %cst_64 = arith.constant dense<0.000000e+00> : vector<16xf32>
    %169 = vector.multi_reduction <add>, %168, %cst_64 [1] : vector<16x128xf32> to vector<16xf32>
    %170 = vector.shape_cast %169 : vector<16xf32> to vector<16x1xf32>
    %cst_65 = arith.constant 1.562500e-02 : f32
    %171 = vector.broadcast %cst_65 : f32 to vector<16x1xf32>
    %172 = arith.mulf %170, %171 : vector<16x1xf32>
    %173 = arith.mulf %167, %167 : vector<16x1xf32>
    %174 = arith.subf %172, %173 : vector<16x1xf32>
    %cst_66 = arith.constant 0.000000e+00 : f32
    %175 = vector.broadcast %cst_66 : f32 to vector<16x1xf32>
    %176 = arith.maximumf %174, %175 : vector<16x1xf32>
    %cst_67 = arith.constant 9.99999996E-13 : f32
    %177 = vector.broadcast %cst_67 : f32 to vector<16x1xf32>
    %178 = arith.addf %176, %177 : vector<16x1xf32>
    %179 = math.rsqrt %178 : vector<16x1xf32>
    %180 = vector.broadcast %167 : vector<16x1xf32> to vector<16x128xf32>
    %181 = arith.subf %161, %180 : vector<16x128xf32>
    %182 = vector.broadcast %179 : vector<16x1xf32> to vector<16x128xf32>
    %183 = arith.mulf %181, %182 : vector<16x128xf32>
    %184 = vector.broadcast %162 : vector<1x128xf32> to vector<16x128xf32>
    %185 = arith.mulf %183, %184 : vector<16x128xf32>
    %186 = vector.broadcast %163 : vector<1x128xf32> to vector<16x128xf32>
    %187 = arith.addf %185, %186 : vector<16x128xf32>
    %c0_68 = arith.constant 0 : index
    %c0_69 = arith.constant 0 : index
    %c0_70 = arith.constant 0 : index
    %188 = vector.load %arg15[%c0_68, %c0_69, %c0_70] : memref<1x16x128xf32, #tpu.memory_space<vmem>>, vector<1x16x128xf32>
    %189 = vector.shape_cast %188 : vector<1x16x128xf32> to vector<16x128xf32>
    %190 = vector.shape_cast %187 : vector<16x128xf32> to vector<1x16x128xf32>
    tpu.vector_store %arg15[%c0_68, %c0_69, %c0_70], %190 {strides = array<i32>} : memref<1x16x128xf32, #tpu.memory_space<vmem>>, vector<1x16x128xf32>,
    return
  }
  func.func @transform_0(%arg0: i32) -> (i32, i32, i32) {
    %c0_i32 = arith.constant 0 : i32
    %c0_i32_0 = arith.constant 0 : i32
    %c0_i32_1 = arith.constant 0 : i32
    return %arg0, %c0_i32, %c0_i32_0 : i32, i32, i32
  }
  func.func @transform_1(%arg0: i32) -> (i32, i32, i32) {
    %c0_i32 = arith.constant 0 : i32
    %c0_i32_0 = arith.constant 0 : i32
    %c0_i32_1 = arith.constant 0 : i32
    return %arg0, %c0_i32, %c0_i32_0 : i32, i32, i32
  }
  func.func @transform_2(%arg0: i32) -> (i32, i32) {
    %c0_i32 = arith.constant 0 : i32
    %c0_i32_0 = arith.constant 0 : i32
    %c0_i32_1 = arith.constant 0 : i32
    return %c0_i32, %c0_i32_0 : i32, i32
  }
  func.func @transform_3(%arg0: i32) -> (i32, i32) {
    %c0_i32 = arith.constant 0 : i32
    %c0_i32_0 = arith.constant 0 : i32
    %c0_i32_1 = arith.constant 0 : i32
    return %c0_i32, %c0_i32_0 : i32, i32
  }
  func.func @transform_4(%arg0: i32) -> (i32, i32) {
    %c0_i32 = arith.constant 0 : i32
    %c0_i32_0 = arith.constant 0 : i32
    %c0_i32_1 = arith.constant 0 : i32
    return %c0_i32, %c0_i32_0 : i32, i32
  }
  func.func @transform_5(%arg0: i32) -> (i32, i32) {
    %c0_i32 = arith.constant 0 : i32
    %c0_i32_0 = arith.constant 0 : i32
    %c0_i32_1 = arith.constant 0 : i32
    return %c0_i32, %c0_i32_0 : i32, i32
  }
  func.func @transform_6(%arg0: i32) -> (i32, i32) {
    %c0_i32 = arith.constant 0 : i32
    %c0_i32_0 = arith.constant 0 : i32
    %c0_i32_1 = arith.constant 0 : i32
    return %c0_i32, %c0_i32_0 : i32, i32
  }
  func.func @transform_7(%arg0: i32) -> (i32, i32) {
    %c0_i32 = arith.constant 0 : i32
    %c0_i32_0 = arith.constant 0 : i32
    %c0_i32_1 = arith.constant 0 : i32
    return %c0_i32, %c0_i32_0 : i32, i32
  }
  func.func @transform_8(%arg0: i32) -> (i32, i32) {
    %c0_i32 = arith.constant 0 : i32
    %c0_i32_0 = arith.constant 0 : i32
    %c0_i32_1 = arith.constant 0 : i32
    return %c0_i32, %c0_i32_0 : i32, i32
  }
  func.func @transform_9(%arg0: i32) -> (i32, i32) {
    %c0_i32 = arith.constant 0 : i32
    %c0_i32_0 = arith.constant 0 : i32
    %c0_i32_1 = arith.constant 0 : i32
    return %c0_i32, %c0_i32_0 : i32, i32
  }
  func.func @transform_10(%arg0: i32) -> (i32, i32) {
    %c0_i32 = arith.constant 0 : i32
    %c0_i32_0 = arith.constant 0 : i32
    %c0_i32_1 = arith.constant 0 : i32
    return %c0_i32, %c0_i32_0 : i32, i32
  }
  func.func @transform_11(%arg0: i32) -> (i32, i32) {
    %c0_i32 = arith.constant 0 : i32
    %c0_i32_0 = arith.constant 0 : i32
    %c0_i32_1 = arith.constant 0 : i32
    return %c0_i32, %c0_i32_0 : i32, i32
  }
  func.func @transform_12(%arg0: i32) -> (i32, i32) {
    %c0_i32 = arith.constant 0 : i32
    %c0_i32_0 = arith.constant 0 : i32
    %c0_i32_1 = arith.constant 0 : i32
    return %c0_i32, %c0_i32_0 : i32, i32
  }
  func.func @transform_13(%arg0: i32) -> (i32, i32) {
    %c0_i32 = arith.constant 0 : i32
    %c0_i32_0 = arith.constant 0 : i32
    %c0_i32_1 = arith.constant 0 : i32
    return %c0_i32, %c0_i32_0 : i32, i32
  }
  func.func @transform_14(%arg0: i32) -> (i32, i32, i32) {
    %c0_i32 = arith.constant 0 : i32
    %c0_i32_0 = arith.constant 0 : i32
    %c0_i32_1 = arith.constant 0 : i32
    return %arg0, %c0_i32, %c0_i32_0 : i32, i32, i32
  }
}

module attributes {stable_mosaic.version = 11 : i64} {
  func.func @_bert_layer_kernel(%arg0: i32, %arg1: memref<1x16x128xf32, #tpu.memory_space<vmem>>, %arg2: memref<1x1x16xf32, #tpu.memory_space<vmem>>, %arg3: memref<128x384xbf16, #tpu.memory_space<vmem>>, %arg4: memref<1x384xf32, #tpu.memory_space<vmem>>, %arg5: memref<64x128xbf16, #tpu.memory_space<vmem>>, %arg6: memref<1x128xf32, #tpu.memory_space<vmem>>, %arg7: memref<1x128xf32, #tpu.memory_space<vmem>>, %arg8: memref<1x128xf32, #tpu.memory_space<vmem>>, %arg9: memref<128x256xbf16, #tpu.memory_space<vmem>>, %arg10: memref<1x256xf32, #tpu.memory_space<vmem>>, %arg11: memref<256x128xbf16, #tpu.memory_space<vmem>>, %arg12: memref<1x128xf32, #tpu.memory_space<vmem>>, %arg13: memref<1x128xf32, #tpu.memory_space<vmem>>, %arg14: memref<1x128xf32, #tpu.memory_space<vmem>>, %arg15: memref<1x16x128xf32, #tpu.memory_space<vmem>>) attributes {dimension_semantics = [#tpu.dimension_semantics<parallel>], iteration_bounds = array<i64: 5>, scalar_prefetch = 0 : i64, scratch_operands = 0 : i64, tpu.core_type = #tpu.core_type<tc>, window_params = [{transform_indices = @transform_0, window_bounds = array<i64: 1, 16, 128>}, {transform_indices = @transform_1, window_bounds = array<i64: 1, 1, 16>}, {pipeline_mode = #tpu.pipeline_mode<synchronous>, transform_indices = @transform_2, window_bounds = array<i64: 128, 384>}, {pipeline_mode = #tpu.pipeline_mode<synchronous>, transform_indices = @transform_3, window_bounds = array<i64: 1, 384>}, {pipeline_mode = #tpu.pipeline_mode<synchronous>, transform_indices = @transform_4, window_bounds = array<i64: 64, 128>}, {pipeline_mode = #tpu.pipeline_mode<synchronous>, transform_indices = @transform_5, window_bounds = array<i64: 1, 128>}, {pipeline_mode = #tpu.pipeline_mode<synchronous>, transform_indices = @transform_6, window_bounds = array<i64: 1, 128>}, {pipeline_mode = #tpu.pipeline_mode<synchronous>, transform_indices = @transform_7, window_bounds = array<i64: 1, 128>}, {pipeline_mode = #tpu.pipeline_mode<synchronous>, transform_indices = @transform_8, window_bounds = array<i64: 128, 256>}, {pipeline_mode = #tpu.pipeline_mode<synchronous>, transform_indices = @transform_9, window_bounds = array<i64: 1, 256>}, {pipeline_mode = #tpu.pipeline_mode<synchronous>, transform_indices = @transform_10, window_bounds = array<i64: 256, 128>}, {pipeline_mode = #tpu.pipeline_mode<synchronous>, transform_indices = @transform_11, window_bounds = array<i64: 1, 128>}, {pipeline_mode = #tpu.pipeline_mode<synchronous>, transform_indices = @transform_12, window_bounds = array<i64: 1, 128>}, {pipeline_mode = #tpu.pipeline_mode<synchronous>, transform_indices = @transform_13, window_bounds = array<i64: 1, 128>}, {transform_indices = @transform_14, window_bounds = array<i64: 1, 16, 128>}]} {
    %c0 = arith.constant 0 : index
    %c0_0 = arith.constant 0 : index
    %c0_1 = arith.constant 0 : index
    %0 = vector.load %arg1[%c0, %c0_0, %c0_1] : memref<1x16x128xf32, #tpu.memory_space<vmem>>, vector<1x16x128xf32>
    %1 = vector.shape_cast %0 : vector<1x16x128xf32> to vector<16x128xf32>
    %c0_2 = arith.constant 0 : index
    %c0_3 = arith.constant 0 : index
    %c0_4 = arith.constant 0 : index
    %2 = vector.load %arg2[%c0_2, %c0_3, %c0_4] : memref<1x1x16xf32, #tpu.memory_space<vmem>>, vector<1x1x16xf32>
    %3 = vector.shape_cast %2 : vector<1x1x16xf32> to vector<1x16xf32>
    %4 = arith.truncf %1 : vector<16x128xf32> to vector<16x128xbf16>
    %c0_5 = arith.constant 0 : index
    %c0_6 = arith.constant 0 : index
    %5 = vector.load %arg3[%c0_5, %c0_6] : memref<128x384xbf16, #tpu.memory_space<vmem>>, vector<128x384xbf16>
    %cst = arith.constant dense<0.000000e+00> : vector<16x384xf32>
    %6 = tpu.matmul %4, %5, %cst {dimension_numbers = #tpu.dot_dimension_numbers<[1], [0], [0], [1], [0, 0, 1, 1], [], []>} : vector<16x128xbf16>, vector<128x384xbf16>, vector<16x384xf32> -> vector<16x384xf32>
    %c0_7 = arith.constant 0 : index
    %c0_8 = arith.constant 0 : index
    %7 = vector.load %arg4[%c0_7, %c0_8] : memref<1x384xf32, #tpu.memory_space<vmem>>, vector<1x384xf32>
    %8 = vector.broadcast %7 : vector<1x384xf32> to vector<16x384xf32>
    %9 = arith.addf %6, %8 : vector<16x384xf32>
    %10 = vector.extract_strided_slice %9 {offsets = [0, 0], sizes = [16, 16], strides = [1, 1]} : vector<16x384xf32> to vector<16x16xf32>
    %11 = arith.truncf %10 : vector<16x16xf32> to vector<16x16xbf16>
    %12 = vector.extract_strided_slice %9 {offsets = [0, 128], sizes = [16, 16], strides = [1, 1]} : vector<16x384xf32> to vector<16x16xf32>
    %13 = arith.truncf %12 : vector<16x16xf32> to vector<16x16xbf16>
    %14 = vector.extract_strided_slice %9 {offsets = [0, 256], sizes = [16, 16], strides = [1, 1]} : vector<16x384xf32> to vector<16x16xf32>
    %15 = arith.truncf %14 : vector<16x16xf32> to vector<16x16xbf16>
    "tpu.trace_start"() <{level = 10 : i32, message = "qd,kd->qk"}> : () -> ()
    %cst_9 = arith.constant dense<0.000000e+00> : vector<16x16xf32>
    %16 = tpu.matmul %11, %13, %cst_9 {dimension_numbers = #tpu.dot_dimension_numbers<[1], [1], [0], [0], [0, 0, 1, 0], [], []>} : vector<16x16xbf16>, vector<16x16xbf16>, vector<16x16xf32> -> vector<16x16xf32>
    "tpu.trace_stop"() : () -> ()
    %cst_10 = arith.constant 2.500000e-01 : f32
    %17 = vector.broadcast %cst_10 : f32 to vector<16x16xf32>
    %18 = arith.mulf %16, %17 : vector<16x16xf32>
    %19 = vector.broadcast %3 : vector<1x16xf32> to vector<16x16xf32>
    %20 = arith.addf %18, %19 : vector<16x16xf32>
    %cst_11 = arith.constant dense<0xFF800000> : vector<16xf32>
    %21 = vector.multi_reduction <maximumf>, %20, %cst_11 [1] : vector<16x16xf32> to vector<16xf32>
    %22 = vector.shape_cast %21 : vector<16xf32> to vector<16x1xf32>
    %23 = vector.broadcast %22 : vector<16x1xf32> to vector<16x16xf32>
    %24 = arith.subf %20, %23 : vector<16x16xf32>
    %25 = math.exp %24 : vector<16x16xf32>
    %cst_12 = arith.constant dense<0.000000e+00> : vector<16xf32>
    %26 = vector.multi_reduction <add>, %25, %cst_12 [1] : vector<16x16xf32> to vector<16xf32>
    %27 = vector.shape_cast %26 : vector<16xf32> to vector<16x1xf32>
    %28 = tpu.reciprocal %27 {approx = true} : vector<16x1xf32> -> vector<16x1xf32>
    %29 = vector.broadcast %28 : vector<16x1xf32> to vector<16x16xf32>
    %30 = arith.mulf %25, %29 : vector<16x16xf32>
    %31 = arith.truncf %30 : vector<16x16xf32> to vector<16x16xbf16>
    %cst_13 = arith.constant dense<0.000000e+00> : vector<16x16xf32>
    %32 = tpu.matmul %31, %15, %cst_13 {dimension_numbers = #tpu.dot_dimension_numbers<[1], [0], [0], [1], [0, 0, 1, 1], [], []>} : vector<16x16xbf16>, vector<16x16xbf16>, vector<16x16xf32> -> vector<16x16xf32>
    %33 = vector.extract_strided_slice %9 {offsets = [0, 16], sizes = [16, 16], strides = [1, 1]} : vector<16x384xf32> to vector<16x16xf32>
    %34 = arith.truncf %33 : vector<16x16xf32> to vector<16x16xbf16>
    %35 = vector.extract_strided_slice %9 {offsets = [0, 144], sizes = [16, 16], strides = [1, 1]} : vector<16x384xf32> to vector<16x16xf32>
    %36 = arith.truncf %35 : vector<16x16xf32> to vector<16x16xbf16>
    %37 = vector.extract_strided_slice %9 {offsets = [0, 272], sizes = [16, 16], strides = [1, 1]} : vector<16x384xf32> to vector<16x16xf32>
    %38 = arith.truncf %37 : vector<16x16xf32> to vector<16x16xbf16>
    "tpu.trace_start"() <{level = 10 : i32, message = "qd,kd->qk"}> : () -> ()
    %cst_14 = arith.constant dense<0.000000e+00> : vector<16x16xf32>
    %39 = tpu.matmul %34, %36, %cst_14 {dimension_numbers = #tpu.dot_dimension_numbers<[1], [1], [0], [0], [0, 0, 1, 0], [], []>} : vector<16x16xbf16>, vector<16x16xbf16>, vector<16x16xf32> -> vector<16x16xf32>
    "tpu.trace_stop"() : () -> ()
    %cst_15 = arith.constant 2.500000e-01 : f32
    %40 = vector.broadcast %cst_15 : f32 to vector<16x16xf32>
    %41 = arith.mulf %39, %40 : vector<16x16xf32>
    %42 = vector.broadcast %3 : vector<1x16xf32> to vector<16x16xf32>
    %43 = arith.addf %41, %42 : vector<16x16xf32>
    %cst_16 = arith.constant dense<0xFF800000> : vector<16xf32>
    %44 = vector.multi_reduction <maximumf>, %43, %cst_16 [1] : vector<16x16xf32> to vector<16xf32>
    %45 = vector.shape_cast %44 : vector<16xf32> to vector<16x1xf32>
    %46 = vector.broadcast %45 : vector<16x1xf32> to vector<16x16xf32>
    %47 = arith.subf %43, %46 : vector<16x16xf32>
    %48 = math.exp %47 : vector<16x16xf32>
    %cst_17 = arith.constant dense<0.000000e+00> : vector<16xf32>
    %49 = vector.multi_reduction <add>, %48, %cst_17 [1] : vector<16x16xf32> to vector<16xf32>
    %50 = vector.shape_cast %49 : vector<16xf32> to vector<16x1xf32>
    %51 = tpu.reciprocal %50 {approx = true} : vector<16x1xf32> -> vector<16x1xf32>
    %52 = vector.broadcast %51 : vector<16x1xf32> to vector<16x16xf32>
    %53 = arith.mulf %48, %52 : vector<16x16xf32>
    %54 = arith.truncf %53 : vector<16x16xf32> to vector<16x16xbf16>
    %cst_18 = arith.constant dense<0.000000e+00> : vector<16x16xf32>
    %55 = tpu.matmul %54, %38, %cst_18 {dimension_numbers = #tpu.dot_dimension_numbers<[1], [0], [0], [1], [0, 0, 1, 1], [], []>} : vector<16x16xbf16>, vector<16x16xbf16>, vector<16x16xf32> -> vector<16x16xf32>
    %56 = vector.extract_strided_slice %9 {offsets = [0, 32], sizes = [16, 16], strides = [1, 1]} : vector<16x384xf32> to vector<16x16xf32>
    %57 = arith.truncf %56 : vector<16x16xf32> to vector<16x16xbf16>
    %58 = vector.extract_strided_slice %9 {offsets = [0, 160], sizes = [16, 16], strides = [1, 1]} : vector<16x384xf32> to vector<16x16xf32>
    %59 = arith.truncf %58 : vector<16x16xf32> to vector<16x16xbf16>
    %60 = vector.extract_strided_slice %9 {offsets = [0, 288], sizes = [16, 16], strides = [1, 1]} : vector<16x384xf32> to vector<16x16xf32>
    %61 = arith.truncf %60 : vector<16x16xf32> to vector<16x16xbf16>
    "tpu.trace_start"() <{level = 10 : i32, message = "qd,kd->qk"}> : () -> ()
    %cst_19 = arith.constant dense<0.000000e+00> : vector<16x16xf32>
    %62 = tpu.matmul %57, %59, %cst_19 {dimension_numbers = #tpu.dot_dimension_numbers<[1], [1], [0], [0], [0, 0, 1, 0], [], []>} : vector<16x16xbf16>, vector<16x16xbf16>, vector<16x16xf32> -> vector<16x16xf32>
    "tpu.trace_stop"() : () -> ()
    %cst_20 = arith.constant 2.500000e-01 : f32
    %63 = vector.broadcast %cst_20 : f32 to vector<16x16xf32>
    %64 = arith.mulf %62, %63 : vector<16x16xf32>
    %65 = vector.broadcast %3 : vector<1x16xf32> to vector<16x16xf32>
    %66 = arith.addf %64, %65 : vector<16x16xf32>
    %cst_21 = arith.constant dense<0xFF800000> : vector<16xf32>
    %67 = vector.multi_reduction <maximumf>, %66, %cst_21 [1] : vector<16x16xf32> to vector<16xf32>
    %68 = vector.shape_cast %67 : vector<16xf32> to vector<16x1xf32>
    %69 = vector.broadcast %68 : vector<16x1xf32> to vector<16x16xf32>
    %70 = arith.subf %66, %69 : vector<16x16xf32>
    %71 = math.exp %70 : vector<16x16xf32>
    %cst_22 = arith.constant dense<0.000000e+00> : vector<16xf32>
    %72 = vector.multi_reduction <add>, %71, %cst_22 [1] : vector<16x16xf32> to vector<16xf32>
    %73 = vector.shape_cast %72 : vector<16xf32> to vector<16x1xf32>
    %74 = tpu.reciprocal %73 {approx = true} : vector<16x1xf32> -> vector<16x1xf32>
    %75 = vector.broadcast %74 : vector<16x1xf32> to vector<16x16xf32>
    %76 = arith.mulf %71, %75 : vector<16x16xf32>
    %77 = arith.truncf %76 : vector<16x16xf32> to vector<16x16xbf16>
    %cst_23 = arith.constant dense<0.000000e+00> : vector<16x16xf32>
    %78 = tpu.matmul %77, %61, %cst_23 {dimension_numbers = #tpu.dot_dimension_numbers<[1], [0], [0], [1], [0, 0, 1, 1], [], []>} : vector<16x16xbf16>, vector<16x16xbf16>, vector<16x16xf32> -> vector<16x16xf32>
    %79 = vector.extract_strided_slice %9 {offsets = [0, 48], sizes = [16, 16], strides = [1, 1]} : vector<16x384xf32> to vector<16x16xf32>
    %80 = arith.truncf %79 : vector<16x16xf32> to vector<16x16xbf16>
    %81 = vector.extract_strided_slice %9 {offsets = [0, 176], sizes = [16, 16], strides = [1, 1]} : vector<16x384xf32> to vector<16x16xf32>
    %82 = arith.truncf %81 : vector<16x16xf32> to vector<16x16xbf16>
    %83 = vector.extract_strided_slice %9 {offsets = [0, 304], sizes = [16, 16], strides = [1, 1]} : vector<16x384xf32> to vector<16x16xf32>
    %84 = arith.truncf %83 : vector<16x16xf32> to vector<16x16xbf16>
    "tpu.trace_start"() <{level = 10 : i32, message = "qd,kd->qk"}> : () -> ()
    %cst_24 = arith.constant dense<0.000000e+00> : vector<16x16xf32>
    %85 = tpu.matmul %80, %82, %cst_24 {dimension_numbers = #tpu.dot_dimension_numbers<[1], [1], [0], [0], [0, 0, 1, 0], [], []>} : vector<16x16xbf16>, vector<16x16xbf16>, vector<16x16xf32> -> vector<16x16xf32>
    "tpu.trace_stop"() : () -> ()
    %cst_25 = arith.constant 2.500000e-01 : f32
    %86 = vector.broadcast %cst_25 : f32 to vector<16x16xf32>
    %87 = arith.mulf %85, %86 : vector<16x16xf32>
    %88 = vector.broadcast %3 : vector<1x16xf32> to vector<16x16xf32>
    %89 = arith.addf %87, %88 : vector<16x16xf32>
    %cst_26 = arith.constant dense<0xFF800000> : vector<16xf32>
    %90 = vector.multi_reduction <maximumf>, %89, %cst_26 [1] : vector<16x16xf32> to vector<16xf32>
    %91 = vector.shape_cast %90 : vector<16xf32> to vector<16x1xf32>
    %92 = vector.broadcast %91 : vector<16x1xf32> to vector<16x16xf32>
    %93 = arith.subf %89, %92 : vector<16x16xf32>
    %94 = math.exp %93 : vector<16x16xf32>
    %cst_27 = arith.constant dense<0.000000e+00> : vector<16xf32>
    %95 = vector.multi_reduction <add>, %94, %cst_27 [1] : vector<16x16xf32> to vector<16xf32>
    %96 = vector.shape_cast %95 : vector<16xf32> to vector<16x1xf32>
    %97 = tpu.reciprocal %96 {approx = true} : vector<16x1xf32> -> vector<16x1xf32>
    %98 = vector.broadcast %97 : vector<16x1xf32> to vector<16x16xf32>
    %99 = arith.mulf %94, %98 : vector<16x16xf32>
    %100 = arith.truncf %99 : vector<16x16xf32> to vector<16x16xbf16>
    %cst_28 = arith.constant dense<0.000000e+00> : vector<16x16xf32>
    %101 = tpu.matmul %100, %84, %cst_28 {dimension_numbers = #tpu.dot_dimension_numbers<[1], [0], [0], [1], [0, 0, 1, 1], [], []>} : vector<16x16xbf16>, vector<16x16xbf16>, vector<16x16xf32> -> vector<16x16xf32>
    %102 = tpu.concatenate %32, %55, %78, %101 in 1 : vector<16x16xf32>, vector<16x16xf32>, vector<16x16xf32>, vector<16x16xf32> -> vector<16x64xf32>
    %103 = arith.truncf %102 : vector<16x64xf32> to vector<16x64xbf16>
    %c0_29 = arith.constant 0 : index
    %c0_30 = arith.constant 0 : index
    %104 = vector.load %arg5[%c0_29, %c0_30] : memref<64x128xbf16, #tpu.memory_space<vmem>>, vector<64x128xbf16>
    %cst_31 = arith.constant dense<0.000000e+00> : vector<16x128xf32>
    %105 = tpu.matmul %103, %104, %cst_31 {dimension_numbers = #tpu.dot_dimension_numbers<[1], [0], [0], [1], [0, 0, 1, 1], [], []>} : vector<16x64xbf16>, vector<64x128xbf16>, vector<16x128xf32> -> vector<16x128xf32>
    %c0_32 = arith.constant 0 : index
    %c0_33 = arith.constant 0 : index
    %106 = vector.load %arg6[%c0_32, %c0_33] : memref<1x128xf32, #tpu.memory_space<vmem>>, vector<1x128xf32>
    %107 = vector.broadcast %106 : vector<1x128xf32> to vector<16x128xf32>
    %108 = arith.addf %105, %107 : vector<16x128xf32>
    %109 = arith.addf %108, %1 : vector<16x128xf32>
    %c0_34 = arith.constant 0 : index
    %c0_35 = arith.constant 0 : index
    %110 = vector.load %arg7[%c0_34, %c0_35] : memref<1x128xf32, #tpu.memory_space<vmem>>, vector<1x128xf32>
    %c0_36 = arith.constant 0 : index
    %c0_37 = arith.constant 0 : index
    %111 = vector.load %arg8[%c0_36, %c0_37] : memref<1x128xf32, #tpu.memory_space<vmem>>, vector<1x128xf32>
    %cst_38 = arith.constant dense<0.000000e+00> : vector<16xf32>
    %112 = vector.multi_reduction <add>, %109, %cst_38 [1] : vector<16x128xf32> to vector<16xf32>
    %113 = vector.shape_cast %112 : vector<16xf32> to vector<16x1xf32>
    %cst_39 = arith.constant 1.562500e-02 : f32
    %114 = vector.broadcast %cst_39 : f32 to vector<16x1xf32>
    %115 = arith.mulf %113, %114 : vector<16x1xf32>
    %116 = arith.mulf %109, %109 : vector<16x128xf32>
    %cst_40 = arith.constant dense<0.000000e+00> : vector<16xf32>
    %117 = vector.multi_reduction <add>, %116, %cst_40 [1] : vector<16x128xf32> to vector<16xf32>
    %118 = vector.shape_cast %117 : vector<16xf32> to vector<16x1xf32>
    %cst_41 = arith.constant 1.562500e-02 : f32
    %119 = vector.broadcast %cst_41 : f32 to vector<16x1xf32>
    %120 = arith.mulf %118, %119 : vector<16x1xf32>
    %121 = arith.mulf %115, %115 : vector<16x1xf32>
    %122 = arith.subf %120, %121 : vector<16x1xf32>
    %cst_42 = arith.constant 0.000000e+00 : f32
    %123 = vector.broadcast %cst_42 : f32 to vector<16x1xf32>
    %124 = arith.maximumf %122, %123 : vector<16x1xf32>
    %cst_43 = arith.constant 9.99999996E-13 : f32
    %125 = vector.broadcast %cst_43 : f32 to vector<16x1xf32>
    %126 = arith.addf %124, %125 : vector<16x1xf32>
    %127 = math.rsqrt %126 : vector<16x1xf32>
    %128 = vector.broadcast %115 : vector<16x1xf32> to vector<16x128xf32>
    %129 = arith.subf %109, %128 : vector<16x128xf32>
    %130 = vector.broadcast %127 : vector<16x1xf32> to vector<16x128xf32>
    %131 = arith.mulf %129, %130 : vector<16x128xf32>
    %132 = vector.broadcast %110 : vector<1x128xf32> to vector<16x128xf32>
    %133 = arith.mulf %131, %132 : vector<16x128xf32>
    %134 = vector.broadcast %111 : vector<1x128xf32> to vector<16x128xf32>
    %135 = arith.addf %133, %134 : vector<16x128xf32>
    %136 = arith.truncf %135 : vector<16x128xf32> to vector<16x128xbf16>
    %c0_44 = arith.constant 0 : index
    %c0_45 = arith.constant 0 : index
    %137 = vector.load %arg9[%c0_44, %c0_45] : memref<128x256xbf16, #tpu.memory_space<vmem>>, vector<128x256xbf16>
    %cst_46 = arith.constant dense<0.000000e+00> : vector<16x256xf32>
    %138 = tpu.matmul %136, %137, %cst_46 {dimension_numbers = #tpu.dot_dimension_numbers<[1], [0], [0], [1], [0, 0, 1, 1], [], []>} : vector<16x128xbf16>, vector<128x256xbf16>, vector<16x256xf32> -> vector<16x256xf32>
    %c0_47 = arith.constant 0 : index
    %c0_48 = arith.constant 0 : index
    %139 = vector.load %arg10[%c0_47, %c0_48] : memref<1x256xf32, #tpu.memory_space<vmem>>, vector<1x256xf32>
    %140 = vector.broadcast %139 : vector<1x256xf32> to vector<16x256xf32>
    %141 = arith.addf %138, %140 : vector<16x256xf32>
    %142 = arith.mulf %141, %141 : vector<16x256xf32>
    %143 = arith.mulf %141, %142 : vector<16x256xf32>
    %cst_49 = arith.constant 4.471500e-02 : f32
    %144 = vector.broadcast %cst_49 : f32 to vector<16x256xf32>
    %145 = arith.mulf %144, %143 : vector<16x256xf32>
    %146 = arith.addf %141, %145 : vector<16x256xf32>
    %cst_50 = arith.constant 0.797884583 : f32
    %147 = vector.broadcast %cst_50 : f32 to vector<16x256xf32>
    %148 = arith.mulf %147, %146 : vector<16x256xf32>
    %149 = math.tanh %148 : vector<16x256xf32>
    %cst_51 = arith.constant 1.000000e+00 : f32
    %150 = vector.broadcast %cst_51 : f32 to vector<16x256xf32>
    %151 = arith.addf %150, %149 : vector<16x256xf32>
    %cst_52 = arith.constant 5.000000e-01 : f32
    %152 = vector.broadcast %cst_52 : f32 to vector<16x256xf32>
    %153 = arith.mulf %152, %151 : vector<16x256xf32>
    %154 = arith.mulf %141, %153 : vector<16x256xf32>
    %155 = arith.truncf %154 : vector<16x256xf32> to vector<16x256xbf16>
    %c0_53 = arith.constant 0 : index
    %c0_54 = arith.constant 0 : index
    %156 = vector.load %arg11[%c0_53, %c0_54] : memref<256x128xbf16, #tpu.memory_space<vmem>>, vector<256x128xbf16>
    %cst_55 = arith.constant dense<0.000000e+00> : vector<16x128xf32>
    %157 = tpu.matmul %155, %156, %cst_55 {dimension_numbers = #tpu.dot_dimension_numbers<[1], [0], [0], [1], [0, 0, 1, 1], [], []>} : vector<16x256xbf16>, vector<256x128xbf16>, vector<16x128xf32> -> vector<16x128xf32>
    %c0_56 = arith.constant 0 : index
    %c0_57 = arith.constant 0 : index
    %158 = vector.load %arg12[%c0_56, %c0_57] : memref<1x128xf32, #tpu.memory_space<vmem>>, vector<1x128xf32>
    %159 = vector.broadcast %158 : vector<1x128xf32> to vector<16x128xf32>
    %160 = arith.addf %157, %159 : vector<16x128xf32>
    %161 = arith.addf %160, %135 : vector<16x128xf32>
    %c0_58 = arith.constant 0 : index
    %c0_59 = arith.constant 0 : index
    %162 = vector.load %arg13[%c0_58, %c0_59] : memref<1x128xf32, #tpu.memory_space<vmem>>, vector<1x128xf32>
    %c0_60 = arith.constant 0 : index
    %c0_61 = arith.constant 0 : index
    %163 = vector.load %arg14[%c0_60, %c0_61] : memref<1x128xf32, #tpu.memory_space<vmem>>, vector<1x128xf32>
    %cst_62 = arith.constant dense<0.000000e+00> : vector<16xf32>
    %164 = vector.multi_reduction <add>, %161, %cst_62 [1] : vector<16x128xf32> to vector<16xf32>
    %165 = vector.shape_cast %164 : vector<16xf32> to vector<16x1xf32>
    %cst_63 = arith.constant 1.562500e-02 : f32
    %166 = vector.broadcast %cst_63 : f32 to vector<16x1xf32>
    %167 = arith.mulf %165, %166 : vector<16x1xf32>
    %168 = arith.mulf %161, %161 : vector<16x128xf32>
    %cst_64 = arith.constant dense<0.000000e+00> : vector<16xf32>
    %169 = vector.multi_reduction <add>, %168, %cst_64 [1] : vector<16x128xf32> to vector<16xf32>
    %170 = vector.shape_cast %169 : vector<16xf32> to vector<16x1xf32>
    %cst_65 = arith.constant 1.562500e-02 : f32
    %171 = vector.broadcast %cst_65 : f32 to vector<16x1xf32>
    %172 = arith.mulf %170, %171 : vector<16x1xf32>
    %173 = arith.mulf %167, %167 : vector<16x1xf32>
    %174 = arith.subf %172, %173 : vector<16x1xf32>
    %cst_66 = arith.constant 0.000000e+00 : f32
    %175 = vector.broadcast %cst_66 : f32 to vector<16x1xf32>
    %176 = arith.maximumf %174, %175 : vector<16x1xf32>
    %cst_67 = arith.constant 9.99999996E-13 : f32
    %177 = vector.broadcast %cst_67 : f32 to vector<16x1xf32>
    %178 = arith.addf %176, %177 : vector<16x1xf32>
    %179 = math.rsqrt %178 : vector<16x1xf32>
    %180 = vector.broadcast %167 : vector<16x1xf32> to vector<16x128xf32>
    %181 = arith.subf %161, %180 : vector<16x128xf32>
    %182 = vector.broadcast %179 : vector<16x1xf32> to vector<16x128xf32>
    %183 = arith.mulf %181, %182 : vector<16x128xf32>
    %184 = vector.broadcast %162 : vector<1x128xf32> to vector<16x128xf32>
    %185 = arith.mulf %183, %184 : vector<16x128xf32>
    %186 = vector.broadcast %163 : vector<1x128xf32> to vector<16x128xf32>
    %187 = arith.addf %185, %186 : vector<16x128xf32>
    %c0_68 = arith.constant 0 : index
    %c0_69 = arith.constant 0 : index
    %c0_70 = arith.constant 0 : index
    %188 = vector.load %arg15[%c0_68, %c0_69, %c0_70] : memref<1x16x128xf32, #tpu.memory_space<vmem>>, vector<1x16x128xf32>
    %189 = vector.shape_cast %188 : vector<1x16x128xf32> to vector<16x128xf32>
    %190 = vector.shape_cast %187 : vector<16x128xf32> to vector<1x16x128xf32>
    tpu.vector_store %arg15[%c0_68, %c0_69, %c0_70], %190 {strides = array<i32>} : memref<1x16x128xf32, #tpu.memory_space<vmem>>, vector<1x16x128xf32>,
    return
  }
  func.func @transform_0(%arg0: i32) -> (i32, i32, i32) {
    %c0_i32 = arith.constant 0 : i32
    %c0_i32_0 = arith.constant 0 : i32
    %c0_i32_1 = arith.constant 0 : i32
    return %arg0, %c0_i32, %c0_i32_0 : i32, i32, i32
  }
  func.func @transform_1(%arg0: i32) -> (i32, i32, i32) {
    %c0_i32 = arith.constant 0 : i32
    %c0_i32_0 = arith.constant 0 : i32
    %c0_i32_1 = arith.constant 0 : i32
    return %arg0, %c0_i32, %c0_i32_0 : i32, i32, i32
  }
  func.func @transform_2(%arg0: i32) -> (i32, i32) {
    %c0_i32 = arith.constant 0 : i32
    %c0_i32_0 = arith.constant 0 : i32
    %c0_i32_1 = arith.constant 0 : i32
    return %c0_i32, %c0_i32_0 : i32, i32
  }
  func.func @transform_3(%arg0: i32) -> (i32, i32) {
    %c0_i32 = arith.constant 0 : i32
    %c0_i32_0 = arith.constant 0 : i32
    %c0_i32_1 = arith.constant 0 : i32
    return %c0_i32, %c0_i32_0 : i32, i32
  }
  func.func @transform_4(%arg0: i32) -> (i32, i32) {
    %c0_i32 = arith.constant 0 : i32
    %c0_i32_0 = arith.constant 0 : i32
    %c0_i32_1 = arith.constant 0 : i32
    return %c0_i32, %c0_i32_0 : i32, i32
  }
  func.func @transform_5(%arg0: i32) -> (i32, i32) {
    %c0_i32 = arith.constant 0 : i32
    %c0_i32_0 = arith.constant 0 : i32
    %c0_i32_1 = arith.constant 0 : i32
    return %c0_i32, %c0_i32_0 : i32, i32
  }
  func.func @transform_6(%arg0: i32) -> (i32, i32) {
    %c0_i32 = arith.constant 0 : i32
    %c0_i32_0 = arith.constant 0 : i32
    %c0_i32_1 = arith.constant 0 : i32
    return %c0_i32, %c0_i32_0 : i32, i32
  }
  func.func @transform_7(%arg0: i32) -> (i32, i32) {
    %c0_i32 = arith.constant 0 : i32
    %c0_i32_0 = arith.constant 0 : i32
    %c0_i32_1 = arith.constant 0 : i32
    return %c0_i32, %c0_i32_0 : i32, i32
  }
  func.func @transform_8(%arg0: i32) -> (i32, i32) {
    %c0_i32 = arith.constant 0 : i32
    %c0_i32_0 = arith.constant 0 : i32
    %c0_i32_1 = arith.constant 0 : i32
    return %c0_i32, %c0_i32_0 : i32, i32
  }
  func.func @transform_9(%arg0: i32) -> (i32, i32) {
    %c0_i32 = arith.constant 0 : i32
    %c0_i32_0 = arith.constant 0 : i32
    %c0_i32_1 = arith.constant 0 : i32
    return %c0_i32, %c0_i32_0 : i32, i32
  }
  func.func @transform_10(%arg0: i32) -> (i32, i32) {
    %c0_i32 = arith.constant 0 : i32
    %c0_i32_0 = arith.constant 0 : i32
    %c0_i32_1 = arith.constant 0 : i32
    return %c0_i32, %c0_i32_0 : i32, i32
  }
  func.func @transform_11(%arg0: i32) -> (i32, i32) {
    %c0_i32 = arith.constant 0 : i32
    %c0_i32_0 = arith.constant 0 : i32
    %c0_i32_1 = arith.constant 0 : i32
    return %c0_i32, %c0_i32_0 : i32, i32
  }
  func.func @transform_12(%arg0: i32) -> (i32, i32) {
    %c0_i32 = arith.constant 0 : i32
    %c0_i32_0 = arith.constant 0 : i32
    %c0_i32_1 = arith.constant 0 : i32
    return %c0_i32, %c0_i32_0 : i32, i32
  }
  func.func @transform_13(%arg0: i32) -> (i32, i32) {
    %c0_i32 = arith.constant 0 : i32
    %c0_i32_0 = arith.constant 0 : i32
    %c0_i32_1 = arith.constant 0 : i32
    return %c0_i32, %c0_i32_0 : i32, i32
  }
  func.func @transform_14(%arg0: i32) -> (i32, i32, i32) {
    %c0_i32 = arith.constant 0 : i32
    %c0_i32_0 = arith.constant 0 : i32
    %c0_i32_1 = arith.constant 0 : i32
    return %arg0, %c0_i32, %c0_i32_0 : i32, i32, i32
  }
}

module attributes {stable_mosaic.version = 11 : i64} {
  func.func @_mlp_proj_kernel(%arg0: i32, %arg1: memref<8x128xf32, #tpu.memory_space<vmem>>, %arg2: memref<128x128xbf16, #tpu.memory_space<vmem>>, %arg3: memref<128x128xbf16, #tpu.memory_space<vmem>>, %arg4: memref<8x128xf32, #tpu.memory_space<vmem>>) attributes {dimension_semantics = [#tpu.dimension_semantics<arbitrary>], iteration_bounds = array<i64: 1>, scalar_prefetch = 0 : i64, scratch_operands = 0 : i64, tpu.core_type = #tpu.core_type<tc>, window_params = [{pipeline_mode = #tpu.pipeline_mode<synchronous>, transform_indices = @transform_0, window_bounds = array<i64: 8, 128>}, {pipeline_mode = #tpu.pipeline_mode<synchronous>, transform_indices = @transform_1, window_bounds = array<i64: 128, 128>}, {pipeline_mode = #tpu.pipeline_mode<synchronous>, transform_indices = @transform_2, window_bounds = array<i64: 128, 128>}, {pipeline_mode = #tpu.pipeline_mode<synchronous>, transform_indices = @transform_3, window_bounds = array<i64: 8, 128>}]} {
    %c0 = arith.constant 0 : index
    %c0_0 = arith.constant 0 : index
    %0 = vector.load %arg1[%c0, %c0_0] : memref<8x128xf32, #tpu.memory_space<vmem>>, vector<8x128xf32>
    %1 = arith.truncf %0 : vector<8x128xf32> to vector<8x128xbf16>
    %c0_1 = arith.constant 0 : index
    %c0_2 = arith.constant 0 : index
    %2 = vector.load %arg2[%c0_1, %c0_2] : memref<128x128xbf16, #tpu.memory_space<vmem>>, vector<128x128xbf16>
    %cst = arith.constant dense<0.000000e+00> : vector<8x128xf32>
    %3 = tpu.matmul %1, %2, %cst {dimension_numbers = #tpu.dot_dimension_numbers<[1], [0], [0], [1], [0, 0, 1, 1], [], []>} : vector<8x128xbf16>, vector<128x128xbf16>, vector<8x128xf32> -> vector<8x128xf32>
    %4 = arith.mulf %3, %3 : vector<8x128xf32>
    %5 = arith.mulf %3, %4 : vector<8x128xf32>
    %cst_3 = arith.constant 4.471500e-02 : f32
    %6 = vector.broadcast %cst_3 : f32 to vector<8x128xf32>
    %7 = arith.mulf %6, %5 : vector<8x128xf32>
    %8 = arith.addf %3, %7 : vector<8x128xf32>
    %cst_4 = arith.constant 0.797884583 : f32
    %9 = vector.broadcast %cst_4 : f32 to vector<8x128xf32>
    %10 = arith.mulf %9, %8 : vector<8x128xf32>
    %11 = math.tanh %10 : vector<8x128xf32>
    %cst_5 = arith.constant 1.000000e+00 : f32
    %12 = vector.broadcast %cst_5 : f32 to vector<8x128xf32>
    %13 = arith.addf %12, %11 : vector<8x128xf32>
    %cst_6 = arith.constant 5.000000e-01 : f32
    %14 = vector.broadcast %cst_6 : f32 to vector<8x128xf32>
    %15 = arith.mulf %14, %13 : vector<8x128xf32>
    %16 = arith.mulf %3, %15 : vector<8x128xf32>
    %17 = arith.truncf %16 : vector<8x128xf32> to vector<8x128xbf16>
    %c0_7 = arith.constant 0 : index
    %c0_8 = arith.constant 0 : index
    %18 = vector.load %arg3[%c0_7, %c0_8] : memref<128x128xbf16, #tpu.memory_space<vmem>>, vector<128x128xbf16>
    %cst_9 = arith.constant dense<0.000000e+00> : vector<8x128xf32>
    %19 = tpu.matmul %17, %18, %cst_9 {dimension_numbers = #tpu.dot_dimension_numbers<[1], [0], [0], [1], [0, 0, 1, 1], [], []>} : vector<8x128xbf16>, vector<128x128xbf16>, vector<8x128xf32> -> vector<8x128xf32>
    %c0_10 = arith.constant 0 : index
    %c0_11 = arith.constant 0 : index
    %20 = vector.load %arg4[%c0_10, %c0_11] : memref<8x128xf32, #tpu.memory_space<vmem>>, vector<8x128xf32>
    tpu.vector_store %arg4[%c0_10, %c0_11], %19 {strides = array<i32>} : memref<8x128xf32, #tpu.memory_space<vmem>>, vector<8x128xf32>,
    return
  }
  func.func @transform_0(%arg0: i32) -> (i32, i32) {
    %c0_i32 = arith.constant 0 : i32
    %c0_i32_0 = arith.constant 0 : i32
    %c0_i32_1 = arith.constant 0 : i32
    return %c0_i32, %c0_i32_0 : i32, i32
  }
  func.func @transform_1(%arg0: i32) -> (i32, i32) {
    %c0_i32 = arith.constant 0 : i32
    %c0_i32_0 = arith.constant 0 : i32
    %c0_i32_1 = arith.constant 0 : i32
    return %c0_i32, %c0_i32_0 : i32, i32
  }
  func.func @transform_2(%arg0: i32) -> (i32, i32) {
    %c0_i32 = arith.constant 0 : i32
    %c0_i32_0 = arith.constant 0 : i32
    %c0_i32_1 = arith.constant 0 : i32
    return %c0_i32, %c0_i32_0 : i32, i32
  }
  func.func @transform_3(%arg0: i32) -> (i32, i32) {
    %c0_i32 = arith.constant 0 : i32
    %c0_i32_0 = arith.constant 0 : i32
    %c0_i32_1 = arith.constant 0 : i32
    return %c0_i32, %c0_i32_0 : i32, i32
  }
}

</mosaic_0001>

<llo_original>
// kernel: _lambda_.4
$region0: #{_lambda_.4}
  #allocation0 [shape = 'u32[]', space=smem, size = 0x4, offset = 0x4, fixed_abs, tag = 'smem constant byte address 0x4 - core index']
  #allocation1 [shape = 'u32[72,128]{1,0:T(1,128)}', space=vmem, size = 0x9000, scoped, tag = 'internal scratch']
  %s0 = inlined_call_operand.vmem [shape: f32[5,16,128], index: 0, kind: input, shape index: {}]
  %s1 = inlined_call_operand.vmem [shape: f32[16,128], index: 1, kind: input, shape index: {}]
  %s2 = inlined_call_operand.vmem [shape: f32[1,128], index: 2, kind: input, shape index: {}]
  %s3 = inlined_call_operand.vmem [shape: f32[1,128], index: 3, kind: input, shape index: {}]
  %s4 = inlined_call_operand.vmem [shape: f32[1,128], index: 4, kind: input, shape index: {}]
  %s5 = inlined_call_operand.vmem [shape: f32[5,16,128], index: 5, kind: output, shape index: {}]
  %s6 = sld [smem:[#allocation0]]
  $region53: #{_lambda_.4} parent=0
    _
  %s8 = ssub.s32 1, %s6
  %s9 = scalar_select 0, %s8, %s6
  loop: start=0, step=1, limit=7
  $region2: #{_lambda_.4} parent=0 // loop_pre_header
    _
  $region3: #{_lambda_.4} parent=0 // loop_header
    %s11 = sphi 0, %s15
    %p12 = scmp.ge.s32.totalorder %s11, 7
    %s21 = sphi 0, %s23
    %s24 = sphi 0, %s21
    %s25 = sphi 0, %s24
    %s41 = sphi 0, %s25
    %s45 = sphi 0, %s45
    %s47 = sphi 0, %s45
    %s48 = sphi 0, %s47
    %s62 = sphi 0, %s48
    %s66 = sphi 0, %s66
    %s68 = sphi 0, %s66
    %s69 = sphi 0, %s68
    %s83 = sphi 0, %s69
    %s87 = sphi 0, %s87
    %s89 = sphi 0, %s87
    %s90 = sphi 0, %s89
    %s104 = sphi 0, %s90
    %s108 = sphi 0, %s108
    %s110 = sphi 0, %s108
    %s111 = sphi 0, %s110
    %s125 = sphi 0, %s111
    %s131 = sphi 0, %s133
    %s134 = sphi 0, %s131
    %s135 = sphi 0, %s134
    %s151 = sphi 0, %s135
  $region4: #{_lambda_.4} parent=0 // loop_header_branch
    %14 = sbr.rel (%p12) target = $region8
  $region5: #{_lambda_.4} parent=0 // loop_body
    %s16 = ssub.s32 %s11, 1
    %s17 = ssub.s32 %s11, 2
    %s18 = sadd.s32 %s11, 1
    %s19 = ssub.s32 %s11, %s18
    %p20 = scmp.eq.s32.totalorder %s19, 0
    %s22 = sadd.s32 %s21, 1
    %s23 = scalar_select %p20, %s21, %s22
    %p26 = pneg %p20
    %p27 = scmp.eq.s32.totalorder %s11, 4
    %p28 = por %p26, %p27
    %p29 = scmp.ne.s32.totalorder %s21, %s24
    %p30 = scmp.eq.s32.totalorder %s11, 0
    %p31 = por %p29, %p30
    %p32 = scmp.ne.s32.totalorder %s21, %s24
    %p33 = scmp.eq.s32.totalorder %s16, 4
    %p34 = por %p32, %p33
    %p35 = scmp.ne.s32.totalorder %s24, %s25
    %p36 = scmp.eq.s32.totalorder %s16, 0
    %p37 = por %p35, %p36
    %p38 = scmp.ne.s32.totalorder %s24, %s25
    %p39 = scmp.eq.s32.totalorder %s17, 4
    %p40 = por %p38, %p39
    %p42 = scmp.ne.s32.totalorder %s25, %s41
    %p43 = scmp.eq.s32.totalorder %s17, 0
    %p44 = por %p42, %p43
    %s46 = sadd.s32 %s45, 1
    %p49 = scmp.eq.s32.totalorder %s11, 4
    %p50 = scmp.ne.s32.totalorder %s45, %s47
    %p51 = scmp.eq.s32.totalorder %s11, 0
    %p52 = por %p50, %p51
    %p53 = scmp.ne.s32.totalorder %s45, %s47
    %p54 = scmp.eq.s32.totalorder %s16, 4
    %p55 = por %p53, %p54
    %p56 = scmp.ne.s32.totalorder %s47, %s48
    %p57 = scmp.eq.s32.totalorder %s16, 0
    %p58 = por %p56, %p57
    %p59 = scmp.ne.s32.totalorder %s47, %s48
    %p60 = scmp.eq.s32.totalorder %s17, 4
    %p61 = por %p59, %p60
    %p63 = scmp.ne.s32.totalorder %s48, %s62
    %p64 = scmp.eq.s32.totalorder %s17, 0
    %p65 = por %p63, %p64
    %s67 = sadd.s32 %s66, 1
    %p70 = scmp.eq.s32.totalorder %s11, 4
    %p71 = scmp.ne.s32.totalorder %s66, %s68
    %p72 = scmp.eq.s32.totalorder %s11, 0
    %p73 = por %p71, %p72
    %p74 = scmp.ne.s32.totalorder %s66, %s68
    %p75 = scmp.eq.s32.totalorder %s16, 4
    %p76 = por %p74, %p75
    %p77 = scmp.ne.s32.totalorder %s68, %s69
    %p78 = scmp.eq.s32.totalorder %s16, 0
    %p79 = por %p77, %p78
    %p80 = scmp.ne.s32.totalorder %s68, %s69
    %p81 = scmp.eq.s32.totalorder %s17, 4
    %p82 = por %p80, %p81
    %p84 = scmp.ne.s32.totalorder %s69, %s83
    %p85 = scmp.eq.s32.totalorder %s17, 0
    %p86 = por %p84, %p85
    %s88 = sadd.s32 %s87, 1
    %p91 = scmp.eq.s32.totalorder %s11, 4
    %p92 = scmp.ne.s32.totalorder %s87, %s89
    %p93 = scmp.eq.s32.totalorder %s11, 0
    %p94 = por %p92, %p93
    %p95 = scmp.ne.s32.totalorder %s87, %s89
    %p96 = scmp.eq.s32.totalorder %s16, 4
    %p97 = por %p95, %p96
    %p98 = scmp.ne.s32.totalorder %s89, %s90
    %p99 = scmp.eq.s32.totalorder %s16, 0
    %p100 = por %p98, %p99
    %p101 = scmp.ne.s32.totalorder %s89, %s90
    %p102 = scmp.eq.s32.totalorder %s17, 4
    %p103 = por %p101, %p102
    %p105 = scmp.ne.s32.totalorder %s90, %s104
    %p106 = scmp.eq.s32.totalorder %s17, 0
    %p107 = por %p105, %p106
    %s109 = sadd.s32 %s108, 1
    %p112 = scmp.eq.s32.totalorder %s11, 4
    %p113 = scmp.ne.s32.totalorder %s108, %s110
    %p114 = scmp.eq.s32.totalorder %s11, 0
    %p115 = por %p113, %p114
    %p116 = scmp.ne.s32.totalorder %s108, %s110
    %p117 = scmp.eq.s32.totalorder %s16, 4
    %p118 = por %p116, %p117
    %p119 = scmp.ne.s32.totalorder %s110, %s111
    %p120 = scmp.eq.s32.totalorder %s16, 0
    %p121 = por %p119, %p120
    %p122 = scmp.ne.s32.totalorder %s110, %s111
    %p123 = scmp.eq.s32.totalorder %s17, 4
    %p124 = por %p122, %p123
    %p126 = scmp.ne.s32.totalorder %s111, %s125
    %p127 = scmp.eq.s32.totalorder %s17, 0
    %p128 = por %p126, %p127
    %s129 = ssub.s32 %s11, %s18
    %p130 = scmp.eq.s32.totalorder %s129, 0
    %s132 = sadd.s32 %s131, 1
    %s133 = scalar_select %p130, %s131, %s132
    %p136 = pneg %p130
    %p137 = scmp.eq.s32.totalorder %s11, 4
    %p138 = por %p136, %p137
    %p139 = scmp.ne.s32.totalorder %s131, %s134
    %p140 = scmp.eq.s32.totalorder %s11, 0
    %p141 = por %p139, %p140
    %p142 = scmp.ne.s32.totalorder %s131, %s134
    %p143 = scmp.eq.s32.totalorder %s16, 4
    %p144 = por %p142, %p143
    %p145 = scmp.ne.s32.totalorder %s134, %s135
    %p146 = scmp.eq.s32.totalorder %s16, 0
    %p147 = por %p145, %p146
    %p148 = scmp.ne.s32.totalorder %s134, %s135
    %p149 = scmp.eq.s32.totalorder %s17, 4
    %p150 = por %p148, %p149
    %p152 = scmp.ne.s32.totalorder %s135, %s151
    %p153 = scmp.eq.s32.totalorder %s17, 0
    %p154 = por %p152, %p153
    %p155 = scmp.le.s32.totalorder 1, %s11
    %p156 = scmp.lt.s32.totalorder %s11, 6
    %p157 = pnand %p155, %p156
    %p158 = pneg %p157
    // Predicated region
    $region9: #{_lambda_.4} parent=5 // pred_check
      _
    $region10: #{_lambda_.4} parent=5 // pred_check_branch
      %160 = sbr.rel (%p157) target = $region12
    $region11: #{_lambda_.4} parent=5 // pred_region
      %s161 = ssub.s32 %s11, 1
      // Predicated region
      $region13: #{_lambda_.4} parent=11 // pred_check
        %p162 = pneg %p58
      $region14: #{_lambda_.4} parent=11 // pred_check_branch
        %164 = sbr.rel (%p162) target = $region16
      $region15: #{_lambda_.4} parent=11 // pred_region
        _
      $region16: #{_lambda_.4} parent=11 // pred_fallthru
        _
      // Predicated region
      $region17: #{_lambda_.4} parent=11 // pred_check
        %p165 = pneg %p79
      $region18: #{_lambda_.4} parent=11 // pred_check_branch
        %167 = sbr.rel (%p165) target = $region20
      $region19: #{_lambda_.4} parent=11 // pred_region
        _
      $region20: #{_lambda_.4} parent=11 // pred_fallthru
        _
      // Predicated region
      $region21: #{_lambda_.4} parent=11 // pred_check
        %p168 = pneg %p100
      $region22: #{_lambda_.4} parent=11 // pred_check_branch
        %170 = sbr.rel (%p168) target = $region24
      $region23: #{_lambda_.4} parent=11 // pred_region
        _
      $region24: #{_lambda_.4} parent=11 // pred_fallthru
        _
      // Predicated region
      $region25: #{_lambda_.4} parent=11 // pred_check
        %p171 = pneg %p121
      $region26: #{_lambda_.4} parent=11 // pred_check_branch
        %173 = sbr.rel (%p171) target = $region28
      $region27: #{_lambda_.4} parent=11 // pred_region
        _
      $region28: #{_lambda_.4} parent=11 // pred_fallthru
        _
    $region12: #{_lambda_.4} parent=5 // pred_fallthru
      _
    %p174 = scmp.lt.s32.totalorder %s11, 5
    // Predicated region
    $region29: #{_lambda_.4} parent=5 // pred_check
      %p175 = pneg %p174
    $region30: #{_lambda_.4} parent=5 // pred_check_branch
      %177 = sbr.rel (%p175) target = $region32
    $region31: #{_lambda_.4} parent=5 // pred_region
      // Predicated region
      $region33: #{_lambda_.4} parent=31 // pred_check
        %p178 = pneg %p31
      $region34: #{_lambda_.4} parent=31 // pred_check_branch
        %180 = sbr.rel (%p178) target = $region36
      $region35: #{_lambda_.4} parent=31 // pred_region
        %p181 = scmp.lt.s32.totalorder %s11, 4
        %s182 = scalar_select %p181, %s11, 4
        %s183 = smul.addr %s182, 2
        %s184 = smul.addr %s183, 8
        %s185 = scalar_lea.vmem %s0, %s184
      $region36: #{_lambda_.4} parent=31 // pred_fallthru
        _
    $region32: #{_lambda_.4} parent=5 // pred_fallthru
      _
    %p186 = scmp.le.s32.totalorder 1, %s11
    %p187 = scmp.lt.s32.totalorder %s11, 6
    %p188 = pnand %p186, %p187
    %p189 = pneg %p188
    // Predicated region
    $region37: #{_lambda_.4} parent=5 // pred_check
      _
    $region38: #{_lambda_.4} parent=5 // pred_check_branch
      %191 = sbr.rel (%p188) target = $region40
    $region39: #{_lambda_.4} parent=5 // pred_region
      %s192 = ssub.s32 %s11, 1
      %p193 = scmp.lt.s32.totalorder %s16, 4
      %s194 = scalar_select %p193, %s16, 4
      %s195 = smul.addr %s194, 2
      %s196 = smul.addr %s195, 8
      %s197 = scalar_lea.vmem %s0, %s196
      %p198 = pneg %p37
      %p199 = pneg %p34
      %p200 = pneg %p58
      %p201 = pneg %p55
      %p202 = pneg %p79
      %p203 = pneg %p76
      %p204 = pneg %p100
      %p205 = pneg %p97
      %p206 = pneg %p121
      %p207 = pneg %p118
      %p208 = pneg %p147
      %p209 = pneg %p144
      %p210 = scmp.lt.s32.totalorder %s16, 4
      %s211 = scalar_select %p210, %s16, 4
      %s212 = smul.addr %s211, 2
      %s213 = smul.addr %s212, 8
      %s214 = scalar_lea.vmem %s5, %s213
      %p215 = scmp.lt.s32.totalorder %s16, 4
      %s216 = scalar_select %p215, %s16, 4
      %s217 = smul.addr %s216, 2
      %s218 = smul.addr %s217, 8
      %s219 = scalar_lea.vmem %s0, %s218
      %p220 = scmp.lt.s32.totalorder %s16, 4
      %s221 = scalar_select %p220, %s16, 4
      %s222 = smul.addr %s221, 2
      %s223 = smul.addr %s222, 8
      %s224 = scalar_lea.vmem %s5, %s223
      %v225 = vld [vmem:[%s219] sm:$0xff]
      %v226 = vld [vmem:[%s219 + $0x8] sm:$0xff]
      %v227 = vld [vmem:[%s1] sm:$0xff]
      %v228 = vld [vmem:[%s1 + $0x8] sm:$0xff]
      %v229 = vadd.f32 %v225, %v227
      %v230 = vadd.f32 %v226, %v228
      %v231 = vld [vmem:[%s2] sm:$0x1]
      %v233 = vperm.slane %v231, 0
      %v235 = vadd.f32 %v229, %v233
      %v236 = vadd.f32 %v230, %v233
      %v237 = vld [vmem:[%s3] sm:$0x1]
      %v238 = vld [vmem:[%s4] sm:$0x1]
      %239 = vadd.xlane.f32.xlu0 %v235
      %v240 = vpop.xlane.xlu0 %239
      %241 = vadd.xlane.f32.xlu0 %v236
      %v242 = vpop.xlane.xlu0 %241
      %v243 = vmul.f32 %v240, 0.015625
      %v244 = vmul.f32 %v242, 0.015625
      %v245 = vmul.f32 %v235, %v235
      %v246 = vmul.f32 %v236, %v236
      %247 = vadd.xlane.f32.xlu0 %v245
      %v248 = vpop.xlane.xlu0 %247
      %249 = vadd.xlane.f32.xlu0 %v246
      %v250 = vpop.xlane.xlu0 %249
      %v251 = vmul.f32 %v248, 0.015625
      %v252 = vmul.f32 %v250, 0.015625
      %v253 = vmul.f32 %v243, %v243
      %v254 = vmul.f32 %v244, %v244
      %v255 = vsub.f32 %v251, %v253
      %v256 = vsub.f32 %v252, %v254
      %v257 = vmax.f32 %v255, 0.0
      %v258 = vmax.f32 %v256, 0.0
      %v259 = vadd.f32 %v257, 1e-12
      %v260 = vadd.f32 %v258, 1e-12
      %v261 = vrsqrt.pop %v259
      %v262 = vmul.f32 %v261, %v259
      %v263 = vmul.f32 %v262, %v261
      %v264 = vmul.f32 0.5, %v263
      %v265 = vsub.f32 1.5, %v264
      %v266 = vmul.f32 %v261, %v265
      %vm267 = vweird.f32 %v259
      %vm268 = vweird.f32 %v261
      %vm269 = vmor %vm267, %vm268
      %v270 = vsel %vm269, %v261, %v266
      %v271 = vrsqrt.pop %v260
      %v272 = vmul.f32 %v271, %v260
      %v273 = vmul.f32 %v272, %v271
      %v274 = vmul.f32 0.5, %v273
      %v275 = vsub.f32 1.5, %v274
      %v276 = vmul.f32 %v271, %v275
      %vm277 = vweird.f32 %v260
      %vm278 = vweird.f32 %v271
      %vm279 = vmor %vm277, %vm278
      %v280 = vsel %vm279, %v271, %v276
      %v281 = vsub.f32 %v235, %v243
      %v282 = vsub.f32 %v236, %v244
      %v283 = vmul.f32 %v281, %v270
      %v284 = vmul.f32 %v282, %v280
      %v286 = vperm.slane %v237, 0
      %v288 = vmul.f32 %v283, %v286
      %v289 = vmul.f32 %v284, %v286
      %v291 = vperm.slane %v238, 0
      %v293 = vadd.f32 %v288, %v291
      %v294 = vadd.f32 %v289, %v291
      %295 = vst [vmem:[%s224] sm:$0xff] %v293
      %296 = vst [vmem:[%s224 + $0x8] sm:$0xff] %v294
      %p297 = scmp.lt.s32.totalorder %s16, 4
      %s298 = scalar_select %p297, %s16, 4
      %s299 = smul.addr %s298, 2
      %s300 = smul.addr %s299, 8
      %s301 = scalar_lea.vmem %s5, %s300
      // Predicated region
      $region41: #{_lambda_.4} parent=39 // pred_check
        %p302 = pneg %p144
      $region42: #{_lambda_.4} parent=39 // pred_check_branch
        %304 = sbr.rel (%p302) target = $region44
      $region43: #{_lambda_.4} parent=39 // pred_region
        _
      $region44: #{_lambda_.4} parent=39 // pred_fallthru
        _
    $region40: #{_lambda_.4} parent=5 // pred_fallthru
      _
    %p305 = scmp.le.s32.totalorder 2, %s11
    // Predicated region
    $region45: #{_lambda_.4} parent=5 // pred_check
      %p306 = pneg %p305
    $region46: #{_lambda_.4} parent=5 // pred_check_branch
      %308 = sbr.rel (%p306) target = $region48
    $region47: #{_lambda_.4} parent=5 // pred_region
      %s309 = ssub.s32 %s11, 2
      // Predicated region
      $region49: #{_lambda_.4} parent=47 // pred_check
        %p310 = pneg %p150
      $region50: #{_lambda_.4} parent=47 // pred_check_branch
        %312 = sbr.rel (%p310) target = $region52
      $region51: #{_lambda_.4} parent=47 // pred_region
        %p313 = scmp.lt.s32.totalorder %s17, 4
        %s314 = scalar_select %p313, %s17, 4
        %s315 = smul.addr %s314, 2
        %s316 = smul.addr %s315, 8
        %s317 = scalar_lea.vmem %s5, %s316
      $region52: #{_lambda_.4} parent=47 // pred_fallthru
        _
    $region48: #{_lambda_.4} parent=5 // pred_fallthru
      _
  $region6: #{_lambda_.4} parent=0 // loop_footer
    %s15 = sadd.s32 1, %s11
  $region7: #{_lambda_.4} parent=0 // loop_footer_branch
    %10 = sbr.rel target = $region3
  $region8: #{_lambda_.4} parent=0 // loop_exit
    _

// kernel: _lambda_.7
$region0: #{_lambda_.7}
  #allocation0 [shape = 'u32[]', space=smem, size = 0x4, offset = 0x4, fixed_abs, tag = 'smem constant byte address 0x4 - core index']
  #allocation1 [shape = 'u32[72,128]{1,0:T(1,128)}', space=vmem, size = 0x9000, scoped, tag = 'internal scratch']
  %s0 = inlined_call_operand.vmem [shape: f32[8,128], index: 0, kind: input, shape index: {}]
  %s1 = inlined_call_operand.vmem [shape: bf16[128,128], index: 1, kind: input, shape index: {}]
  %s2 = inlined_call_operand.vmem [shape: bf16[128,128], index: 2, kind: input, shape index: {}]
  %s3 = inlined_call_operand.hbm [shape: f32[8,128], index: 3, kind: output, shape index: {}]
  %s4 = sld [smem:[#allocation0]]
  $region22: #{_lambda_.7} parent=0
    _
  %s6 = ssub.s32 1, %s4
  %s7 = scalar_select 0, %s6, %s4
  $region1: #{_lambda_.7} parent=0
    #allocation2 [shape = 'u8[4096]{0}', space=vmem, size = 0x1000, scoped, tag = 'output window, operand 0, single buffered']
    #allocation3 [shape = 's32[1]{0}', space=sflag, size = 0x4, scoped, tag = 'scoped memory for _lambda_.7']
    %8 = vsyncpa [#allocation3], 0
    // Predicated region
    $region2: #{_lambda_.7} parent=1 // pred_check
      _
    $region3: #{_lambda_.7} parent=1 // pred_check_branch
      %10 = sbr.rel (0) target = $region5
    $region4: #{_lambda_.7} parent=1 // pred_region
      _
    $region5: #{_lambda_.7} parent=1 // pred_fallthru
      _
    // Predicated region
    $region6: #{_lambda_.7} parent=1 // pred_check
      _
    $region7: #{_lambda_.7} parent=1 // pred_check_branch
      %12 = sbr.rel (0) target = $region9
    $region8: #{_lambda_.7} parent=1 // pred_region
      _
    $region9: #{_lambda_.7} parent=1 // pred_fallthru
      _
    // Predicated region
    $region10: #{_lambda_.7} parent=1 // pred_check
      _
    $region11: #{_lambda_.7} parent=1 // pred_check_branch
      %14 = sbr.rel (0) target = $region13
    $region12: #{_lambda_.7} parent=1 // pred_region
      _
    $region13: #{_lambda_.7} parent=1 // pred_fallthru
      _
    %v15 = vld [vmem:[%s0] sm:$0xff]
    %v16 = vpack.c.bf16 %v15, %v15
    %v17 = vld [vmem:[%s1] sm:$0xf]
    %v18 = vld [vmem:[%s1 + $0x4] sm:$0xf]
    %v19 = vld [vmem:[%s1 + $0x8] sm:$0xf]
    %v20 = vld [vmem:[%s1 + $0xc] sm:$0xf]
    %v21 = vld [vmem:[%s1 + $0x10] sm:$0xf]
    %v22 = vld [vmem:[%s1 + $0x14] sm:$0xf]
    %v23 = vld [vmem:[%s1 + $0x18] sm:$0xf]
    %v24 = vld [vmem:[%s1 + $0x1c] sm:$0xf]
    %v25 = vld [vmem:[%s1 + $0x20] sm:$0xf]
    %v26 = vld [vmem:[%s1 + $0x24] sm:$0xf]
    %v27 = vld [vmem:[%s1 + $0x28] sm:$0xf]
    %v28 = vld [vmem:[%s1 + $0x2c] sm:$0xf]
    %v29 = vld [vmem:[%s1 + $0x30] sm:$0xf]
    %v30 = vld [vmem:[%s1 + $0x34] sm:$0xf]
    %v31 = vld [vmem:[%s1 + $0x38] sm:$0xf]
    %v32 = vld [vmem:[%s1 + $0x3c] sm:$0xf]
    %v49 = vunpack.c.l.b16 %v17
    %v50 = vunpack.c.l.b16 %v18
    %v51 = vunpack.c.l.b16 %v19
    %v52 = vunpack.c.l.b16 %v20
    %v53 = vunpack.c.l.b16 %v21
    %v54 = vunpack.c.l.b16 %v22
    %v55 = vunpack.c.l.b16 %v23
    %v56 = vunpack.c.l.b16 %v24
    %v57 = vunpack.c.l.b16 %v25
    %v58 = vunpack.c.l.b16 %v26
    %v59 = vunpack.c.l.b16 %v27
    %v60 = vunpack.c.l.b16 %v28
    %v61 = vunpack.c.l.b16 %v29
    %v62 = vunpack.c.l.b16 %v30
    %v63 = vunpack.c.l.b16 %v31
    %v64 = vunpack.c.l.b16 %v32
    %v65 = vpack.c.b16 %v50, %v49
    %v66 = vpack.c.b16 %v52, %v51
    %v67 = vpack.c.b16 %v54, %v53
    %v68 = vpack.c.b16 %v56, %v55
    %v69 = vpack.c.b16 %v58, %v57
    %v70 = vpack.c.b16 %v60, %v59
    %v71 = vpack.c.b16 %v62, %v61
    %v72 = vpack.c.b16 %v64, %v63
    %81 = vmatpush.bf16.msra.mxu0 %v72
    %82 = vmatpush.bf16.msra.mxu0 %v71
    %83 = vmatpush.bf16.msra.mxu0 %v70
    %84 = vmatpush.bf16.msra.mxu0 %v69
    %85 = vmatpush.bf16.msra.mxu0 %v68
    %86 = vmatpush.bf16.msra.mxu0 %v67
    %87 = vmatpush.bf16.msra.mxu0 %v66
    %88 = vmatpush.bf16.msra.mxu0 %v65
    %89 = vmatmul.bf16.gmra.mxu0 %v16
    %v90 = vpop.f32.mrf.mxu0
    %v91 = vadd.f32 0.0, %v90
    %v92 = vpop.f32.mrf.mxu0
    %93 = vdwg.mxu0
    %v94 = vmul.f32 %v91, %v91
    %v95 = vmul.f32 %v91, %v94
    %v96 = vmul.f32 %v95, 0.044715
    %v97 = vadd.f32 %v91, %v96
    %v98 = vmul.f32 %v97, 0.7978846
    %v99 = vtanh.pop %v98
    %v100 = vadd.f32 %v99, 1.0
    %v101 = vmul.f32 %v100, 0.5
    %v102 = vmul.f32 %v91, %v101
    %v103 = vpack.c.bf16 %v102, %v102
    %v104 = vld [vmem:[%s2] sm:$0xf]
    %v105 = vld [vmem:[%s2 + $0x4] sm:$0xf]
    %v106 = vld [vmem:[%s2 + $0x8] sm:$0xf]
    %v107 = vld [vmem:[%s2 + $0xc] sm:$0xf]
    %v108 = vld [vmem:[%s2 + $0x10] sm:$0xf]
    %v109 = vld [vmem:[%s2 + $0x14] sm:$0xf]
    %v110 = vld [vmem:[%s2 + $0x18] sm:$0xf]
    %v111 = vld [vmem:[%s2 + $0x1c] sm:$0xf]
    %v112 = vld [vmem:[%s2 + $0x20] sm:$0xf]
    %v113 = vld [vmem:[%s2 + $0x24] sm:$0xf]
    %v114 = vld [vmem:[%s2 + $0x28] sm:$0xf]
    %v115 = vld [vmem:[%s2 + $0x2c] sm:$0xf]
    %v116 = vld [vmem:[%s2 + $0x30] sm:$0xf]
    %v117 = vld [vmem:[%s2 + $0x34] sm:$0xf]
    %v118 = vld [vmem:[%s2 + $0x38] sm:$0xf]
    %v119 = vld [vmem:[%s2 + $0x3c] sm:$0xf]
    %v136 = vunpack.c.l.b16 %v104
    %v137 = vunpack.c.l.b16 %v105
    %v138 = vunpack.c.l.b16 %v106
    %v139 = vunpack.c.l.b16 %v107
    %v140 = vunpack.c.l.b16 %v108
    %v141 = vunpack.c.l.b16 %v109
    %v142 = vunpack.c.l.b16 %v110
    %v143 = vunpack.c.l.b16 %v111
    %v144 = vunpack.c.l.b16 %v112
    %v145 = vunpack.c.l.b16 %v113
    %v146 = vunpack.c.l.b16 %v114
    %v147 = vunpack.c.l.b16 %v115
    %v148 = vunpack.c.l.b16 %v116
    %v149 = vunpack.c.l.b16 %v117
    %v150 = vunpack.c.l.b16 %v118
    %v151 = vunpack.c.l.b16 %v119
    %v152 = vpack.c.b16 %v137, %v136
    %v153 = vpack.c.b16 %v139, %v138
    %v154 = vpack.c.b16 %v141, %v140
    %v155 = vpack.c.b16 %v143, %v142
    %v156 = vpack.c.b16 %v145, %v144
    %v157 = vpack.c.b16 %v147, %v146
    %v158 = vpack.c.b16 %v149, %v148
    %v159 = vpack.c.b16 %v151, %v150
    %168 = vmatpush.bf16.msra.mxu0 %v159
    %169 = vmatpush.bf16.msra.mxu0 %v158
    %170 = vmatpush.bf16.msra.mxu0 %v157
    %171 = vmatpush.bf16.msra.mxu0 %v156
    %172 = vmatpush.bf16.msra.mxu0 %v155
    %173 = vmatpush.bf16.msra.mxu0 %v154
    %174 = vmatpush.bf16.msra.mxu0 %v153
    %175 = vmatpush.bf16.msra.mxu0 %v152
    %176 = vmatmul.bf16.gmra.mxu0 %v103
    %v177 = vpop.f32.mrf.mxu0
    %v178 = vadd.f32 0.0, %v177
    %v179 = vpop.f32.mrf.mxu0
    %180 = vdwg.mxu0
    %181 = vst [vmem:[#allocation2] sm:$0xff] %v178
    // Predicated region
    $region14: #{_lambda_.7} parent=1 // pred_check
      _
    $region15: #{_lambda_.7} parent=1 // pred_check_branch
      %183 = sbr.rel (0) target = $region17
    $region16: #{_lambda_.7} parent=1 // pred_region
      %185 = vsyncadd [#allocation3], 0
      %s187 = sshll.u32 [#allocation2], 4
      %s188 = int_to_ptr.vmem [resolvable:$true] %s187
      %s189 = sshll.u32 %s3, 4
      %s190 = int_to_ptr.hbm [resolvable:$true] %s189
      %192 = dma.vmem_to_hbm [thread:$0]  %s188, 128, %s190, [#allocation3]
    $region17: #{_lambda_.7} parent=1 // pred_fallthru
      _
    // Predicated region
    $region18: #{_lambda_.7} parent=1 // pred_check
      _
    $region19: #{_lambda_.7} parent=1 // pred_check_branch
      %194 = sbr.rel (0) target = $region21
    $region20: #{_lambda_.7} parent=1 // pred_region
      %196 = dma.done [#allocation3], 128
    $region21: #{_lambda_.7} parent=1 // pred_fallthru
      _
    %197 = vsyncpa [#allocation3], 1

// kernel: _lambda_.5
$region0: #{_lambda_.5}
  #allocation0 [shape = 'u32[]', space=smem, size = 0x4, offset = 0x4, fixed_abs, tag = 'smem constant byte address 0x4 - core index']
  #allocation1 [shape = 'u32[72,128]{1,0:T(1,128)}', space=vmem, size = 0x9000, scoped, tag = 'internal scratch']
  %s0 = inlined_call_operand.vmem [shape: f32[5,16,128], index: 0, kind: input, shape index: {}]
  %s1 = inlined_call_operand.vmem [shape: f32[5,1,16], index: 1, kind: input, shape index: {}]
  %s2 = inlined_call_operand.vmem [shape: bf16[128,384], index: 2, kind: input, shape index: {}]
  %s3 = inlined_call_operand.vmem [shape: f32[1,384], index: 3, kind: input, shape index: {}]
  %s4 = inlined_call_operand.hbm [shape: bf16[64,128], index: 4, kind: input, shape index: {}]
  %s5 = inlined_call_operand.vmem [shape: f32[1,128], index: 5, kind: input, shape index: {}, may-alias: {5,7,11,13}]
  %s6 = inlined_call_operand.vmem [shape: f32[1,128], index: 6, kind: input, shape index: {}, may-alias: {6,12}]
  %s7 = inlined_call_operand.vmem [shape: f32[1,128], index: 7, kind: input, shape index: {}, may-alias: {5,7,11,13}]
  %s8 = inlined_call_operand.hbm [shape: bf16[128,256], index: 8, kind: input, shape index: {}]
  %s9 = inlined_call_operand.vmem [shape: f32[1,256], index: 9, kind: input, shape index: {}]
  %s10 = inlined_call_operand.vmem [shape: bf16[256,128], index: 10, kind: input, shape index: {}]
  %s11 = inlined_call_operand.vmem [shape: f32[1,128], index: 11, kind: input, shape index: {}, may-alias: {5,7,11,13}]
  %s12 = inlined_call_operand.vmem [shape: f32[1,128], index: 12, kind: input, shape index: {}, may-alias: {6,12}]
  %s13 = inlined_call_operand.vmem [shape: f32[1,128], index: 13, kind: input, shape index: {}, may-alias: {5,7,11,13}]
  %s14 = inlined_call_operand.vmem [shape: f32[5,16,128], index: 14, kind: output, shape index: {}]
  %s15 = sld [smem:[#allocation0]]
  $region97: #{_lambda_.5} parent=0
    _
  %s17 = ssub.s32 1, %s15
  %s18 = scalar_select 0, %s17, %s15
  $region1: #{_lambda_.5} parent=0
    #allocation2 [shape = 'u8[16384]{0}', space=vmem, size = 0x4000, scoped, tag = 'input window, operand 4, single buffered']
    #allocation3 [shape = 's32[2]{0}', space=sflag, size = 0x8, scoped, tag = 'scoped memory for _lambda_.5']
    #allocation4 [shape = 'u8[65536]{0}', space=vmem, size = 0x10000, scoped, tag = 'input window, operand 8, single buffered']
    #allocation5 [shape = 's32[1]{0}', space=sflag, size = 0x4, scoped, tag = 'scoped memory for _lambda_.5']
    %19 = vsyncpa [#allocation3], 0
    %20 = vsyncpa [#allocation5], 0
    loop: start=0, step=1, limit=7
    $region2: #{_lambda_.5} parent=1 // loop_pre_header
      _
    $region3: #{_lambda_.5} parent=1 // loop_header
      %s22 = sphi 0, %s26
      %p23 = scmp.ge.s32.totalorder %s22, 7
      %s32 = sphi 0, %s34
      %s35 = sphi 0, %s32
      %s36 = sphi 0, %s35
      %s52 = sphi 0, %s36
      %s58 = sphi 0, %s60
      %s61 = sphi 0, %s58
      %s62 = sphi 0, %s61
      %s78 = sphi 0, %s62
      %s82 = sphi 0, %s82
      %s84 = sphi 0, %s82
      %s85 = sphi 0, %s84
      %s99 = sphi 0, %s85
      %s103 = sphi 0, %s103
      %s105 = sphi 0, %s103
      %s106 = sphi 0, %s105
      %s120 = sphi 0, %s106
      %s124 = sphi 0, %s124
      %s126 = sphi 0, %s124
      %s127 = sphi 0, %s126
      %s141 = sphi 0, %s127
      %s145 = sphi 0, %s145
      %s147 = sphi 0, %s145
      %s148 = sphi 0, %s147
      %s162 = sphi 0, %s148
      %s166 = sphi 0, %s166
      %s168 = sphi 0, %s166
      %s169 = sphi 0, %s168
      %s183 = sphi 0, %s169
      %s187 = sphi 0, %s187
      %s189 = sphi 0, %s187
      %s190 = sphi 0, %s189
      %s204 = sphi 0, %s190
      %s208 = sphi 0, %s208
      %s210 = sphi 0, %s208
      %s211 = sphi 0, %s210
      %s225 = sphi 0, %s211
      %s229 = sphi 0, %s229
      %s231 = sphi 0, %s229
      %s232 = sphi 0, %s231
      %s246 = sphi 0, %s232
      %s250 = sphi 0, %s250
      %s252 = sphi 0, %s250
      %s253 = sphi 0, %s252
      %s267 = sphi 0, %s253
      %s271 = sphi 0, %s271
      %s273 = sphi 0, %s271
      %s274 = sphi 0, %s273
      %s288 = sphi 0, %s274
      %s292 = sphi 0, %s292
      %s294 = sphi 0, %s292
      %s295 = sphi 0, %s294
      %s309 = sphi 0, %s295
      %s313 = sphi 0, %s313
      %s315 = sphi 0, %s313
      %s316 = sphi 0, %s315
      %s330 = sphi 0, %s316
      %s336 = sphi 0, %s338
      %s339 = sphi 0, %s336
      %s340 = sphi 0, %s339
      %s356 = sphi 0, %s340
    $region4: #{_lambda_.5} parent=1 // loop_header_branch
      %25 = sbr.rel (%p23) target = $region8
    $region5: #{_lambda_.5} parent=1 // loop_body
      %s27 = ssub.s32 %s22, 1
      %s28 = ssub.s32 %s22, 2
      %s29 = sadd.s32 %s22, 1
      %s30 = ssub.s32 %s22, %s29
      %p31 = scmp.eq.s32.totalorder %s30, 0
      %s33 = sadd.s32 %s32, 1
      %s34 = scalar_select %p31, %s32, %s33
      %p37 = pneg %p31
      %p38 = scmp.eq.s32.totalorder %s22, 4
      %p39 = por %p37, %p38
      %p40 = scmp.ne.s32.totalorder %s32, %s35
      %p41 = scmp.eq.s32.totalorder %s22, 0
      %p42 = por %p40, %p41
      %p43 = scmp.ne.s32.totalorder %s32, %s35
      %p44 = scmp.eq.s32.totalorder %s27, 4
      %p45 = por %p43, %p44
      %p46 = scmp.ne.s32.totalorder %s35, %s36
      %p47 = scmp.eq.s32.totalorder %s27, 0
      %p48 = por %p46, %p47
      %p49 = scmp.ne.s32.totalorder %s35, %s36
      %p50 = scmp.eq.s32.totalorder %s28, 4
      %p51 = por %p49, %p50
      %p53 = scmp.ne.s32.totalorder %s36, %s52
      %p54 = scmp.eq.s32.totalorder %s28, 0
      %p55 = por %p53, %p54
      %s56 = ssub.s32 %s22, %s29
      %p57 = scmp.eq.s32.totalorder %s56, 0
      %s59 = sadd.s32 %s58, 1
      %s60 = scalar_select %p57, %s58, %s59
      %p63 = pneg %p57
      %p64 = scmp.eq.s32.totalorder %s22, 4
      %p65 = por %p63, %p64
      %p66 = scmp.ne.s32.totalorder %s58, %s61
      %p67 = scmp.eq.s32.totalorder %s22, 0
      %p68 = por %p66, %p67
      %p69 = scmp.ne.s32.totalorder %s58, %s61
      %p70 = scmp.eq.s32.totalorder %s27, 4
      %p71 = por %p69, %p70
      %p72 = scmp.ne.s32.totalorder %s61, %s62
      %p73 = scmp.eq.s32.totalorder %s27, 0
      %p74 = por %p72, %p73
      %p75 = scmp.ne.s32.totalorder %s61, %s62
      %p76 = scmp.eq.s32.totalorder %s28, 4
      %p77 = por %p75, %p76
      %p79 = scmp.ne.s32.totalorder %s62, %s78
      %p80 = scmp.eq.s32.totalorder %s28, 0
      %p81 = por %p79, %p80
      %s83 = sadd.s32 %s82, 1
      %p86 = scmp.eq.s32.totalorder %s22, 4
      %p87 = scmp.ne.s32.totalorder %s82, %s84
      %p88 = scmp.eq.s32.totalorder %s22, 0
      %p89 = por %p87, %p88
      %p90 = scmp.ne.s32.totalorder %s82, %s84
      %p91 = scmp.eq.s32.totalorder %s27, 4
      %p92 = por %p90, %p91
      %p93 = scmp.ne.s32.totalorder %s84, %s85
      %p94 = scmp.eq.s32.totalorder %s27, 0
      %p95 = por %p93, %p94
      %p96 = scmp.ne.s32.totalorder %s84, %s85
      %p97 = scmp.eq.s32.totalorder %s28, 4
      %p98 = por %p96, %p97
      %p100 = scmp.ne.s32.totalorder %s85, %s99
      %p101 = scmp.eq.s32.totalorder %s28, 0
      %p102 = por %p100, %p101
      %s104 = sadd.s32 %s103, 1
      %p107 = scmp.eq.s32.totalorder %s22, 4
      %p108 = scmp.ne.s32.totalorder %s103, %s105
      %p109 = scmp.eq.s32.totalorder %s22, 0
      %p110 = por %p108, %p109
      %p111 = scmp.ne.s32.totalorder %s103, %s105
      %p112 = scmp.eq.s32.totalorder %s27, 4
      %p113 = por %p111, %p112
      %p114 = scmp.ne.s32.totalorder %s105, %s106
      %p115 = scmp.eq.s32.totalorder %s27, 0
      %p116 = por %p114, %p115
      %p117 = scmp.ne.s32.totalorder %s105, %s106
      %p118 = scmp.eq.s32.totalorder %s28, 4
      %p119 = por %p117, %p118
      %p121 = scmp.ne.s32.totalorder %s106, %s120
      %p122 = scmp.eq.s32.totalorder %s28, 0
      %p123 = por %p121, %p122
      %s125 = sadd.s32 %s124, 1
      %p128 = scmp.eq.s32.totalorder %s22, 4
      %p129 = scmp.ne.s32.totalorder %s124, %s126
      %p130 = scmp.eq.s32.totalorder %s22, 0
      %p131 = por %p129, %p130
      %p132 = scmp.ne.s32.totalorder %s124, %s126
      %p133 = scmp.eq.s32.totalorder %s27, 4
      %p134 = por %p132, %p133
      %p135 = scmp.ne.s32.totalorder %s126, %s127
      %p136 = scmp.eq.s32.totalorder %s27, 0
      %p137 = por %p135, %p136
      %p138 = scmp.ne.s32.totalorder %s126, %s127
      %p139 = scmp.eq.s32.totalorder %s28, 4
      %p140 = por %p138, %p139
      %p142 = scmp.ne.s32.totalorder %s127, %s141
      %p143 = scmp.eq.s32.totalorder %s28, 0
      %p144 = por %p142, %p143
      %s146 = sadd.s32 %s145, 1
      %p149 = scmp.eq.s32.totalorder %s22, 4
      %p150 = scmp.ne.s32.totalorder %s145, %s147
      %p151 = scmp.eq.s32.totalorder %s22, 0
      %p152 = por %p150, %p151
      %p153 = scmp.ne.s32.totalorder %s145, %s147
      %p154 = scmp.eq.s32.totalorder %s27, 4
      %p155 = por %p153, %p154
      %p156 = scmp.ne.s32.totalorder %s147, %s148
      %p157 = scmp.eq.s32.totalorder %s27, 0
      %p158 = por %p156, %p157
      %p159 = scmp.ne.s32.totalorder %s147, %s148
      %p160 = scmp.eq.s32.totalorder %s28, 4
      %p161 = por %p159, %p160
      %p163 = scmp.ne.s32.totalorder %s148, %s162
      %p164 = scmp.eq.s32.totalorder %s28, 0
      %p165 = por %p163, %p164
      %s167 = sadd.s32 %s166, 1
      %p170 = scmp.eq.s32.totalorder %s22, 4
      %p171 = scmp.ne.s32.totalorder %s166, %s168
      %p172 = scmp.eq.s32.totalorder %s22, 0
      %p173 = por %p171, %p172
      %p174 = scmp.ne.s32.totalorder %s166, %s168
      %p175 = scmp.eq.s32.totalorder %s27, 4
      %p176 = por %p174, %p175
      %p177 = scmp.ne.s32.totalorder %s168, %s169
      %p178 = scmp.eq.s32.totalorder %s27, 0
      %p179 = por %p177, %p178
      %p180 = scmp.ne.s32.totalorder %s168, %s169
      %p181 = scmp.eq.s32.totalorder %s28, 4
      %p182 = por %p180, %p181
      %p184 = scmp.ne.s32.totalorder %s169, %s183
      %p185 = scmp.eq.s32.totalorder %s28, 0
      %p186 = por %p184, %p185
      %s188 = sadd.s32 %s187, 1
      %p191 = scmp.eq.s32.totalorder %s22, 4
      %p192 = scmp.ne.s32.totalorder %s187, %s189
      %p193 = scmp.eq.s32.totalorder %s22, 0
      %p194 = por %p192, %p193
      %p195 = scmp.ne.s32.totalorder %s187, %s189
      %p196 = scmp.eq.s32.totalorder %s27, 4
      %p197 = por %p195, %p196
      %p198 = scmp.ne.s32.totalorder %s189, %s190
      %p199 = scmp.eq.s32.totalorder %s27, 0
      %p200 = por %p198, %p199
      %p201 = scmp.ne.s32.totalorder %s189, %s190
      %p202 = scmp.eq.s32.totalorder %s28, 4
      %p203 = por %p201, %p202
      %p205 = scmp.ne.s32.totalorder %s190, %s204
      %p206 = scmp.eq.s32.totalorder %s28, 0
      %p207 = por %p205, %p206
      %s209 = sadd.s32 %s208, 1
      %p212 = scmp.eq.s32.totalorder %s22, 4
      %p213 = scmp.ne.s32.totalorder %s208, %s210
      %p214 = scmp.eq.s32.totalorder %s22, 0
      %p215 = por %p213, %p214
      %p216 = scmp.ne.s32.totalorder %s208, %s210
      %p217 = scmp.eq.s32.totalorder %s27, 4
      %p218 = por %p216, %p217
      %p219 = scmp.ne.s32.totalorder %s210, %s211
      %p220 = scmp.eq.s32.totalorder %s27, 0
      %p221 = por %p219, %p220
      %p222 = scmp.ne.s32.totalorder %s210, %s211
      %p223 = scmp.eq.s32.totalorder %s28, 4
      %p224 = por %p222, %p223
      %p226 = scmp.ne.s32.totalorder %s211, %s225
      %p227 = scmp.eq.s32.totalorder %s28, 0
      %p228 = por %p226, %p227
      %s230 = sadd.s32 %s229, 1
      %p233 = scmp.eq.s32.totalorder %s22, 4
      %p234 = scmp.ne.s32.totalorder %s229, %s231
      %p235 = scmp.eq.s32.totalorder %s22, 0
      %p236 = por %p234, %p235
      %p237 = scmp.ne.s32.totalorder %s229, %s231
      %p238 = scmp.eq.s32.totalorder %s27, 4
      %p239 = por %p237, %p238
      %p240 = scmp.ne.s32.totalorder %s231, %s232
      %p241 = scmp.eq.s32.totalorder %s27, 0
      %p242 = por %p240, %p241
      %p243 = scmp.ne.s32.totalorder %s231, %s232
      %p244 = scmp.eq.s32.totalorder %s28, 4
      %p245 = por %p243, %p244
      %p247 = scmp.ne.s32.totalorder %s232, %s246
      %p248 = scmp.eq.s32.totalorder %s28, 0
      %p249 = por %p247, %p248
      %s251 = sadd.s32 %s250, 1
      %p254 = scmp.eq.s32.totalorder %s22, 4
      %p255 = scmp.ne.s32.totalorder %s250, %s252
      %p256 = scmp.eq.s32.totalorder %s22, 0
      %p257 = por %p255, %p256
      %p258 = scmp.ne.s32.totalorder %s250, %s252
      %p259 = scmp.eq.s32.totalorder %s27, 4
      %p260 = por %p258, %p259
      %p261 = scmp.ne.s32.totalorder %s252, %s253
      %p262 = scmp.eq.s32.totalorder %s27, 0
      %p263 = por %p261, %p262
      %p264 = scmp.ne.s32.totalorder %s252, %s253
      %p265 = scmp.eq.s32.totalorder %s28, 4
      %p266 = por %p264, %p265
      %p268 = scmp.ne.s32.totalorder %s253, %s267
      %p269 = scmp.eq.s32.totalorder %s28, 0
      %p270 = por %p268, %p269
      %s272 = sadd.s32 %s271, 1
      %p275 = scmp.eq.s32.totalorder %s22, 4
      %p276 = scmp.ne.s32.totalorder %s271, %s273
      %p277 = scmp.eq.s32.totalorder %s22, 0
      %p278 = por %p276, %p277
      %p279 = scmp.ne.s32.totalorder %s271, %s273
      %p280 = scmp.eq.s32.totalorder %s27, 4
      %p281 = por %p279, %p280
      %p282 = scmp.ne.s32.totalorder %s273, %s274
      %p283 = scmp.eq.s32.totalorder %s27, 0
      %p284 = por %p282, %p283
      %p285 = scmp.ne.s32.totalorder %s273, %s274
      %p286 = scmp.eq.s32.totalorder %s28, 4
      %p287 = por %p285, %p286
      %p289 = scmp.ne.s32.totalorder %s274, %s288
      %p290 = scmp.eq.s32.totalorder %s28, 0
      %p291 = por %p289, %p290
      %s293 = sadd.s32 %s292, 1
      %p296 = scmp.eq.s32.totalorder %s22, 4
      %p297 = scmp.ne.s32.totalorder %s292, %s294
      %p298 = scmp.eq.s32.totalorder %s22, 0
      %p299 = por %p297, %p298
      %p300 = scmp.ne.s32.totalorder %s292, %s294
      %p301 = scmp.eq.s32.totalorder %s27, 4
      %p302 = por %p300, %p301
      %p303 = scmp.ne.s32.totalorder %s294, %s295
      %p304 = scmp.eq.s32.totalorder %s27, 0
      %p305 = por %p303, %p304
      %p306 = scmp.ne.s32.totalorder %s294, %s295
      %p307 = scmp.eq.s32.totalorder %s28, 4
      %p308 = por %p306, %p307
      %p310 = scmp.ne.s32.totalorder %s295, %s309
      %p311 = scmp.eq.s32.totalorder %s28, 0
      %p312 = por %p310, %p311
      %s314 = sadd.s32 %s313, 1
      %p317 = scmp.eq.s32.totalorder %s22, 4
      %p318 = scmp.ne.s32.totalorder %s313, %s315
      %p319 = scmp.eq.s32.totalorder %s22, 0
      %p320 = por %p318, %p319
      %p321 = scmp.ne.s32.totalorder %s313, %s315
      %p322 = scmp.eq.s32.totalorder %s27, 4
      %p323 = por %p321, %p322
      %p324 = scmp.ne.s32.totalorder %s315, %s316
      %p325 = scmp.eq.s32.totalorder %s27, 0
      %p326 = por %p324, %p325
      %p327 = scmp.ne.s32.totalorder %s315, %s316
      %p328 = scmp.eq.s32.totalorder %s28, 4
      %p329 = por %p327, %p328
      %p331 = scmp.ne.s32.totalorder %s316, %s330
      %p332 = scmp.eq.s32.totalorder %s28, 0
      %p333 = por %p331, %p332
      %s334 = ssub.s32 %s22, %s29
      %p335 = scmp.eq.s32.totalorder %s334, 0
      %s337 = sadd.s32 %s336, 1
      %s338 = scalar_select %p335, %s336, %s337
      %p341 = pneg %p335
      %p342 = scmp.eq.s32.totalorder %s22, 4
      %p343 = por %p341, %p342
      %p344 = scmp.ne.s32.totalorder %s336, %s339
      %p345 = scmp.eq.s32.totalorder %s22, 0
      %p346 = por %p344, %p345
      %p347 = scmp.ne.s32.totalorder %s336, %s339
      %p348 = scmp.eq.s32.totalorder %s27, 4
      %p349 = por %p347, %p348
      %p350 = scmp.ne.s32.totalorder %s339, %s340
      %p351 = scmp.eq.s32.totalorder %s27, 0
      %p352 = por %p350, %p351
      %p353 = scmp.ne.s32.totalorder %s339, %s340
      %p354 = scmp.eq.s32.totalorder %s28, 4
      %p355 = por %p353, %p354
      %p357 = scmp.ne.s32.totalorder %s340, %s356
      %p358 = scmp.eq.s32.totalorder %s28, 0
      %p359 = por %p357, %p358
      %p360 = scmp.le.s32.totalorder 1, %s22
      %p361 = scmp.lt.s32.totalorder %s22, 6
      %p362 = pnand %p360, %p361
      %p363 = pneg %p362
      // Predicated region
      $region9: #{_lambda_.5} parent=5 // pred_check
        _
      $region10: #{_lambda_.5} parent=5 // pred_check_branch
        %365 = sbr.rel (%p362) target = $region12
      $region11: #{_lambda_.5} parent=5 // pred_region
        %s366 = ssub.s32 %s22, 1
        // Predicated region
        $region13: #{_lambda_.5} parent=11 // pred_check
          %p367 = pneg %p95
        $region14: #{_lambda_.5} parent=11 // pred_check_branch
          %369 = sbr.rel (%p367) target = $region16
        $region15: #{_lambda_.5} parent=11 // pred_region
          _
        $region16: #{_lambda_.5} parent=11 // pred_fallthru
          _
        // Predicated region
        $region17: #{_lambda_.5} parent=11 // pred_check
          %p370 = pneg %p116
        $region18: #{_lambda_.5} parent=11 // pred_check_branch
          %372 = sbr.rel (%p370) target = $region20
        $region19: #{_lambda_.5} parent=11 // pred_region
          _
        $region20: #{_lambda_.5} parent=11 // pred_fallthru
          _
        // Predicated region
        $region21: #{_lambda_.5} parent=11 // pred_check
          %p373 = pneg %p137
        $region22: #{_lambda_.5} parent=11 // pred_check_branch
          %375 = sbr.rel (%p373) target = $region24
        $region23: #{_lambda_.5} parent=11 // pred_region
          %377 = vsyncadd [#allocation3], 0
          %s378 = sshll.u32 %s4, 4
          %s379 = int_to_ptr.hbm [resolvable:$true] %s378
          %s380 = sshll.u32 [#allocation2], 4
          %s381 = int_to_ptr.vmem [resolvable:$true] %s380
          %386 = dma.hbm_to_vmem [thread:$0]  %s379, 512, %s381, [#allocation3], 64, 64, 4
        $region24: #{_lambda_.5} parent=11 // pred_fallthru
          _
        // Predicated region
        $region25: #{_lambda_.5} parent=11 // pred_check
          %p387 = pneg %p158
        $region26: #{_lambda_.5} parent=11 // pred_check_branch
          %389 = sbr.rel (%p387) target = $region28
        $region27: #{_lambda_.5} parent=11 // pred_region
          _
        $region28: #{_lambda_.5} parent=11 // pred_fallthru
          _
        // Predicated region
        $region29: #{_lambda_.5} parent=11 // pred_check
          %p390 = pneg %p179
        $region30: #{_lambda_.5} parent=11 // pred_check_branch
          %392 = sbr.rel (%p390) target = $region32
        $region31: #{_lambda_.5} parent=11 // pred_region
          _
        $region32: #{_lambda_.5} parent=11 // pred_fallthru
          _
        // Predicated region
        $region33: #{_lambda_.5} parent=11 // pred_check
          %p393 = pneg %p200
        $region34: #{_lambda_.5} parent=11 // pred_check_branch
          %395 = sbr.rel (%p393) target = $region36
        $region35: #{_lambda_.5} parent=11 // pred_region
          _
        $region36: #{_lambda_.5} parent=11 // pred_fallthru
          _
        // Predicated region
        $region37: #{_lambda_.5} parent=11 // pred_check
          %p396 = pneg %p221
        $region38: #{_lambda_.5} parent=11 // pred_check_branch
          %398 = sbr.rel (%p396) target = $region40
        $region39: #{_lambda_.5} parent=11 // pred_region
          %400 = vsyncadd [#allocation5], 0
          %s401 = sshll.u32 %s8, 4
          %s402 = int_to_ptr.hbm [resolvable:$true] %s401
          %s403 = sshll.u32 [#allocation4], 4
          %s404 = int_to_ptr.vmem [resolvable:$true] %s403
          %409 = dma.hbm_to_vmem [thread:$0]  %s402, 2048, %s404, [#allocation5], 128, 128, 8
        $region40: #{_lambda_.5} parent=11 // pred_fallthru
          _
        // Predicated region
        $region41: #{_lambda_.5} parent=11 // pred_check
          %p410 = pneg %p242
        $region42: #{_lambda_.5} parent=11 // pred_check_branch
          %412 = sbr.rel (%p410) target = $region44
        $region43: #{_lambda_.5} parent=11 // pred_region
          _
        $region44: #{_lambda_.5} parent=11 // pred_fallthru
          _
        // Predicated region
        $region45: #{_lambda_.5} parent=11 // pred_check
          %p413 = pneg %p263
        $region46: #{_lambda_.5} parent=11 // pred_check_branch
          %415 = sbr.rel (%p413) target = $region48
        $region47: #{_lambda_.5} parent=11 // pred_region
          _
        $region48: #{_lambda_.5} parent=11 // pred_fallthru
          _
        // Predicated region
        $region49: #{_lambda_.5} parent=11 // pred_check
          %p416 = pneg %p284
        $region50: #{_lambda_.5} parent=11 // pred_check_branch
          %418 = sbr.rel (%p416) target = $region52
        $region51: #{_lambda_.5} parent=11 // pred_region
          _
        $region52: #{_lambda_.5} parent=11 // pred_fallthru
          _
        // Predicated region
        $region53: #{_lambda_.5} parent=11 // pred_check
          %p419 = pneg %p305
        $region54: #{_lambda_.5} parent=11 // pred_check_branch
          %421 = sbr.rel (%p419) target = $region56
        $region55: #{_lambda_.5} parent=11 // pred_region
          _
        $region56: #{_lambda_.5} parent=11 // pred_fallthru
          _
        // Predicated region
        $region57: #{_lambda_.5} parent=11 // pred_check
          %p422 = pneg %p326
        $region58: #{_lambda_.5} parent=11 // pred_check_branch
          %424 = sbr.rel (%p422) target = $region60
        $region59: #{_lambda_.5} parent=11 // pred_region
          _
        $region60: #{_lambda_.5} parent=11 // pred_fallthru
          _
      $region12: #{_lambda_.5} parent=5 // pred_fallthru
        _
      %p425 = scmp.lt.s32.totalorder %s22, 5
      // Predicated region
      $region61: #{_lambda_.5} parent=5 // pred_check
        %p426 = pneg %p425
      $region62: #{_lambda_.5} parent=5 // pred_check_branch
        %428 = sbr.rel (%p426) target = $region64
      $region63: #{_lambda_.5} parent=5 // pred_region
        // Predicated region
        $region65: #{_lambda_.5} parent=63 // pred_check
          %p429 = pneg %p42
        $region66: #{_lambda_.5} parent=63 // pred_check_branch
          %431 = sbr.rel (%p429) target = $region68
        $region67: #{_lambda_.5} parent=63 // pred_region
          %p432 = scmp.lt.s32.totalorder %s22, 4
          %s433 = scalar_select %p432, %s22, 4
          %s434 = smul.addr %s433, 2
          %s435 = smul.addr %s434, 8
          %s436 = scalar_lea.vmem %s0, %s435
        $region68: #{_lambda_.5} parent=63 // pred_fallthru
          _
        // Predicated region
        $region69: #{_lambda_.5} parent=63 // pred_check
          %p437 = pneg %p68
        $region70: #{_lambda_.5} parent=63 // pred_check_branch
          %439 = sbr.rel (%p437) target = $region72
        $region71: #{_lambda_.5} parent=63 // pred_region
          %p440 = scmp.lt.s32.totalorder %s22, 4
          %s441 = scalar_select %p440, %s22, 4
          %s442 = scalar_lea.vmem %s1, %s441
        $region72: #{_lambda_.5} parent=63 // pred_fallthru
          _
      $region64: #{_lambda_.5} parent=5 // pred_fallthru
        _
      %p443 = scmp.le.s32.totalorder 1, %s22
      %p444 = scmp.lt.s32.totalorder %s22, 6
      %p445 = pnand %p443, %p444
      %p446 = pneg %p445
      // Predicated region
      $region73: #{_lambda_.5} parent=5 // pred_check
        _
      $region74: #{_lambda_.5} parent=5 // pred_check_branch
        %448 = sbr.rel (%p445) target = $region76
      $region75: #{_lambda_.5} parent=5 // pred_region
        %s449 = ssub.s32 %s22, 1
        // Predicated region
        $region77: #{_lambda_.5} parent=75 // pred_check
          %p450 = pneg %p137
        $region78: #{_lambda_.5} parent=75 // pred_check_branch
          %452 = sbr.rel (%p450) target = $region80
        $region79: #{_lambda_.5} parent=75 // pred_region
          %454 = dma.done [#allocation3], 512
        $region80: #{_lambda_.5} parent=75 // pred_fallthru
          _
        // Predicated region
        $region81: #{_lambda_.5} parent=75 // pred_check
          %p455 = pneg %p221
        $region82: #{_lambda_.5} parent=75 // pred_check_branch
          %457 = sbr.rel (%p455) target = $region84
        $region83: #{_lambda_.5} parent=75 // pred_region
          %459 = dma.done [#allocation5], 2048
        $region84: #{_lambda_.5} parent=75 // pred_fallthru
          _
        %p460 = scmp.lt.s32.totalorder %s27, 4
        %s461 = scalar_select %p460, %s27, 4
        %s462 = smul.addr %s461, 2
        %s463 = smul.addr %s462, 8
        %s464 = scalar_lea.vmem %s0, %s463
        %p465 = pneg %p48
        %p466 = pneg %p45
        %p467 = scmp.lt.s32.totalorder %s27, 4
        %s468 = scalar_select %p467, %s27, 4
        %s469 = scalar_lea.vmem %s1, %s468
        %p470 = pneg %p74
        %p471 = pneg %p71
        %p472 = pneg %p95
        %p473 = pneg %p92
        %p474 = pneg %p116
        %p475 = pneg %p113
        %p476 = pneg %p137
        %p477 = pneg %p134
        %p478 = pneg %p158
        %p479 = pneg %p155
        %p480 = pneg %p179
        %p481 = pneg %p176
        %p482 = pneg %p200
        %p483 = pneg %p197
        %p484 = pneg %p221
        %p485 = pneg %p218
        %p486 = pneg %p242
        %p487 = pneg %p239
        %p488 = pneg %p263
        %p489 = pneg %p260
        %p490 = pneg %p284
        %p491 = pneg %p281
        %p492 = pneg %p305
        %p493 = pneg %p302
        %p494 = pneg %p326
        %p495 = pneg %p323
        %p496 = pneg %p352
        %p497 = pneg %p349
        %p498 = scmp.lt.s32.totalorder %s27, 4
        %s499 = scalar_select %p498, %s27, 4
        %s500 = smul.addr %s499, 2
        %s501 = smul.addr %s500, 8
        %s502 = scalar_lea.vmem %s14, %s501
        %p503 = scmp.lt.s32.totalorder %s27, 4
        %s504 = scalar_select %p503, %s27, 4
        %s505 = smul.addr %s504, 2
        %s506 = smul.addr %s505, 8
        %s507 = scalar_lea.vmem %s0, %s506
        %p508 = scmp.lt.s32.totalorder %s27, 4
        %s509 = scalar_select %p508, %s27, 4
        %s510 = scalar_lea.vmem %s1, %s509
        %p511 = scmp.lt.s32.totalorder %s27, 4
        %s512 = scalar_select %p511, %s27, 4
        %s513 = smul.addr %s512, 2
        %s514 = smul.addr %s513, 8
        %s515 = scalar_lea.vmem %s14, %s514
        %v517 = vld [vmem:[%s507] sm:$0xff]
        %v518 = vld [vmem:[%s507 + $0x8] sm:$0xff]
        %v519 = vld [vmem:[%s510] sm:$0x1]
        %v520 = vpack.c.bf16 %v518, %v517
        %v521 = vld [vmem:[%s2] sm:$0xff]
        %v522 = vld [vmem:[%s2 + $0x8] sm:$0xf]
        %v523 = vld [vmem:[%s2 + $0xc] sm:$0xff]
        %v524 = vld [vmem:[%s2 + $0x14] sm:$0xf]
        %v525 = vld [vmem:[%s2 + $0x18] sm:$0xff]
        %v526 = vld [vmem:[%s2 + $0x20] sm:$0xf]
        %v527 = vld [vmem:[%s2 + $0x24] sm:$0xff]
        %v528 = vld [vmem:[%s2 + $0x2c] sm:$0xf]
        %v529 = vld [vmem:[%s2 + $0x30] sm:$0xff]
        %v530 = vld [vmem:[%s2 + $0x38] sm:$0xf]
        %v531 = vld [vmem:[%s2 + $0x3c] sm:$0xff]
        %v532 = vld [vmem:[%s2 + $0x44] sm:$0xf]
        %v533 = vld [vmem:[%s2 + $0x48] sm:$0xff]
        %v534 = vld [vmem:[%s2 + $0x50] sm:$0xf]
        %v535 = vld [vmem:[%s2 + $0x54] sm:$0xff]
        %v536 = vld [vmem:[%s2 + $0x5c] sm:$0xf]
        %v537 = vld [vmem:[%s2 + $0x60] sm:$0xff]
        %v538 = vld [vmem:[%s2 + $0x68] sm:$0xf]
        %v539 = vld [vmem:[%s2 + $0x6c] sm:$0xff]
        %v540 = vld [vmem:[%s2 + $0x74] sm:$0xf]
        %v541 = vld [vmem:[%s2 + $0x78] sm:$0xff]
        %v542 = vld [vmem:[%s2 + $0x80] sm:$0xf]
        %v543 = vld [vmem:[%s2 + $0x84] sm:$0xff]
        %v544 = vld [vmem:[%s2 + $0x8c] sm:$0xf]
        %v545 = vld [vmem:[%s2 + $0x90] sm:$0xff]
        %v546 = vld [vmem:[%s2 + $0x98] sm:$0xf]
        %v547 = vld [vmem:[%s2 + $0x9c] sm:$0xff]
        %v548 = vld [vmem:[%s2 + $0xa4] sm:$0xf]
        %v549 = vld [vmem:[%s2 + $0xa8] sm:$0xff]
        %v550 = vld [vmem:[%s2 + $0xb0] sm:$0xf]
        %v551 = vld [vmem:[%s2 + $0xb4] sm:$0xff]
        %v552 = vld [vmem:[%s2 + $0xbc] sm:$0xf]
        %v553 = vld [vmem:[%s3] sm:$0x7]
        %v555 = vperm.slane %v553, 0
        %v556 = vperm.slane %v553, 1
        %v557 = vperm.slane %v553, 2
        %v593 = vunpack.c.l.b16 %v521
        %v594 = vunpack.c.h.b16 %v521
        %v595 = vunpack.c.l.b16 %v522
        %v596 = vunpack.c.l.b16 %v523
        %v597 = vunpack.c.h.b16 %v523
        %v598 = vunpack.c.l.b16 %v524
        %v599 = vunpack.c.l.b16 %v525
        %v600 = vunpack.c.h.b16 %v525
        %v601 = vunpack.c.l.b16 %v526
        %v602 = vunpack.c.l.b16 %v527
        %v603 = vunpack.c.h.b16 %v527
        %v604 = vunpack.c.l.b16 %v528
        %v605 = vunpack.c.l.b16 %v529
        %v606 = vunpack.c.h.b16 %v529
        %v607 = vunpack.c.l.b16 %v530
        %v608 = vunpack.c.l.b16 %v531
        %v609 = vunpack.c.h.b16 %v531
        %v610 = vunpack.c.l.b16 %v532
        %v611 = vunpack.c.l.b16 %v533
        %v612 = vunpack.c.h.b16 %v533
        %v613 = vunpack.c.l.b16 %v534
        %v614 = vunpack.c.l.b16 %v535
        %v615 = vunpack.c.h.b16 %v535
        %v616 = vunpack.c.l.b16 %v536
        %v617 = vunpack.c.l.b16 %v537
        %v618 = vunpack.c.h.b16 %v537
        %v619 = vunpack.c.l.b16 %v538
        %v620 = vunpack.c.l.b16 %v539
        %v621 = vunpack.c.h.b16 %v539
        %v622 = vunpack.c.l.b16 %v540
        %v623 = vunpack.c.l.b16 %v541
        %v624 = vunpack.c.h.b16 %v541
        %v625 = vunpack.c.l.b16 %v542
        %v626 = vunpack.c.l.b16 %v543
        %v627 = vunpack.c.h.b16 %v543
        %v628 = vunpack.c.l.b16 %v544
        %v629 = vunpack.c.l.b16 %v545
        %v630 = vunpack.c.h.b16 %v545
        %v631 = vunpack.c.l.b16 %v546
        %v632 = vunpack.c.l.b16 %v547
        %v633 = vunpack.c.h.b16 %v547
        %v634 = vunpack.c.l.b16 %v548
        %v635 = vunpack.c.l.b16 %v549
        %v636 = vunpack.c.h.b16 %v549
        %v637 = vunpack.c.l.b16 %v550
        %v638 = vunpack.c.l.b16 %v551
        %v639 = vunpack.c.h.b16 %v551
        %v640 = vunpack.c.l.b16 %v552
        %v641 = vpack.c.b16 %v596, %v593
        %v642 = vpack.c.b16 %v597, %v594
        %v643 = vpack.c.b16 %v598, %v595
        %v644 = vpack.c.b16 %v602, %v599
        %v645 = vpack.c.b16 %v603, %v600
        %v646 = vpack.c.b16 %v604, %v601
        %v647 = vpack.c.b16 %v608, %v605
        %v648 = vpack.c.b16 %v609, %v606
        %v649 = vpack.c.b16 %v610, %v607
        %v650 = vpack.c.b16 %v614, %v611
        %v651 = vpack.c.b16 %v615, %v612
        %v652 = vpack.c.b16 %v616, %v613
        %v653 = vpack.c.b16 %v620, %v617
        %v654 = vpack.c.b16 %v621, %v618
        %v655 = vpack.c.b16 %v622, %v619
        %v656 = vpack.c.b16 %v626, %v623
        %v657 = vpack.c.b16 %v627, %v624
        %v658 = vpack.c.b16 %v628, %v625
        %v659 = vpack.c.b16 %v632, %v629
        %v660 = vpack.c.b16 %v633, %v630
        %v661 = vpack.c.b16 %v634, %v631
        %v662 = vpack.c.b16 %v638, %v635
        %v663 = vpack.c.b16 %v639, %v636
        %v664 = vpack.c.b16 %v640, %v637
        %689 = vmatpush.bf16.msra.mxu0 %v662
        %690 = vmatpush.bf16.msra.mxu0 %v659
        %691 = vmatpush.bf16.msra.mxu0 %v656
        %692 = vmatpush.bf16.msra.mxu0 %v653
        %693 = vmatpush.bf16.msra.mxu0 %v650
        %694 = vmatpush.bf16.msra.mxu0 %v647
        %695 = vmatpush.bf16.msra.mxu0 %v644
        %696 = vmatpush.bf16.msra.mxu0 %v641
        %697 = vmatmul.bf16.gmra.mxu0 %v520
        %v698 = vpop.f32.mrf.mxu0
        %v699 = vadd.f32 %v555, %v698
        %v700 = vpop.f32.mrf.mxu0
        %v701 = vadd.f32 %v555, %v700
        %702 = vdwg.mxu0
        %703 = vmatpush.bf16.msra.mxu0 %v663
        %704 = vmatpush.bf16.msra.mxu0 %v660
        %705 = vmatpush.bf16.msra.mxu0 %v657
        %706 = vmatpush.bf16.msra.mxu0 %v654
        %707 = vmatpush.bf16.msra.mxu0 %v651
        %708 = vmatpush.bf16.msra.mxu0 %v648
        %709 = vmatpush.bf16.msra.mxu0 %v645
        %710 = vmatpush.bf16.msra.mxu0 %v642
        %711 = vmatmul.bf16.gmra.mxu0 %v520
        %v712 = vpop.f32.mrf.mxu0
        %v713 = vadd.f32 %v556, %v712
        %v714 = vpop.f32.mrf.mxu0
        %v715 = vadd.f32 %v556, %v714
        %716 = vdwg.mxu0
        %717 = vmatpush.bf16.msra.mxu0 %v664
        %718 = vmatpush.bf16.msra.mxu0 %v661
        %719 = vmatpush.bf16.msra.mxu0 %v658
        %720 = vmatpush.bf16.msra.mxu0 %v655
        %721 = vmatpush.bf16.msra.mxu0 %v652
        %722 = vmatpush.bf16.msra.mxu0 %v649
        %723 = vmatpush.bf16.msra.mxu0 %v646
        %724 = vmatpush.bf16.msra.mxu0 %v643
        %725 = vmatmul.bf16.gmra.mxu0 %v520
        %v726 = vpop.f32.mrf.mxu0
        %v727 = vadd.f32 %v557, %v726
        %v728 = vpop.f32.mrf.mxu0
        %v729 = vadd.f32 %v557, %v728
        %730 = vdwg.mxu0
        %v731 = vpack.c.bf16 %v701, %v699
        %v732 = vpack.c.bf16 %v715, %v713
        %v733 = vpack.c.bf16 %v729, %v727
        %vm734 = vcmask 130048
        %v736 = vsel %vm734, %v731, 0
        %v739 = vsel %vm734, %v732, 0
        %741 = vmatpush.bf16.xpose.msra.mxu0 0
        %742 = vmatpush.bf16.xpose.msra.mxu0 0
        %743 = vmatpush.bf16.xpose.msra.mxu0 0
        %744 = vmatpush.bf16.xpose.msra.mxu0 0
        %745 = vmatpush.bf16.xpose.msra.mxu0 0
        %746 = vmatpush.bf16.xpose.msra.mxu0 0
        %747 = vmatpush.bf16.xpose.msra.mxu0 0
        %748 = vmatpush.bf16.xpose.msra.mxu0 %v739
        %749 = vmatmul.bf16.gmra.mxu0 %v736
        %v750 = vpop.f32.mrf.mxu0
        %v751 = vadd.f32 0.0, %v750
        %v752 = vpop.f32.mrf.mxu0
        %v753 = vadd.f32 0.0, %v752
        %754 = vdwg.mxu0
        %v755 = vmul.f32 %v751, 0.25
        %v756 = vmul.f32 %v753, 0.25
        %v758 = vperm.slane %v519, 0
        %v760 = vadd.f32 %v755, %v758
        %v761 = vadd.f32 %v756, %v758
        %v762 = vsel %vm734, %v760, -inf
        %763 = vmax.xlane.f32.xlu0 %v762
        %v764 = vpop.xlane.xlu0 %763
        %v765 = vsel %vm734, %v761, -inf
        %766 = vmax.xlane.f32.xlu0 %v765
        %v767 = vpop.xlane.xlu0 %766
        %v768 = vsub.f32 %v760, %v764
        %v769 = vsub.f32 %v761, %v767
        %v770 = vmul.f32 %v768, 1.442695
        %v771 = vpow.pop %v770
        %v772 = vmul.f32 %v769, 1.442695
        %v773 = vpow.pop %v772
        %v774 = vsel %vm734, %v771, 0.0
        %775 = vadd.xlane.f32.xlu0 %v774
        %v776 = vpop.xlane.xlu0 %775
        %v777 = vsel %vm734, %v773, 0.0
        %778 = vadd.xlane.f32.xlu0 %v777
        %v779 = vpop.xlane.xlu0 %778
        %v780 = vrcp.pop %v776
        %v781 = vrcp.pop %v779
        %v782 = vmul.f32 %v771, %v780
        %v783 = vmul.f32 %v773, %v781
        %v784 = vpack.c.bf16 %v783, %v782
        %v786 = vsel %vm734, %v784, 0
        %788 = vmatpush.bf16.msra.mxu0 0
        %789 = vmatpush.bf16.msra.mxu0 0
        %790 = vmatpush.bf16.msra.mxu0 0
        %791 = vmatpush.bf16.msra.mxu0 0
        %792 = vmatpush.bf16.msra.mxu0 0
        %793 = vmatpush.bf16.msra.mxu0 0
        %794 = vmatpush.bf16.msra.mxu0 0
        %795 = vmatpush.bf16.msra.mxu0 %v733
        %796 = vmatmul.bf16.gmra.mxu0 %v786
        %v797 = vpop.f32.mrf.mxu0
        %v798 = vadd.f32 0.0, %v797
        %v799 = vpop.f32.mrf.mxu0
        %v800 = vadd.f32 0.0, %v799
        %801 = vdwg.mxu0
        %803 = vrot.lane.b32.xlu0 %v731, 112
        %v804 = vpop.permute.xlu0 %803
        %806 = vrot.lane.b32.xlu0 %v732, 112
        %v807 = vpop.permute.xlu0 %806
        %v809 = vsel %vm734, %v804, 0
        %v812 = vsel %vm734, %v807, 0
        %814 = vmatpush.bf16.xpose.msra.mxu0 0
        %815 = vmatpush.bf16.xpose.msra.mxu0 0
        %816 = vmatpush.bf16.xpose.msra.mxu0 0
        %817 = vmatpush.bf16.xpose.msra.mxu0 0
        %818 = vmatpush.bf16.xpose.msra.mxu0 0
        %819 = vmatpush.bf16.xpose.msra.mxu0 0
        %820 = vmatpush.bf16.xpose.msra.mxu0 0
        %821 = vmatpush.bf16.xpose.msra.mxu0 %v812
        %822 = vmatmul.bf16.gmra.mxu0 %v809
        %v823 = vpop.f32.mrf.mxu0
        %v824 = vadd.f32 0.0, %v823
        %v825 = vpop.f32.mrf.mxu0
        %v826 = vadd.f32 0.0, %v825
        %827 = vdwg.mxu0
        %v828 = vmul.f32 %v824, 0.25
        %v829 = vmul.f32 %v826, 0.25
        %v830 = vadd.f32 %v828, %v758
        %v831 = vadd.f32 %v829, %v758
        %v832 = vsel %vm734, %v830, -inf
        %833 = vmax.xlane.f32.xlu0 %v832
        %v834 = vpop.xlane.xlu0 %833
        %v835 = vsel %vm734, %v831, -inf
        %836 = vmax.xlane.f32.xlu0 %v835
        %v837 = vpop.xlane.xlu0 %836
        %v838 = vsub.f32 %v830, %v834
        %v839 = vsub.f32 %v831, %v837
        %v840 = vmul.f32 %v838, 1.442695
        %v841 = vpow.pop %v840
        %v842 = vmul.f32 %v839, 1.442695
        %v843 = vpow.pop %v842
        %v844 = vsel %vm734, %v841, 0.0
        %845 = vadd.xlane.f32.xlu0 %v844
        %v846 = vpop.xlane.xlu0 %845
        %v847 = vsel %vm734, %v843, 0.0
        %848 = vadd.xlane.f32.xlu0 %v847
        %v849 = vpop.xlane.xlu0 %848
        %v850 = vrcp.pop %v846
        %v851 = vrcp.pop %v849
        %v852 = vmul.f32 %v841, %v850
        %v853 = vmul.f32 %v843, %v851
        %v854 = vpack.c.bf16 %v853, %v852
        %856 = vrot.lane.b32.xlu0 %v733, 112
        %v857 = vpop.permute.xlu0 %856
        %v860 = vsel %vm734, %v854, 0
        %862 = vmatpush.bf16.msra.mxu0 0
        %863 = vmatpush.bf16.msra.mxu0 0
        %864 = vmatpush.bf16.msra.mxu0 0
        %865 = vmatpush.bf16.msra.mxu0 0
        %866 = vmatpush.bf16.msra.mxu0 0
        %867 = vmatpush.bf16.msra.mxu0 0
        %868 = vmatpush.bf16.msra.mxu0 0
        %869 = vmatpush.bf16.msra.mxu0 %v857
        %870 = vmatmul.bf16.gmra.mxu0 %v860
        %v871 = vpop.f32.mrf.mxu0
        %v872 = vadd.f32 0.0, %v871
        %v873 = vpop.f32.mrf.mxu0
        %v874 = vadd.f32 0.0, %v873
        %875 = vdwg.mxu0
        %876 = vrot.lane.b32.xlu0 %v731, 96
        %v877 = vpop.permute.xlu0 %876
        %878 = vrot.lane.b32.xlu0 %v732, 96
        %v879 = vpop.permute.xlu0 %878
        %v881 = vsel %vm734, %v877, 0
        %v884 = vsel %vm734, %v879, 0
        %886 = vmatpush.bf16.xpose.msra.mxu0 0
        %887 = vmatpush.bf16.xpose.msra.mxu0 0
        %888 = vmatpush.bf16.xpose.msra.mxu0 0
        %889 = vmatpush.bf16.xpose.msra.mxu0 0
        %890 = vmatpush.bf16.xpose.msra.mxu0 0
        %891 = vmatpush.bf16.xpose.msra.mxu0 0
        %892 = vmatpush.bf16.xpose.msra.mxu0 0
        %893 = vmatpush.bf16.xpose.msra.mxu0 %v884
        %894 = vmatmul.bf16.gmra.mxu0 %v881
        %v895 = vpop.f32.mrf.mxu0
        %v896 = vadd.f32 0.0, %v895
        %v897 = vpop.f32.mrf.mxu0
        %v898 = vadd.f32 0.0, %v897
        %899 = vdwg.mxu0
        %v900 = vmul.f32 %v896, 0.25
        %v901 = vmul.f32 %v898, 0.25
        %v902 = vadd.f32 %v900, %v758
        %v903 = vadd.f32 %v901, %v758
        %v904 = vsel %vm734, %v902, -inf
        %905 = vmax.xlane.f32.xlu0 %v904
        %v906 = vpop.xlane.xlu0 %905
        %v907 = vsel %vm734, %v903, -inf
        %908 = vmax.xlane.f32.xlu0 %v907
        %v909 = vpop.xlane.xlu0 %908
        %v910 = vsub.f32 %v902, %v906
        %v911 = vsub.f32 %v903, %v909
        %v912 = vmul.f32 %v910, 1.442695
        %v913 = vpow.pop %v912
        %v914 = vmul.f32 %v911, 1.442695
        %v915 = vpow.pop %v914
        %v916 = vsel %vm734, %v913, 0.0
        %917 = vadd.xlane.f32.xlu0 %v916
        %v918 = vpop.xlane.xlu0 %917
        %v919 = vsel %vm734, %v915, 0.0
        %920 = vadd.xlane.f32.xlu0 %v919
        %v921 = vpop.xlane.xlu0 %920
        %v922 = vrcp.pop %v918
        %v923 = vrcp.pop %v921
        %v924 = vmul.f32 %v913, %v922
        %v925 = vmul.f32 %v915, %v923
        %v926 = vpack.c.bf16 %v925, %v924
        %927 = vrot.lane.b32.xlu0 %v733, 96
        %v928 = vpop.permute.xlu0 %927
        %v931 = vsel %vm734, %v926, 0
        %933 = vmatpush.bf16.msra.mxu0 0
        %934 = vmatpush.bf16.msra.mxu0 0
        %935 = vmatpush.bf16.msra.mxu0 0
        %936 = vmatpush.bf16.msra.mxu0 0
        %937 = vmatpush.bf16.msra.mxu0 0
        %938 = vmatpush.bf16.msra.mxu0 0
        %939 = vmatpush.bf16.msra.mxu0 0
        %940 = vmatpush.bf16.msra.mxu0 %v928
        %941 = vmatmul.bf16.gmra.mxu0 %v931
        %v942 = vpop.f32.mrf.mxu0
        %v943 = vadd.f32 0.0, %v942
        %v944 = vpop.f32.mrf.mxu0
        %v945 = vadd.f32 0.0, %v944
        %946 = vdwg.mxu0
        %947 = vrot.lane.b32.xlu0 %v731, 80
        %v948 = vpop.permute.xlu0 %947
        %949 = vrot.lane.b32.xlu0 %v732, 80
        %v950 = vpop.permute.xlu0 %949
        %v952 = vsel %vm734, %v948, 0
        %v955 = vsel %vm734, %v950, 0
        %957 = vmatpush.bf16.xpose.msra.mxu0 0
        %958 = vmatpush.bf16.xpose.msra.mxu0 0
        %959 = vmatpush.bf16.xpose.msra.mxu0 0
        %960 = vmatpush.bf16.xpose.msra.mxu0 0
        %961 = vmatpush.bf16.xpose.msra.mxu0 0
        %962 = vmatpush.bf16.xpose.msra.mxu0 0
        %963 = vmatpush.bf16.xpose.msra.mxu0 0
        %964 = vmatpush.bf16.xpose.msra.mxu0 %v955
        %965 = vmatmul.bf16.gmra.mxu0 %v952
        %v966 = vpop.f32.mrf.mxu0
        %v967 = vadd.f32 0.0, %v966
        %v968 = vpop.f32.mrf.mxu0
        %v969 = vadd.f32 0.0, %v968
        %970 = vdwg.mxu0
        %v971 = vmul.f32 %v967, 0.25
        %v972 = vmul.f32 %v969, 0.25
        %v973 = vadd.f32 %v971, %v758
        %v974 = vadd.f32 %v972, %v758
        %v975 = vsel %vm734, %v973, -inf
        %976 = vmax.xlane.f32.xlu0 %v975
        %v977 = vpop.xlane.xlu0 %976
        %v978 = vsel %vm734, %v974, -inf
        %979 = vmax.xlane.f32.xlu0 %v978
        %v980 = vpop.xlane.xlu0 %979
        %v981 = vsub.f32 %v973, %v977
        %v982 = vsub.f32 %v974, %v980
        %v983 = vmul.f32 %v981, 1.442695
        %v984 = vpow.pop %v983
        %v985 = vmul.f32 %v982, 1.442695
        %v986 = vpow.pop %v985
        %v987 = vsel %vm734, %v984, 0.0
        %988 = vadd.xlane.f32.xlu0 %v987
        %v989 = vpop.xlane.xlu0 %988
        %v990 = vsel %vm734, %v986, 0.0
        %991 = vadd.xlane.f32.xlu0 %v990
        %v992 = vpop.xlane.xlu0 %991
        %v993 = vrcp.pop %v989
        %v994 = vrcp.pop %v992
        %v995 = vmul.f32 %v984, %v993
        %v996 = vmul.f32 %v986, %v994
        %v997 = vpack.c.bf16 %v996, %v995
        %998 = vrot.lane.b32.xlu0 %v733, 80
        %v999 = vpop.permute.xlu0 %998
        %v1002 = vsel %vm734, %v997, 0
        %1004 = vmatpush.bf16.msra.mxu0 0
        %1005 = vmatpush.bf16.msra.mxu0 0
        %1006 = vmatpush.bf16.msra.mxu0 0
        %1007 = vmatpush.bf16.msra.mxu0 0
        %1008 = vmatpush.bf16.msra.mxu0 0
        %1009 = vmatpush.bf16.msra.mxu0 0
        %1010 = vmatpush.bf16.msra.mxu0 0
        %1011 = vmatpush.bf16.msra.mxu0 %v999
        %1012 = vmatmul.bf16.gmra.mxu0 %v1002
        %v1013 = vpop.f32.mrf.mxu0
        %v1014 = vadd.f32 0.0, %v1013
        %v1015 = vpop.f32.mrf.mxu0
        %v1016 = vadd.f32 0.0, %v1015
        %1017 = vdwg.mxu0
        %1020 = vrot.lane.b32.xlu0 %v872, 16
        %v1021 = vpop.permute.xlu0 %1020
        %1022 = vrot.lane.b32.xlu0 %v874, 16
        %v1023 = vpop.permute.xlu0 %1022
        %1028 = vrot.lane.b32.xlu0 %v943, 32
        %v1029 = vpop.permute.xlu0 %1028
        %1030 = vrot.lane.b32.xlu0 %v945, 32
        %v1031 = vpop.permute.xlu0 %1030
        %1036 = vrot.lane.b32.xlu0 %v1014, 48
        %v1037 = vpop.permute.xlu0 %1036
        %1038 = vrot.lane.b32.xlu0 %v1016, 48
        %v1039 = vpop.permute.xlu0 %1038
        %v1042 = vsel %vm734, %v798, %v1021
        %v1043 = vsel %vm734, %v800, %v1023
        %vm1044 = vcmask 261120
        %v1045 = vsel %vm1044, %v1042, %v1029
        %v1046 = vsel %vm1044, %v1043, %v1031
        %vm1047 = vcmask 392192
        %v1048 = vsel %vm1047, %v1045, %v1037
        %v1049 = vsel %vm1047, %v1046, %v1039
        %v1050 = vpack.c.bf16 %v1049, %v1048
        %v1051 = vld [vmem:[#allocation2] sm:$0xf]
        %v1052 = vld [vmem:[#allocation2 + $0x4] sm:$0xf]
        %v1053 = vld [vmem:[#allocation2 + $0x8] sm:$0xf]
        %v1054 = vld [vmem:[#allocation2 + $0xc] sm:$0xf]
        %v1055 = vld [vmem:[#allocation2 + $0x10] sm:$0xf]
        %v1056 = vld [vmem:[#allocation2 + $0x14] sm:$0xf]
        %v1057 = vld [vmem:[#allocation2 + $0x18] sm:$0xf]
        %v1058 = vld [vmem:[#allocation2 + $0x1c] sm:$0xf]
        %v1059 = vld [vmem:[%s5] sm:$0x1]
        %v1061 = vperm.slane %v1059, 0
        %v1071 = vunpack.c.l.b16 %v1051
        %v1072 = vunpack.c.l.b16 %v1052
        %v1073 = vunpack.c.l.b16 %v1053
        %v1074 = vunpack.c.l.b16 %v1054
        %v1075 = vunpack.c.l.b16 %v1055
        %v1076 = vunpack.c.l.b16 %v1056
        %v1077 = vunpack.c.l.b16 %v1057
        %v1078 = vunpack.c.l.b16 %v1058
        %v1079 = vpack.c.b16 %v1072, %v1071
        %v1080 = vpack.c.b16 %v1074, %v1073
        %v1081 = vpack.c.b16 %v1076, %v1075
        %v1082 = vpack.c.b16 %v1078, %v1077
        %vm1087 = vcmask 523264
        %v1089 = vsel %vm1087, %v1050, 0
        %1091 = vmatpush.bf16.msra.mxu0 0
        %1092 = vmatpush.bf16.msra.mxu0 0
        %1093 = vmatpush.bf16.msra.mxu0 0
        %1094 = vmatpush.bf16.msra.mxu0 0
        %1095 = vmatpush.bf16.msra.mxu0 %v1082
        %1096 = vmatpush.bf16.msra.mxu0 %v1081
        %1097 = vmatpush.bf16.msra.mxu0 %v1080
        %1098 = vmatpush.bf16.msra.mxu0 %v1079
        %1099 = vmatmul.bf16.gmra.mxu0 %v1089
        %v1100 = vpop.f32.mrf.mxu0
        %v1101 = vadd.f32 %v1061, %v1100
        %v1102 = vpop.f32.mrf.mxu0
        %v1103 = vadd.f32 %v1061, %v1102
        %1104 = vdwg.mxu0
        %v1105 = vadd.f32 %v1101, %v517
        %v1106 = vadd.f32 %v1103, %v518
        %v1107 = vld [vmem:[%s6] sm:$0x1]
        %v1108 = vld [vmem:[%s7] sm:$0x1]
        %1109 = vadd.xlane.f32.xlu0 %v1105
        %v1110 = vpop.xlane.xlu0 %1109
        %1111 = vadd.xlane.f32.xlu0 %v1106
        %v1112 = vpop.xlane.xlu0 %1111
        %v1113 = vmul.f32 %v1110, 0.015625
        %v1114 = vmul.f32 %v1112, 0.015625
        %v1115 = vmul.f32 %v1105, %v1105
        %v1116 = vmul.f32 %v1106, %v1106
        %1117 = vadd.xlane.f32.xlu0 %v1115
        %v1118 = vpop.xlane.xlu0 %1117
        %1119 = vadd.xlane.f32.xlu0 %v1116
        %v1120 = vpop.xlane.xlu0 %1119
        %v1121 = vmul.f32 %v1118, 0.015625
        %v1122 = vmul.f32 %v1120, 0.015625
        %v1123 = vmul.f32 %v1113, %v1113
        %v1124 = vmul.f32 %v1114, %v1114
        %v1125 = vsub.f32 %v1121, %v1123
        %v1126 = vsub.f32 %v1122, %v1124
        %v1127 = vmax.f32 %v1125, 0.0
        %v1128 = vmax.f32 %v1126, 0.0
        %v1129 = vadd.f32 %v1127, 1e-12
        %v1130 = vadd.f32 %v1128, 1e-12
        %v1131 = vrsqrt.pop %v1129
        %v1132 = vmul.f32 %v1131, %v1129
        %v1133 = vmul.f32 %v1132, %v1131
        %v1134 = vmul.f32 0.5, %v1133
        %v1135 = vsub.f32 1.5, %v1134
        %v1136 = vmul.f32 %v1131, %v1135
        %vm1137 = vweird.f32 %v1129
        %vm1138 = vweird.f32 %v1131
        %vm1139 = vmor %vm1137, %vm1138
        %v1140 = vsel %vm1139, %v1131, %v1136
        %v1141 = vrsqrt.pop %v1130
        %v1142 = vmul.f32 %v1141, %v1130
        %v1143 = vmul.f32 %v1142, %v1141
        %v1144 = vmul.f32 0.5, %v1143
        %v1145 = vsub.f32 1.5, %v1144
        %v1146 = vmul.f32 %v1141, %v1145
        %vm1147 = vweird.f32 %v1130
        %vm1148 = vweird.f32 %v1141
        %vm1149 = vmor %vm1147, %vm1148
        %v1150 = vsel %vm1149, %v1141, %v1146
        %v1151 = vsub.f32 %v1105, %v1113
        %v1152 = vsub.f32 %v1106, %v1114
        %v1153 = vmul.f32 %v1151, %v1140
        %v1154 = vmul.f32 %v1152, %v1150
        %v1156 = vperm.slane %v1107, 0
        %v1158 = vmul.f32 %v1153, %v1156
        %v1159 = vmul.f32 %v1154, %v1156
        %v1161 = vperm.slane %v1108, 0
        %v1163 = vadd.f32 %v1158, %v1161
        %v1164 = vadd.f32 %v1159, %v1161
        %v1165 = vpack.c.bf16 %v1164, %v1163
        %v1166 = vld [vmem:[#allocation4] sm:$0xff]
        %v1167 = vld [vmem:[#allocation4 + $0x8] sm:$0xff]
        %v1168 = vld [vmem:[#allocation4 + $0x10] sm:$0xff]
        %v1169 = vld [vmem:[#allocation4 + $0x18] sm:$0xff]
        %v1170 = vld [vmem:[#allocation4 + $0x20] sm:$0xff]
        %v1171 = vld [vmem:[#allocation4 + $0x28] sm:$0xff]
        %v1172 = vld [vmem:[#allocation4 + $0x30] sm:$0xff]
        %v1173 = vld [vmem:[#allocation4 + $0x38] sm:$0xff]
        %v1174 = vld [vmem:[#allocation4 + $0x40] sm:$0xff]
        %v1175 = vld [vmem:[#allocation4 + $0x48] sm:$0xff]
        %v1176 = vld [vmem:[#allocation4 + $0x50] sm:$0xff]
        %v1177 = vld [vmem:[#allocation4 + $0x58] sm:$0xff]
        %v1178 = vld [vmem:[#allocation4 + $0x60] sm:$0xff]
        %v1179 = vld [vmem:[#allocation4 + $0x68] sm:$0xff]
        %v1180 = vld [vmem:[#allocation4 + $0x70] sm:$0xff]
        %v1181 = vld [vmem:[#allocation4 + $0x78] sm:$0xff]
        %v1182 = vld [vmem:[%s9] sm:$0x3]
        %v1184 = vperm.slane %v1182, 0
        %v1185 = vperm.slane %v1182, 1
        %v1204 = vunpack.c.l.b16 %v1166
        %v1205 = vunpack.c.h.b16 %v1166
        %v1206 = vunpack.c.l.b16 %v1167
        %v1207 = vunpack.c.h.b16 %v1167
        %v1208 = vunpack.c.l.b16 %v1168
        %v1209 = vunpack.c.h.b16 %v1168
        %v1210 = vunpack.c.l.b16 %v1169
        %v1211 = vunpack.c.h.b16 %v1169
        %v1212 = vunpack.c.l.b16 %v1170
        %v1213 = vunpack.c.h.b16 %v1170
        %v1214 = vunpack.c.l.b16 %v1171
        %v1215 = vunpack.c.h.b16 %v1171
        %v1216 = vunpack.c.l.b16 %v1172
        %v1217 = vunpack.c.h.b16 %v1172
        %v1218 = vunpack.c.l.b16 %v1173
        %v1219 = vunpack.c.h.b16 %v1173
        %v1220 = vunpack.c.l.b16 %v1174
        %v1221 = vunpack.c.h.b16 %v1174
        %v1222 = vunpack.c.l.b16 %v1175
        %v1223 = vunpack.c.h.b16 %v1175
        %v1224 = vunpack.c.l.b16 %v1176
        %v1225 = vunpack.c.h.b16 %v1176
        %v1226 = vunpack.c.l.b16 %v1177
        %v1227 = vunpack.c.h.b16 %v1177
        %v1228 = vunpack.c.l.b16 %v1178
        %v1229 = vunpack.c.h.b16 %v1178
        %v1230 = vunpack.c.l.b16 %v1179
        %v1231 = vunpack.c.h.b16 %v1179
        %v1232 = vunpack.c.l.b16 %v1180
        %v1233 = vunpack.c.h.b16 %v1180
        %v1234 = vunpack.c.l.b16 %v1181
        %v1235 = vunpack.c.h.b16 %v1181
        %v1236 = vpack.c.b16 %v1206, %v1204
        %v1237 = vpack.c.b16 %v1207, %v1205
        %v1238 = vpack.c.b16 %v1210, %v1208
        %v1239 = vpack.c.b16 %v1211, %v1209
        %v1240 = vpack.c.b16 %v1214, %v1212
        %v1241 = vpack.c.b16 %v1215, %v1213
        %v1242 = vpack.c.b16 %v1218, %v1216
        %v1243 = vpack.c.b16 %v1219, %v1217
        %v1244 = vpack.c.b16 %v1222, %v1220
        %v1245 = vpack.c.b16 %v1223, %v1221
        %v1246 = vpack.c.b16 %v1226, %v1224
        %v1247 = vpack.c.b16 %v1227, %v1225
        %v1248 = vpack.c.b16 %v1230, %v1228
        %v1249 = vpack.c.b16 %v1231, %v1229
        %v1250 = vpack.c.b16 %v1234, %v1232
        %v1251 = vpack.c.b16 %v1235, %v1233
        %1268 = vmatpush.bf16.msra.mxu0 %v1250
        %1269 = vmatpush.bf16.msra.mxu0 %v1248
        %1270 = vmatpush.bf16.msra.mxu0 %v1246
        %1271 = vmatpush.bf16.msra.mxu0 %v1244
        %1272 = vmatpush.bf16.msra.mxu0 %v1242
        %1273 = vmatpush.bf16.msra.mxu0 %v1240
        %1274 = vmatpush.bf16.msra.mxu0 %v1238
        %1275 = vmatpush.bf16.msra.mxu0 %v1236
        %1276 = vmatmul.bf16.gmra.mxu0 %v1165
        %v1277 = vpop.f32.mrf.mxu0
        %v1278 = vadd.f32 %v1184, %v1277
        %v1279 = vpop.f32.mrf.mxu0
        %v1280 = vadd.f32 %v1184, %v1279
        %1281 = vdwg.mxu0
        %1282 = vmatpush.bf16.msra.mxu0 %v1251
        %1283 = vmatpush.bf16.msra.mxu0 %v1249
        %1284 = vmatpush.bf16.msra.mxu0 %v1247
        %1285 = vmatpush.bf16.msra.mxu0 %v1245
        %1286 = vmatpush.bf16.msra.mxu0 %v1243
        %1287 = vmatpush.bf16.msra.mxu0 %v1241
        %1288 = vmatpush.bf16.msra.mxu0 %v1239
        %1289 = vmatpush.bf16.msra.mxu0 %v1237
        %1290 = vmatmul.bf16.gmra.mxu0 %v1165
        %v1291 = vpop.f32.mrf.mxu0
        %v1292 = vadd.f32 %v1185, %v1291
        %v1293 = vpop.f32.mrf.mxu0
        %v1294 = vadd.f32 %v1185, %v1293
        %1295 = vdwg.mxu0
        %v1296 = vmul.f32 %v1278, %v1278
        %v1297 = vmul.f32 %v1292, %v1292
        %v1298 = vmul.f32 %v1280, %v1280
        %v1299 = vmul.f32 %v1294, %v1294
        %v1300 = vmul.f32 %v1278, %v1296
        %v1301 = vmul.f32 %v1292, %v1297
        %v1302 = vmul.f32 %v1280, %v1298
        %v1303 = vmul.f32 %v1294, %v1299
        %v1304 = vmul.f32 %v1300, 0.044715
        %v1305 = vmul.f32 %v1301, 0.044715
        %v1306 = vmul.f32 %v1302, 0.044715
        %v1307 = vmul.f32 %v1303, 0.044715
        %v1308 = vadd.f32 %v1278, %v1304
        %v1309 = vadd.f32 %v1292, %v1305
        %v1310 = vadd.f32 %v1280, %v1306
        %v1311 = vadd.f32 %v1294, %v1307
        %v1312 = vmul.f32 %v1308, 0.7978846
        %v1313 = vmul.f32 %v1309, 0.7978846
        %v1314 = vmul.f32 %v1310, 0.7978846
        %v1315 = vmul.f32 %v1311, 0.7978846
        %v1316 = vtanh.pop %v1312
        %v1317 = vtanh.pop %v1313
        %v1318 = vtanh.pop %v1314
        %v1319 = vtanh.pop %v1315
        %v1320 = vadd.f32 %v1316, 1.0
        %v1321 = vadd.f32 %v1317, 1.0
        %v1322 = vadd.f32 %v1318, 1.0
        %v1323 = vadd.f32 %v1319, 1.0
        %v1324 = vmul.f32 %v1320, 0.5
        %v1325 = vmul.f32 %v1321, 0.5
        %v1326 = vmul.f32 %v1322, 0.5
        %v1327 = vmul.f32 %v1323, 0.5
        %v1328 = vmul.f32 %v1278, %v1324
        %v1329 = vmul.f32 %v1292, %v1325
        %v1330 = vmul.f32 %v1280, %v1326
        %v1331 = vmul.f32 %v1294, %v1327
        %v1332 = vpack.c.bf16 %v1330, %v1328
        %v1333 = vpack.c.bf16 %v1331, %v1329
        %v1334 = vld [vmem:[%s10] sm:$0xf]
        %v1335 = vld [vmem:[%s10 + $0x4] sm:$0xf]
        %v1336 = vld [vmem:[%s10 + $0x8] sm:$0xf]
        %v1337 = vld [vmem:[%s10 + $0xc] sm:$0xf]
        %v1338 = vld [vmem:[%s10 + $0x10] sm:$0xf]
        %v1339 = vld [vmem:[%s10 + $0x14] sm:$0xf]
        %v1340 = vld [vmem:[%s10 + $0x18] sm:$0xf]
        %v1341 = vld [vmem:[%s10 + $0x1c] sm:$0xf]
        %v1342 = vld [vmem:[%s10 + $0x20] sm:$0xf]
        %v1343 = vld [vmem:[%s10 + $0x24] sm:$0xf]
        %v1344 = vld [vmem:[%s10 + $0x28] sm:$0xf]
        %v1345 = vld [vmem:[%s10 + $0x2c] sm:$0xf]
        %v1346 = vld [vmem:[%s10 + $0x30] sm:$0xf]
        %v1347 = vld [vmem:[%s10 + $0x34] sm:$0xf]
        %v1348 = vld [vmem:[%s10 + $0x38] sm:$0xf]
        %v1349 = vld [vmem:[%s10 + $0x3c] sm:$0xf]
        %v1350 = vld [vmem:[%s10 + $0x40] sm:$0xf]
        %v1351 = vld [vmem:[%s10 + $0x44] sm:$0xf]
        %v1352 = vld [vmem:[%s10 + $0x48] sm:$0xf]
        %v1353 = vld [vmem:[%s10 + $0x4c] sm:$0xf]
        %v1354 = vld [vmem:[%s10 + $0x50] sm:$0xf]
        %v1355 = vld [vmem:[%s10 + $0x54] sm:$0xf]
        %v1356 = vld [vmem:[%s10 + $0x58] sm:$0xf]
        %v1357 = vld [vmem:[%s10 + $0x5c] sm:$0xf]
        %v1358 = vld [vmem:[%s10 + $0x60] sm:$0xf]
        %v1359 = vld [vmem:[%s10 + $0x64] sm:$0xf]
        %v1360 = vld [vmem:[%s10 + $0x68] sm:$0xf]
        %v1361 = vld [vmem:[%s10 + $0x6c] sm:$0xf]
        %v1362 = vld [vmem:[%s10 + $0x70] sm:$0xf]
        %v1363 = vld [vmem:[%s10 + $0x74] sm:$0xf]
        %v1364 = vld [vmem:[%s10 + $0x78] sm:$0xf]
        %v1365 = vld [vmem:[%s10 + $0x7c] sm:$0xf]
        %v1366 = vld [vmem:[%s11] sm:$0x1]
        %v1368 = vperm.slane %v1366, 0
        %v1402 = vunpack.c.l.b16 %v1334
        %v1403 = vunpack.c.l.b16 %v1335
        %v1404 = vunpack.c.l.b16 %v1336
        %v1405 = vunpack.c.l.b16 %v1337
        %v1406 = vunpack.c.l.b16 %v1338
        %v1407 = vunpack.c.l.b16 %v1339
        %v1408 = vunpack.c.l.b16 %v1340
        %v1409 = vunpack.c.l.b16 %v1341
        %v1410 = vunpack.c.l.b16 %v1342
        %v1411 = vunpack.c.l.b16 %v1343
        %v1412 = vunpack.c.l.b16 %v1344
        %v1413 = vunpack.c.l.b16 %v1345
        %v1414 = vunpack.c.l.b16 %v1346
        %v1415 = vunpack.c.l.b16 %v1347
        %v1416 = vunpack.c.l.b16 %v1348
        %v1417 = vunpack.c.l.b16 %v1349
        %v1418 = vunpack.c.l.b16 %v1350
        %v1419 = vunpack.c.l.b16 %v1351
        %v1420 = vunpack.c.l.b16 %v1352
        %v1421 = vunpack.c.l.b16 %v1353
        %v1422 = vunpack.c.l.b16 %v1354
        %v1423 = vunpack.c.l.b16 %v1355
        %v1424 = vunpack.c.l.b16 %v1356
        %v1425 = vunpack.c.l.b16 %v1357
        %v1426 = vunpack.c.l.b16 %v1358
        %v1427 = vunpack.c.l.b16 %v1359
        %v1428 = vunpack.c.l.b16 %v1360
        %v1429 = vunpack.c.l.b16 %v1361
        %v1430 = vunpack.c.l.b16 %v1362
        %v1431 = vunpack.c.l.b16 %v1363
        %v1432 = vunpack.c.l.b16 %v1364
        %v1433 = vunpack.c.l.b16 %v1365
        %v1434 = vpack.c.b16 %v1403, %v1402
        %v1435 = vpack.c.b16 %v1405, %v1404
        %v1436 = vpack.c.b16 %v1407, %v1406
        %v1437 = vpack.c.b16 %v1409, %v1408
        %v1438 = vpack.c.b16 %v1411, %v1410
        %v1439 = vpack.c.b16 %v1413, %v1412
        %v1440 = vpack.c.b16 %v1415, %v1414
        %v1441 = vpack.c.b16 %v1417, %v1416
        %v1442 = vpack.c.b16 %v1419, %v1418
        %v1443 = vpack.c.b16 %v1421, %v1420
        %v1444 = vpack.c.b16 %v1423, %v1422
        %v1445 = vpack.c.b16 %v1425, %v1424
        %v1446 = vpack.c.b16 %v1427, %v1426
        %v1447 = vpack.c.b16 %v1429, %v1428
        %v1448 = vpack.c.b16 %v1431, %v1430
        %v1449 = vpack.c.b16 %v1433, %v1432
        %1466 = vmatpush.bf16.msra.mxu0 %v1441
        %1467 = vmatpush.bf16.msra.mxu0 %v1440
        %1468 = vmatpush.bf16.msra.mxu0 %v1439
        %1469 = vmatpush.bf16.msra.mxu0 %v1438
        %1470 = vmatpush.bf16.msra.mxu0 %v1437
        %1471 = vmatpush.bf16.msra.mxu0 %v1436
        %1472 = vmatpush.bf16.msra.mxu0 %v1435
        %1473 = vmatpush.bf16.msra.mxu0 %v1434
        %1474 = vmatmul.bf16.gmra.mxu0 %v1332
        %v1475 = vpop.f32.mrf.mxu0
        %v1476 = vadd.f32 %v1368, %v1475
        %v1477 = vpop.f32.mrf.mxu0
        %v1478 = vadd.f32 %v1368, %v1477
        %1479 = vdwg.mxu0
        %1480 = vmatpush.bf16.msra.mxu0 %v1449
        %1481 = vmatpush.bf16.msra.mxu0 %v1448
        %1482 = vmatpush.bf16.msra.mxu0 %v1447
        %1483 = vmatpush.bf16.msra.mxu0 %v1446
        %1484 = vmatpush.bf16.msra.mxu0 %v1445
        %1485 = vmatpush.bf16.msra.mxu0 %v1444
        %1486 = vmatpush.bf16.msra.mxu0 %v1443
        %1487 = vmatpush.bf16.msra.mxu0 %v1442
        %1488 = vmatmul.bf16.gmra.mxu0 %v1333
        %v1489 = vpop.f32.mrf.mxu0
        %v1490 = vadd.f32 %v1476, %v1489
        %v1491 = vpop.f32.mrf.mxu0
        %v1492 = vadd.f32 %v1478, %v1491
        %1493 = vdwg.mxu0
        %v1494 = vadd.f32 %v1490, %v1163
        %v1495 = vadd.f32 %v1492, %v1164
        %v1496 = vld [vmem:[%s12] sm:$0x1]
        %v1497 = vld [vmem:[%s13] sm:$0x1]
        %1498 = vadd.xlane.f32.xlu0 %v1494
        %v1499 = vpop.xlane.xlu0 %1498
        %1500 = vadd.xlane.f32.xlu0 %v1495
        %v1501 = vpop.xlane.xlu0 %1500
        %v1502 = vmul.f32 %v1499, 0.015625
        %v1503 = vmul.f32 %v1501, 0.015625
        %v1504 = vmul.f32 %v1494, %v1494
        %v1505 = vmul.f32 %v1495, %v1495
        %1506 = vadd.xlane.f32.xlu0 %v1504
        %v1507 = vpop.xlane.xlu0 %1506
        %1508 = vadd.xlane.f32.xlu0 %v1505
        %v1509 = vpop.xlane.xlu0 %1508
        %v1510 = vmul.f32 %v1507, 0.015625
        %v1511 = vmul.f32 %v1509, 0.015625
        %v1512 = vmul.f32 %v1502, %v1502
        %v1513 = vmul.f32 %v1503, %v1503
        %v1514 = vsub.f32 %v1510, %v1512
        %v1515 = vsub.f32 %v1511, %v1513
        %v1516 = vmax.f32 %v1514, 0.0
        %v1517 = vmax.f32 %v1515, 0.0
        %v1518 = vadd.f32 %v1516, 1e-12
        %v1519 = vadd.f32 %v1517, 1e-12
        %v1520 = vrsqrt.pop %v1518
        %v1521 = vmul.f32 %v1520, %v1518
        %v1522 = vmul.f32 %v1521, %v1520
        %v1523 = vmul.f32 0.5, %v1522
        %v1524 = vsub.f32 1.5, %v1523
        %v1525 = vmul.f32 %v1520, %v1524
        %vm1526 = vweird.f32 %v1518
        %vm1527 = vweird.f32 %v1520
        %vm1528 = vmor %vm1526, %vm1527
        %v1529 = vsel %vm1528, %v1520, %v1525
        %v1530 = vrsqrt.pop %v1519
        %v1531 = vmul.f32 %v1530, %v1519
        %v1532 = vmul.f32 %v1531, %v1530
        %v1533 = vmul.f32 0.5, %v1532
        %v1534 = vsub.f32 1.5, %v1533
        %v1535 = vmul.f32 %v1530, %v1534
        %vm1536 = vweird.f32 %v1519
        %vm1537 = vweird.f32 %v1530
        %vm1538 = vmor %vm1536, %vm1537
        %v1539 = vsel %vm1538, %v1530, %v1535
        %v1540 = vsub.f32 %v1494, %v1502
        %v1541 = vsub.f32 %v1495, %v1503
        %v1542 = vmul.f32 %v1540, %v1529
        %v1543 = vmul.f32 %v1541, %v1539
        %v1545 = vperm.slane %v1496, 0
        %v1547 = vmul.f32 %v1542, %v1545
        %v1548 = vmul.f32 %v1543, %v1545
        %v1550 = vperm.slane %v1497, 0
        %v1552 = vadd.f32 %v1547, %v1550
        %v1553 = vadd.f32 %v1548, %v1550
        %1554 = vst [vmem:[%s515] sm:$0xff] %v1552
        %1555 = vst [vmem:[%s515 + $0x8] sm:$0xff] %v1553
        %p1556 = scmp.lt.s32.totalorder %s27, 4
        %s1557 = scalar_select %p1556, %s27, 4
        %s1558 = smul.addr %s1557, 2
        %s1559 = smul.addr %s1558, 8
        %s1560 = scalar_lea.vmem %s14, %s1559
        // Predicated region
        $region85: #{_lambda_.5} parent=75 // pred_check
          %p1561 = pneg %p349
        $region86: #{_lambda_.5} parent=75 // pred_check_branch
          %1563 = sbr.rel (%p1561) target = $region88
        $region87: #{_lambda_.5} parent=75 // pred_region
          _
        $region88: #{_lambda_.5} parent=75 // pred_fallthru
          _
      $region76: #{_lambda_.5} parent=5 // pred_fallthru
        _
      %p1564 = scmp.le.s32.totalorder 2, %s22
      // Predicated region
      $region89: #{_lambda_.5} parent=5 // pred_check
        %p1565 = pneg %p1564
      $region90: #{_lambda_.5} parent=5 // pred_check_branch
        %1567 = sbr.rel (%p1565) target = $region92
      $region91: #{_lambda_.5} parent=5 // pred_region
        %s1568 = ssub.s32 %s22, 2
        // Predicated region
        $region93: #{_lambda_.5} parent=91 // pred_check
          %p1569 = pneg %p355
        $region94: #{_lambda_.5} parent=91 // pred_check_branch
          %1571 = sbr.rel (%p1569) target = $region96
        $region95: #{_lambda_.5} parent=91 // pred_region
          %p1572 = scmp.lt.s32.totalorder %s28, 4
          %s1573 = scalar_select %p1572, %s28, 4
          %s1574 = smul.addr %s1573, 2
          %s1575 = smul.addr %s1574, 8
          %s1576 = scalar_lea.vmem %s14, %s1575
        $region96: #{_lambda_.5} parent=91 // pred_fallthru
          _
      $region92: #{_lambda_.5} parent=5 // pred_fallthru
        _
    $region6: #{_lambda_.5} parent=1 // loop_footer
      %s26 = sadd.s32 1, %s22
    $region7: #{_lambda_.5} parent=1 // loop_footer_branch
      %21 = sbr.rel target = $region3
    $region8: #{_lambda_.5} parent=1 // loop_exit
      _
    %1577 = vsyncpa [#allocation3], 1
    %s1578 = scalar_lea.sflag [#allocation3], 1
    %1579 = vsyncpa %s1578, 1
    %1580 = vsyncpa [#allocation5], 1

// kernel: _lambda_.6
$region0: #{_lambda_.6}
  #allocation0 [shape = 'u32[]', space=smem, size = 0x4, offset = 0x4, fixed_abs, tag = 'smem constant byte address 0x4 - core index']
  #allocation1 [shape = 'u32[72,128]{1,0:T(1,128)}', space=vmem, size = 0x9000, scoped, tag = 'internal scratch']
  %s0 = inlined_call_operand.vmem [shape: f32[5,16,128], index: 0, kind: input, shape index: {}]
  %s1 = inlined_call_operand.vmem [shape: f32[5,1,16], index: 1, kind: input, shape index: {}]
  %s2 = inlined_call_operand.vmem [shape: bf16[128,384], index: 2, kind: input, shape index: {}]
  %s3 = inlined_call_operand.vmem [shape: f32[1,384], index: 3, kind: input, shape index: {}]
  %s4 = inlined_call_operand.vmem [shape: bf16[64,128], index: 4, kind: input, shape index: {}]
  %s5 = inlined_call_operand.vmem [shape: f32[1,128], index: 5, kind: input, shape index: {}, may-alias: {5,7,11,13}]
  %s6 = inlined_call_operand.vmem [shape: f32[1,128], index: 6, kind: input, shape index: {}, may-alias: {6,12}]
  %s7 = inlined_call_operand.vmem [shape: f32[1,128], index: 7, kind: input, shape index: {}, may-alias: {5,7,11,13}]
  %s8 = inlined_call_operand.vmem [shape: bf16[128,256], index: 8, kind: input, shape index: {}]
  %s9 = inlined_call_operand.vmem [shape: f32[1,256], index: 9, kind: input, shape index: {}]
  %s10 = inlined_call_operand.vmem [shape: bf16[256,128], index: 10, kind: input, shape index: {}]
  %s11 = inlined_call_operand.vmem [shape: f32[1,128], index: 11, kind: input, shape index: {}, may-alias: {5,7,11,13}]
  %s12 = inlined_call_operand.vmem [shape: f32[1,128], index: 12, kind: input, shape index: {}, may-alias: {6,12}]
  %s13 = inlined_call_operand.vmem [shape: f32[1,128], index: 13, kind: input, shape index: {}, may-alias: {5,7,11,13}]
  %s14 = inlined_call_operand.vmem [shape: f32[5,16,128], index: 14, kind: output, shape index: {}]
  %s15 = sld [smem:[#allocation0]]
  $region89: #{_lambda_.6} parent=0
    _
  %s17 = ssub.s32 1, %s15
  %s18 = scalar_select 0, %s17, %s15
  loop: start=0, step=1, limit=7
  $region2: #{_lambda_.6} parent=0 // loop_pre_header
    _
  $region3: #{_lambda_.6} parent=0 // loop_header
    %s20 = sphi 0, %s24
    %p21 = scmp.ge.s32.totalorder %s20, 7
    %s30 = sphi 0, %s32
    %s33 = sphi 0, %s30
    %s34 = sphi 0, %s33
    %s50 = sphi 0, %s34
    %s56 = sphi 0, %s58
    %s59 = sphi 0, %s56
    %s60 = sphi 0, %s59
    %s76 = sphi 0, %s60
    %s80 = sphi 0, %s80
    %s82 = sphi 0, %s80
    %s83 = sphi 0, %s82
    %s97 = sphi 0, %s83
    %s101 = sphi 0, %s101
    %s103 = sphi 0, %s101
    %s104 = sphi 0, %s103
    %s118 = sphi 0, %s104
    %s122 = sphi 0, %s122
    %s124 = sphi 0, %s122
    %s125 = sphi 0, %s124
    %s139 = sphi 0, %s125
    %s143 = sphi 0, %s143
    %s145 = sphi 0, %s143
    %s146 = sphi 0, %s145
    %s160 = sphi 0, %s146
    %s164 = sphi 0, %s164
    %s166 = sphi 0, %s164
    %s167 = sphi 0, %s166
    %s181 = sphi 0, %s167
    %s185 = sphi 0, %s185
    %s187 = sphi 0, %s185
    %s188 = sphi 0, %s187
    %s202 = sphi 0, %s188
    %s206 = sphi 0, %s206
    %s208 = sphi 0, %s206
    %s209 = sphi 0, %s208
    %s223 = sphi 0, %s209
    %s227 = sphi 0, %s227
    %s229 = sphi 0, %s227
    %s230 = sphi 0, %s229
    %s244 = sphi 0, %s230
    %s248 = sphi 0, %s248
    %s250 = sphi 0, %s248
    %s251 = sphi 0, %s250
    %s265 = sphi 0, %s251
    %s269 = sphi 0, %s269
    %s271 = sphi 0, %s269
    %s272 = sphi 0, %s271
    %s286 = sphi 0, %s272
    %s290 = sphi 0, %s290
    %s292 = sphi 0, %s290
    %s293 = sphi 0, %s292
    %s307 = sphi 0, %s293
    %s311 = sphi 0, %s311
    %s313 = sphi 0, %s311
    %s314 = sphi 0, %s313
    %s328 = sphi 0, %s314
    %s334 = sphi 0, %s336
    %s337 = sphi 0, %s334
    %s338 = sphi 0, %s337
    %s354 = sphi 0, %s338
  $region4: #{_lambda_.6} parent=0 // loop_header_branch
    %23 = sbr.rel (%p21) target = $region8
  $region5: #{_lambda_.6} parent=0 // loop_body
    %s25 = ssub.s32 %s20, 1
    %s26 = ssub.s32 %s20, 2
    %s27 = sadd.s32 %s20, 1
    %s28 = ssub.s32 %s20, %s27
    %p29 = scmp.eq.s32.totalorder %s28, 0
    %s31 = sadd.s32 %s30, 1
    %s32 = scalar_select %p29, %s30, %s31
    %p35 = pneg %p29
    %p36 = scmp.eq.s32.totalorder %s20, 4
    %p37 = por %p35, %p36
    %p38 = scmp.ne.s32.totalorder %s30, %s33
    %p39 = scmp.eq.s32.totalorder %s20, 0
    %p40 = por %p38, %p39
    %p41 = scmp.ne.s32.totalorder %s30, %s33
    %p42 = scmp.eq.s32.totalorder %s25, 4
    %p43 = por %p41, %p42
    %p44 = scmp.ne.s32.totalorder %s33, %s34
    %p45 = scmp.eq.s32.totalorder %s25, 0
    %p46 = por %p44, %p45
    %p47 = scmp.ne.s32.totalorder %s33, %s34
    %p48 = scmp.eq.s32.totalorder %s26, 4
    %p49 = por %p47, %p48
    %p51 = scmp.ne.s32.totalorder %s34, %s50
    %p52 = scmp.eq.s32.totalorder %s26, 0
    %p53 = por %p51, %p52
    %s54 = ssub.s32 %s20, %s27
    %p55 = scmp.eq.s32.totalorder %s54, 0
    %s57 = sadd.s32 %s56, 1
    %s58 = scalar_select %p55, %s56, %s57
    %p61 = pneg %p55
    %p62 = scmp.eq.s32.totalorder %s20, 4
    %p63 = por %p61, %p62
    %p64 = scmp.ne.s32.totalorder %s56, %s59
    %p65 = scmp.eq.s32.totalorder %s20, 0
    %p66 = por %p64, %p65
    %p67 = scmp.ne.s32.totalorder %s56, %s59
    %p68 = scmp.eq.s32.totalorder %s25, 4
    %p69 = por %p67, %p68
    %p70 = scmp.ne.s32.totalorder %s59, %s60
    %p71 = scmp.eq.s32.totalorder %s25, 0
    %p72 = por %p70, %p71
    %p73 = scmp.ne.s32.totalorder %s59, %s60
    %p74 = scmp.eq.s32.totalorder %s26, 4
    %p75 = por %p73, %p74
    %p77 = scmp.ne.s32.totalorder %s60, %s76
    %p78 = scmp.eq.s32.totalorder %s26, 0
    %p79 = por %p77, %p78
    %s81 = sadd.s32 %s80, 1
    %p84 = scmp.eq.s32.totalorder %s20, 4
    %p85 = scmp.ne.s32.totalorder %s80, %s82
    %p86 = scmp.eq.s32.totalorder %s20, 0
    %p87 = por %p85, %p86
    %p88 = scmp.ne.s32.totalorder %s80, %s82
    %p89 = scmp.eq.s32.totalorder %s25, 4
    %p90 = por %p88, %p89
    %p91 = scmp.ne.s32.totalorder %s82, %s83
    %p92 = scmp.eq.s32.totalorder %s25, 0
    %p93 = por %p91, %p92
    %p94 = scmp.ne.s32.totalorder %s82, %s83
    %p95 = scmp.eq.s32.totalorder %s26, 4
    %p96 = por %p94, %p95
    %p98 = scmp.ne.s32.totalorder %s83, %s97
    %p99 = scmp.eq.s32.totalorder %s26, 0
    %p100 = por %p98, %p99
    %s102 = sadd.s32 %s101, 1
    %p105 = scmp.eq.s32.totalorder %s20, 4
    %p106 = scmp.ne.s32.totalorder %s101, %s103
    %p107 = scmp.eq.s32.totalorder %s20, 0
    %p108 = por %p106, %p107
    %p109 = scmp.ne.s32.totalorder %s101, %s103
    %p110 = scmp.eq.s32.totalorder %s25, 4
    %p111 = por %p109, %p110
    %p112 = scmp.ne.s32.totalorder %s103, %s104
    %p113 = scmp.eq.s32.totalorder %s25, 0
    %p114 = por %p112, %p113
    %p115 = scmp.ne.s32.totalorder %s103, %s104
    %p116 = scmp.eq.s32.totalorder %s26, 4
    %p117 = por %p115, %p116
    %p119 = scmp.ne.s32.totalorder %s104, %s118
    %p120 = scmp.eq.s32.totalorder %s26, 0
    %p121 = por %p119, %p120
    %s123 = sadd.s32 %s122, 1
    %p126 = scmp.eq.s32.totalorder %s20, 4
    %p127 = scmp.ne.s32.totalorder %s122, %s124
    %p128 = scmp.eq.s32.totalorder %s20, 0
    %p129 = por %p127, %p128
    %p130 = scmp.ne.s32.totalorder %s122, %s124
    %p131 = scmp.eq.s32.totalorder %s25, 4
    %p132 = por %p130, %p131
    %p133 = scmp.ne.s32.totalorder %s124, %s125
    %p134 = scmp.eq.s32.totalorder %s25, 0
    %p135 = por %p133, %p134
    %p136 = scmp.ne.s32.totalorder %s124, %s125
    %p137 = scmp.eq.s32.totalorder %s26, 4
    %p138 = por %p136, %p137
    %p140 = scmp.ne.s32.totalorder %s125, %s139
    %p141 = scmp.eq.s32.totalorder %s26, 0
    %p142 = por %p140, %p141
    %s144 = sadd.s32 %s143, 1
    %p147 = scmp.eq.s32.totalorder %s20, 4
    %p148 = scmp.ne.s32.totalorder %s143, %s145
    %p149 = scmp.eq.s32.totalorder %s20, 0
    %p150 = por %p148, %p149
    %p151 = scmp.ne.s32.totalorder %s143, %s145
    %p152 = scmp.eq.s32.totalorder %s25, 4
    %p153 = por %p151, %p152
    %p154 = scmp.ne.s32.totalorder %s145, %s146
    %p155 = scmp.eq.s32.totalorder %s25, 0
    %p156 = por %p154, %p155
    %p157 = scmp.ne.s32.totalorder %s145, %s146
    %p158 = scmp.eq.s32.totalorder %s26, 4
    %p159 = por %p157, %p158
    %p161 = scmp.ne.s32.totalorder %s146, %s160
    %p162 = scmp.eq.s32.totalorder %s26, 0
    %p163 = por %p161, %p162
    %s165 = sadd.s32 %s164, 1
    %p168 = scmp.eq.s32.totalorder %s20, 4
    %p169 = scmp.ne.s32.totalorder %s164, %s166
    %p170 = scmp.eq.s32.totalorder %s20, 0
    %p171 = por %p169, %p170
    %p172 = scmp.ne.s32.totalorder %s164, %s166
    %p173 = scmp.eq.s32.totalorder %s25, 4
    %p174 = por %p172, %p173
    %p175 = scmp.ne.s32.totalorder %s166, %s167
    %p176 = scmp.eq.s32.totalorder %s25, 0
    %p177 = por %p175, %p176
    %p178 = scmp.ne.s32.totalorder %s166, %s167
    %p179 = scmp.eq.s32.totalorder %s26, 4
    %p180 = por %p178, %p179
    %p182 = scmp.ne.s32.totalorder %s167, %s181
    %p183 = scmp.eq.s32.totalorder %s26, 0
    %p184 = por %p182, %p183
    %s186 = sadd.s32 %s185, 1
    %p189 = scmp.eq.s32.totalorder %s20, 4
    %p190 = scmp.ne.s32.totalorder %s185, %s187
    %p191 = scmp.eq.s32.totalorder %s20, 0
    %p192 = por %p190, %p191
    %p193 = scmp.ne.s32.totalorder %s185, %s187
    %p194 = scmp.eq.s32.totalorder %s25, 4
    %p195 = por %p193, %p194
    %p196 = scmp.ne.s32.totalorder %s187, %s188
    %p197 = scmp.eq.s32.totalorder %s25, 0
    %p198 = por %p196, %p197
    %p199 = scmp.ne.s32.totalorder %s187, %s188
    %p200 = scmp.eq.s32.totalorder %s26, 4
    %p201 = por %p199, %p200
    %p203 = scmp.ne.s32.totalorder %s188, %s202
    %p204 = scmp.eq.s32.totalorder %s26, 0
    %p205 = por %p203, %p204
    %s207 = sadd.s32 %s206, 1
    %p210 = scmp.eq.s32.totalorder %s20, 4
    %p211 = scmp.ne.s32.totalorder %s206, %s208
    %p212 = scmp.eq.s32.totalorder %s20, 0
    %p213 = por %p211, %p212
    %p214 = scmp.ne.s32.totalorder %s206, %s208
    %p215 = scmp.eq.s32.totalorder %s25, 4
    %p216 = por %p214, %p215
    %p217 = scmp.ne.s32.totalorder %s208, %s209
    %p218 = scmp.eq.s32.totalorder %s25, 0
    %p219 = por %p217, %p218
    %p220 = scmp.ne.s32.totalorder %s208, %s209
    %p221 = scmp.eq.s32.totalorder %s26, 4
    %p222 = por %p220, %p221
    %p224 = scmp.ne.s32.totalorder %s209, %s223
    %p225 = scmp.eq.s32.totalorder %s26, 0
    %p226 = por %p224, %p225
    %s228 = sadd.s32 %s227, 1
    %p231 = scmp.eq.s32.totalorder %s20, 4
    %p232 = scmp.ne.s32.totalorder %s227, %s229
    %p233 = scmp.eq.s32.totalorder %s20, 0
    %p234 = por %p232, %p233
    %p235 = scmp.ne.s32.totalorder %s227, %s229
    %p236 = scmp.eq.s32.totalorder %s25, 4
    %p237 = por %p235, %p236
    %p238 = scmp.ne.s32.totalorder %s229, %s230
    %p239 = scmp.eq.s32.totalorder %s25, 0
    %p240 = por %p238, %p239
    %p241 = scmp.ne.s32.totalorder %s229, %s230
    %p242 = scmp.eq.s32.totalorder %s26, 4
    %p243 = por %p241, %p242
    %p245 = scmp.ne.s32.totalorder %s230, %s244
    %p246 = scmp.eq.s32.totalorder %s26, 0
    %p247 = por %p245, %p246
    %s249 = sadd.s32 %s248, 1
    %p252 = scmp.eq.s32.totalorder %s20, 4
    %p253 = scmp.ne.s32.totalorder %s248, %s250
    %p254 = scmp.eq.s32.totalorder %s20, 0
    %p255 = por %p253, %p254
    %p256 = scmp.ne.s32.totalorder %s248, %s250
    %p257 = scmp.eq.s32.totalorder %s25, 4
    %p258 = por %p256, %p257
    %p259 = scmp.ne.s32.totalorder %s250, %s251
    %p260 = scmp.eq.s32.totalorder %s25, 0
    %p261 = por %p259, %p260
    %p262 = scmp.ne.s32.totalorder %s250, %s251
    %p263 = scmp.eq.s32.totalorder %s26, 4
    %p264 = por %p262, %p263
    %p266 = scmp.ne.s32.totalorder %s251, %s265
    %p267 = scmp.eq.s32.totalorder %s26, 0
    %p268 = por %p266, %p267
    %s270 = sadd.s32 %s269, 1
    %p273 = scmp.eq.s32.totalorder %s20, 4
    %p274 = scmp.ne.s32.totalorder %s269, %s271
    %p275 = scmp.eq.s32.totalorder %s20, 0
    %p276 = por %p274, %p275
    %p277 = scmp.ne.s32.totalorder %s269, %s271
    %p278 = scmp.eq.s32.totalorder %s25, 4
    %p279 = por %p277, %p278
    %p280 = scmp.ne.s32.totalorder %s271, %s272
    %p281 = scmp.eq.s32.totalorder %s25, 0
    %p282 = por %p280, %p281
    %p283 = scmp.ne.s32.totalorder %s271, %s272
    %p284 = scmp.eq.s32.totalorder %s26, 4
    %p285 = por %p283, %p284
    %p287 = scmp.ne.s32.totalorder %s272, %s286
    %p288 = scmp.eq.s32.totalorder %s26, 0
    %p289 = por %p287, %p288
    %s291 = sadd.s32 %s290, 1
    %p294 = scmp.eq.s32.totalorder %s20, 4
    %p295 = scmp.ne.s32.totalorder %s290, %s292
    %p296 = scmp.eq.s32.totalorder %s20, 0
    %p297 = por %p295, %p296
    %p298 = scmp.ne.s32.totalorder %s290, %s292
    %p299 = scmp.eq.s32.totalorder %s25, 4
    %p300 = por %p298, %p299
    %p301 = scmp.ne.s32.totalorder %s292, %s293
    %p302 = scmp.eq.s32.totalorder %s25, 0
    %p303 = por %p301, %p302
    %p304 = scmp.ne.s32.totalorder %s292, %s293
    %p305 = scmp.eq.s32.totalorder %s26, 4
    %p306 = por %p304, %p305
    %p308 = scmp.ne.s32.totalorder %s293, %s307
    %p309 = scmp.eq.s32.totalorder %s26, 0
    %p310 = por %p308, %p309
    %s312 = sadd.s32 %s311, 1
    %p315 = scmp.eq.s32.totalorder %s20, 4
    %p316 = scmp.ne.s32.totalorder %s311, %s313
    %p317 = scmp.eq.s32.totalorder %s20, 0
    %p318 = por %p316, %p317
    %p319 = scmp.ne.s32.totalorder %s311, %s313
    %p320 = scmp.eq.s32.totalorder %s25, 4
    %p321 = por %p319, %p320
    %p322 = scmp.ne.s32.totalorder %s313, %s314
    %p323 = scmp.eq.s32.totalorder %s25, 0
    %p324 = por %p322, %p323
    %p325 = scmp.ne.s32.totalorder %s313, %s314
    %p326 = scmp.eq.s32.totalorder %s26, 4
    %p327 = por %p325, %p326
    %p329 = scmp.ne.s32.totalorder %s314, %s328
    %p330 = scmp.eq.s32.totalorder %s26, 0
    %p331 = por %p329, %p330
    %s332 = ssub.s32 %s20, %s27
    %p333 = scmp.eq.s32.totalorder %s332, 0
    %s335 = sadd.s32 %s334, 1
    %s336 = scalar_select %p333, %s334, %s335
    %p339 = pneg %p333
    %p340 = scmp.eq.s32.totalorder %s20, 4
    %p341 = por %p339, %p340
    %p342 = scmp.ne.s32.totalorder %s334, %s337
    %p343 = scmp.eq.s32.totalorder %s20, 0
    %p344 = por %p342, %p343
    %p345 = scmp.ne.s32.totalorder %s334, %s337
    %p346 = scmp.eq.s32.totalorder %s25, 4
    %p347 = por %p345, %p346
    %p348 = scmp.ne.s32.totalorder %s337, %s338
    %p349 = scmp.eq.s32.totalorder %s25, 0
    %p350 = por %p348, %p349
    %p351 = scmp.ne.s32.totalorder %s337, %s338
    %p352 = scmp.eq.s32.totalorder %s26, 4
    %p353 = por %p351, %p352
    %p355 = scmp.ne.s32.totalorder %s338, %s354
    %p356 = scmp.eq.s32.totalorder %s26, 0
    %p357 = por %p355, %p356
    %p358 = scmp.le.s32.totalorder 1, %s20
    %p359 = scmp.lt.s32.totalorder %s20, 6
    %p360 = pnand %p358, %p359
    %p361 = pneg %p360
    // Predicated region
    $region9: #{_lambda_.6} parent=5 // pred_check
      _
    $region10: #{_lambda_.6} parent=5 // pred_check_branch
      %363 = sbr.rel (%p360) target = $region12
    $region11: #{_lambda_.6} parent=5 // pred_region
      %s364 = ssub.s32 %s20, 1
      // Predicated region
      $region13: #{_lambda_.6} parent=11 // pred_check
        %p365 = pneg %p93
      $region14: #{_lambda_.6} parent=11 // pred_check_branch
        %367 = sbr.rel (%p365) target = $region16
      $region15: #{_lambda_.6} parent=11 // pred_region
        _
      $region16: #{_lambda_.6} parent=11 // pred_fallthru
        _
      // Predicated region
      $region17: #{_lambda_.6} parent=11 // pred_check
        %p368 = pneg %p114
      $region18: #{_lambda_.6} parent=11 // pred_check_branch
        %370 = sbr.rel (%p368) target = $region20
      $region19: #{_lambda_.6} parent=11 // pred_region
        _
      $region20: #{_lambda_.6} parent=11 // pred_fallthru
        _
      // Predicated region
      $region21: #{_lambda_.6} parent=11 // pred_check
        %p371 = pneg %p135
      $region22: #{_lambda_.6} parent=11 // pred_check_branch
        %373 = sbr.rel (%p371) target = $region24
      $region23: #{_lambda_.6} parent=11 // pred_region
        _
      $region24: #{_lambda_.6} parent=11 // pred_fallthru
        _
      // Predicated region
      $region25: #{_lambda_.6} parent=11 // pred_check
        %p374 = pneg %p156
      $region26: #{_lambda_.6} parent=11 // pred_check_branch
        %376 = sbr.rel (%p374) target = $region28
      $region27: #{_lambda_.6} parent=11 // pred_region
        _
      $region28: #{_lambda_.6} parent=11 // pred_fallthru
        _
      // Predicated region
      $region29: #{_lambda_.6} parent=11 // pred_check
        %p377 = pneg %p177
      $region30: #{_lambda_.6} parent=11 // pred_check_branch
        %379 = sbr.rel (%p377) target = $region32
      $region31: #{_lambda_.6} parent=11 // pred_region
        _
      $region32: #{_lambda_.6} parent=11 // pred_fallthru
        _
      // Predicated region
      $region33: #{_lambda_.6} parent=11 // pred_check
        %p380 = pneg %p198
      $region34: #{_lambda_.6} parent=11 // pred_check_branch
        %382 = sbr.rel (%p380) target = $region36
      $region35: #{_lambda_.6} parent=11 // pred_region
        _
      $region36: #{_lambda_.6} parent=11 // pred_fallthru
        _
      // Predicated region
      $region37: #{_lambda_.6} parent=11 // pred_check
        %p383 = pneg %p219
      $region38: #{_lambda_.6} parent=11 // pred_check_branch
        %385 = sbr.rel (%p383) target = $region40
      $region39: #{_lambda_.6} parent=11 // pred_region
        _
      $region40: #{_lambda_.6} parent=11 // pred_fallthru
        _
      // Predicated region
      $region41: #{_lambda_.6} parent=11 // pred_check
        %p386 = pneg %p240
      $region42: #{_lambda_.6} parent=11 // pred_check_branch
        %388 = sbr.rel (%p386) target = $region44
      $region43: #{_lambda_.6} parent=11 // pred_region
        _
      $region44: #{_lambda_.6} parent=11 // pred_fallthru
        _
      // Predicated region
      $region45: #{_lambda_.6} parent=11 // pred_check
        %p389 = pneg %p261
      $region46: #{_lambda_.6} parent=11 // pred_check_branch
        %391 = sbr.rel (%p389) target = $region48
      $region47: #{_lambda_.6} parent=11 // pred_region
        _
      $region48: #{_lambda_.6} parent=11 // pred_fallthru
        _
      // Predicated region
      $region49: #{_lambda_.6} parent=11 // pred_check
        %p392 = pneg %p282
      $region50: #{_lambda_.6} parent=11 // pred_check_branch
        %394 = sbr.rel (%p392) target = $region52
      $region51: #{_lambda_.6} parent=11 // pred_region
        _
      $region52: #{_lambda_.6} parent=11 // pred_fallthru
        _
      // Predicated region
      $region53: #{_lambda_.6} parent=11 // pred_check
        %p395 = pneg %p303
      $region54: #{_lambda_.6} parent=11 // pred_check_branch
        %397 = sbr.rel (%p395) target = $region56
      $region55: #{_lambda_.6} parent=11 // pred_region
        _
      $region56: #{_lambda_.6} parent=11 // pred_fallthru
        _
      // Predicated region
      $region57: #{_lambda_.6} parent=11 // pred_check
        %p398 = pneg %p324
      $region58: #{_lambda_.6} parent=11 // pred_check_branch
        %400 = sbr.rel (%p398) target = $region60
      $region59: #{_lambda_.6} parent=11 // pred_region
        _
      $region60: #{_lambda_.6} parent=11 // pred_fallthru
        _
    $region12: #{_lambda_.6} parent=5 // pred_fallthru
      _
    %p401 = scmp.lt.s32.totalorder %s20, 5
    // Predicated region
    $region61: #{_lambda_.6} parent=5 // pred_check
      %p402 = pneg %p401
    $region62: #{_lambda_.6} parent=5 // pred_check_branch
      %404 = sbr.rel (%p402) target = $region64
    $region63: #{_lambda_.6} parent=5 // pred_region
      // Predicated region
      $region65: #{_lambda_.6} parent=63 // pred_check
        %p405 = pneg %p40
      $region66: #{_lambda_.6} parent=63 // pred_check_branch
        %407 = sbr.rel (%p405) target = $region68
      $region67: #{_lambda_.6} parent=63 // pred_region
        %p408 = scmp.lt.s32.totalorder %s20, 4
        %s409 = scalar_select %p408, %s20, 4
        %s410 = smul.addr %s409, 2
        %s411 = smul.addr %s410, 8
        %s412 = scalar_lea.vmem %s0, %s411
      $region68: #{_lambda_.6} parent=63 // pred_fallthru
        _
      // Predicated region
      $region69: #{_lambda_.6} parent=63 // pred_check
        %p413 = pneg %p66
      $region70: #{_lambda_.6} parent=63 // pred_check_branch
        %415 = sbr.rel (%p413) target = $region72
      $region71: #{_lambda_.6} parent=63 // pred_region
        %p416 = scmp.lt.s32.totalorder %s20, 4
        %s417 = scalar_select %p416, %s20, 4
        %s418 = scalar_lea.vmem %s1, %s417
      $region72: #{_lambda_.6} parent=63 // pred_fallthru
        _
    $region64: #{_lambda_.6} parent=5 // pred_fallthru
      _
    %p419 = scmp.le.s32.totalorder 1, %s20
    %p420 = scmp.lt.s32.totalorder %s20, 6
    %p421 = pnand %p419, %p420
    %p422 = pneg %p421
    // Predicated region
    $region73: #{_lambda_.6} parent=5 // pred_check
      _
    $region74: #{_lambda_.6} parent=5 // pred_check_branch
      %424 = sbr.rel (%p421) target = $region76
    $region75: #{_lambda_.6} parent=5 // pred_region
      %s425 = ssub.s32 %s20, 1
      %p426 = scmp.lt.s32.totalorder %s25, 4
      %s427 = scalar_select %p426, %s25, 4
      %s428 = smul.addr %s427, 2
      %s429 = smul.addr %s428, 8
      %s430 = scalar_lea.vmem %s0, %s429
      %p431 = pneg %p46
      %p432 = pneg %p43
      %p433 = scmp.lt.s32.totalorder %s25, 4
      %s434 = scalar_select %p433, %s25, 4
      %s435 = scalar_lea.vmem %s1, %s434
      %p436 = pneg %p72
      %p437 = pneg %p69
      %p438 = pneg %p93
      %p439 = pneg %p90
      %p440 = pneg %p114
      %p441 = pneg %p111
      %p442 = pneg %p135
      %p443 = pneg %p132
      %p444 = pneg %p156
      %p445 = pneg %p153
      %p446 = pneg %p177
      %p447 = pneg %p174
      %p448 = pneg %p198
      %p449 = pneg %p195
      %p450 = pneg %p219
      %p451 = pneg %p216
      %p452 = pneg %p240
      %p453 = pneg %p237
      %p454 = pneg %p261
      %p455 = pneg %p258
      %p456 = pneg %p282
      %p457 = pneg %p279
      %p458 = pneg %p303
      %p459 = pneg %p300
      %p460 = pneg %p324
      %p461 = pneg %p321
      %p462 = pneg %p350
      %p463 = pneg %p347
      %p464 = scmp.lt.s32.totalorder %s25, 4
      %s465 = scalar_select %p464, %s25, 4
      %s466 = smul.addr %s465, 2
      %s467 = smul.addr %s466, 8
      %s468 = scalar_lea.vmem %s14, %s467
      %p469 = scmp.lt.s32.totalorder %s25, 4
      %s470 = scalar_select %p469, %s25, 4
      %s471 = smul.addr %s470, 2
      %s472 = smul.addr %s471, 8
      %s473 = scalar_lea.vmem %s0, %s472
      %p474 = scmp.lt.s32.totalorder %s25, 4
      %s475 = scalar_select %p474, %s25, 4
      %s476 = scalar_lea.vmem %s1, %s475
      %p477 = scmp.lt.s32.totalorder %s25, 4
      %s478 = scalar_select %p477, %s25, 4
      %s479 = smul.addr %s478, 2
      %s480 = smul.addr %s479, 8
      %s481 = scalar_lea.vmem %s14, %s480
      %v483 = vld [vmem:[%s473] sm:$0xff]
      %v484 = vld [vmem:[%s473 + $0x8] sm:$0xff]
      %v485 = vld [vmem:[%s476] sm:$0x1]
      %v486 = vpack.c.bf16 %v484, %v483
      %v487 = vld [vmem:[%s2] sm:$0xff]
      %v488 = vld [vmem:[%s2 + $0x8] sm:$0xf]
      %v489 = vld [vmem:[%s2 + $0xc] sm:$0xff]
      %v490 = vld [vmem:[%s2 + $0x14] sm:$0xf]
      %v491 = vld [vmem:[%s2 + $0x18] sm:$0xff]
      %v492 = vld [vmem:[%s2 + $0x20] sm:$0xf]
      %v493 = vld [vmem:[%s2 + $0x24] sm:$0xff]
      %v494 = vld [vmem:[%s2 + $0x2c] sm:$0xf]
      %v495 = vld [vmem:[%s2 + $0x30] sm:$0xff]
      %v496 = vld [vmem:[%s2 + $0x38] sm:$0xf]
      %v497 = vld [vmem:[%s2 + $0x3c] sm:$0xff]
      %v498 = vld [vmem:[%s2 + $0x44] sm:$0xf]
      %v499 = vld [vmem:[%s2 + $0x48] sm:$0xff]
      %v500 = vld [vmem:[%s2 + $0x50] sm:$0xf]
      %v501 = vld [vmem:[%s2 + $0x54] sm:$0xff]
      %v502 = vld [vmem:[%s2 + $0x5c] sm:$0xf]
      %v503 = vld [vmem:[%s2 + $0x60] sm:$0xff]
      %v504 = vld [vmem:[%s2 + $0x68] sm:$0xf]
      %v505 = vld [vmem:[%s2 + $0x6c] sm:$0xff]
      %v506 = vld [vmem:[%s2 + $0x74] sm:$0xf]
      %v507 = vld [vmem:[%s2 + $0x78] sm:$0xff]
      %v508 = vld [vmem:[%s2 + $0x80] sm:$0xf]
      %v509 = vld [vmem:[%s2 + $0x84] sm:$0xff]
      %v510 = vld [vmem:[%s2 + $0x8c] sm:$0xf]
      %v511 = vld [vmem:[%s2 + $0x90] sm:$0xff]
      %v512 = vld [vmem:[%s2 + $0x98] sm:$0xf]
      %v513 = vld [vmem:[%s2 + $0x9c] sm:$0xff]
      %v514 = vld [vmem:[%s2 + $0xa4] sm:$0xf]
      %v515 = vld [vmem:[%s2 + $0xa8] sm:$0xff]
      %v516 = vld [vmem:[%s2 + $0xb0] sm:$0xf]
      %v517 = vld [vmem:[%s2 + $0xb4] sm:$0xff]
      %v518 = vld [vmem:[%s2 + $0xbc] sm:$0xf]
      %v519 = vld [vmem:[%s3] sm:$0x7]
      %v521 = vperm.slane %v519, 0
      %v522 = vperm.slane %v519, 1
      %v523 = vperm.slane %v519, 2
      %v559 = vunpack.c.l.b16 %v487
      %v560 = vunpack.c.h.b16 %v487
      %v561 = vunpack.c.l.b16 %v488
      %v562 = vunpack.c.l.b16 %v489
      %v563 = vunpack.c.h.b16 %v489
      %v564 = vunpack.c.l.b16 %v490
      %v565 = vunpack.c.l.b16 %v491
      %v566 = vunpack.c.h.b16 %v491
      %v567 = vunpack.c.l.b16 %v492
      %v568 = vunpack.c.l.b16 %v493
      %v569 = vunpack.c.h.b16 %v493
      %v570 = vunpack.c.l.b16 %v494
      %v571 = vunpack.c.l.b16 %v495
      %v572 = vunpack.c.h.b16 %v495
      %v573 = vunpack.c.l.b16 %v496
      %v574 = vunpack.c.l.b16 %v497
      %v575 = vunpack.c.h.b16 %v497
      %v576 = vunpack.c.l.b16 %v498
      %v577 = vunpack.c.l.b16 %v499
      %v578 = vunpack.c.h.b16 %v499
      %v579 = vunpack.c.l.b16 %v500
      %v580 = vunpack.c.l.b16 %v501
      %v581 = vunpack.c.h.b16 %v501
      %v582 = vunpack.c.l.b16 %v502
      %v583 = vunpack.c.l.b16 %v503
      %v584 = vunpack.c.h.b16 %v503
      %v585 = vunpack.c.l.b16 %v504
      %v586 = vunpack.c.l.b16 %v505
      %v587 = vunpack.c.h.b16 %v505
      %v588 = vunpack.c.l.b16 %v506
      %v589 = vunpack.c.l.b16 %v507
      %v590 = vunpack.c.h.b16 %v507
      %v591 = vunpack.c.l.b16 %v508
      %v592 = vunpack.c.l.b16 %v509
      %v593 = vunpack.c.h.b16 %v509
      %v594 = vunpack.c.l.b16 %v510
      %v595 = vunpack.c.l.b16 %v511
      %v596 = vunpack.c.h.b16 %v511
      %v597 = vunpack.c.l.b16 %v512
      %v598 = vunpack.c.l.b16 %v513
      %v599 = vunpack.c.h.b16 %v513
      %v600 = vunpack.c.l.b16 %v514
      %v601 = vunpack.c.l.b16 %v515
      %v602 = vunpack.c.h.b16 %v515
      %v603 = vunpack.c.l.b16 %v516
      %v604 = vunpack.c.l.b16 %v517
      %v605 = vunpack.c.h.b16 %v517
      %v606 = vunpack.c.l.b16 %v518
      %v607 = vpack.c.b16 %v562, %v559
      %v608 = vpack.c.b16 %v563, %v560
      %v609 = vpack.c.b16 %v564, %v561
      %v610 = vpack.c.b16 %v568, %v565
      %v611 = vpack.c.b16 %v569, %v566
      %v612 = vpack.c.b16 %v570, %v567
      %v613 = vpack.c.b16 %v574, %v571
      %v614 = vpack.c.b16 %v575, %v572
      %v615 = vpack.c.b16 %v576, %v573
      %v616 = vpack.c.b16 %v580, %v577
      %v617 = vpack.c.b16 %v581, %v578
      %v618 = vpack.c.b16 %v582, %v579
      %v619 = vpack.c.b16 %v586, %v583
      %v620 = vpack.c.b16 %v587, %v584
      %v621 = vpack.c.b16 %v588, %v585
      %v622 = vpack.c.b16 %v592, %v589
      %v623 = vpack.c.b16 %v593, %v590
      %v624 = vpack.c.b16 %v594, %v591
      %v625 = vpack.c.b16 %v598, %v595
      %v626 = vpack.c.b16 %v599, %v596
      %v627 = vpack.c.b16 %v600, %v597
      %v628 = vpack.c.b16 %v604, %v601
      %v629 = vpack.c.b16 %v605, %v602
      %v630 = vpack.c.b16 %v606, %v603
      %655 = vmatpush.bf16.msra.mxu0 %v628
      %656 = vmatpush.bf16.msra.mxu0 %v625
      %657 = vmatpush.bf16.msra.mxu0 %v622
      %658 = vmatpush.bf16.msra.mxu0 %v619
      %659 = vmatpush.bf16.msra.mxu0 %v616
      %660 = vmatpush.bf16.msra.mxu0 %v613
      %661 = vmatpush.bf16.msra.mxu0 %v610
      %662 = vmatpush.bf16.msra.mxu0 %v607
      %663 = vmatmul.bf16.gmra.mxu0 %v486
      %v664 = vpop.f32.mrf.mxu0
      %v665 = vadd.f32 %v521, %v664
      %v666 = vpop.f32.mrf.mxu0
      %v667 = vadd.f32 %v521, %v666
      %668 = vdwg.mxu0
      %669 = vmatpush.bf16.msra.mxu0 %v629
      %670 = vmatpush.bf16.msra.mxu0 %v626
      %671 = vmatpush.bf16.msra.mxu0 %v623
      %672 = vmatpush.bf16.msra.mxu0 %v620
      %673 = vmatpush.bf16.msra.mxu0 %v617
      %674 = vmatpush.bf16.msra.mxu0 %v614
      %675 = vmatpush.bf16.msra.mxu0 %v611
      %676 = vmatpush.bf16.msra.mxu0 %v608
      %677 = vmatmul.bf16.gmra.mxu0 %v486
      %v678 = vpop.f32.mrf.mxu0
      %v679 = vadd.f32 %v522, %v678
      %v680 = vpop.f32.mrf.mxu0
      %v681 = vadd.f32 %v522, %v680
      %682 = vdwg.mxu0
      %683 = vmatpush.bf16.msra.mxu0 %v630
      %684 = vmatpush.bf16.msra.mxu0 %v627
      %685 = vmatpush.bf16.msra.mxu0 %v624
      %686 = vmatpush.bf16.msra.mxu0 %v621
      %687 = vmatpush.bf16.msra.mxu0 %v618
      %688 = vmatpush.bf16.msra.mxu0 %v615
      %689 = vmatpush.bf16.msra.mxu0 %v612
      %690 = vmatpush.bf16.msra.mxu0 %v609
      %691 = vmatmul.bf16.gmra.mxu0 %v486
      %v692 = vpop.f32.mrf.mxu0
      %v693 = vadd.f32 %v523, %v692
      %v694 = vpop.f32.mrf.mxu0
      %v695 = vadd.f32 %v523, %v694
      %696 = vdwg.mxu0
      %v697 = vpack.c.bf16 %v667, %v665
      %v698 = vpack.c.bf16 %v681, %v679
      %v699 = vpack.c.bf16 %v695, %v693
      %vm700 = vcmask 130048
      %v702 = vsel %vm700, %v697, 0
      %v705 = vsel %vm700, %v698, 0
      %707 = vmatpush.bf16.xpose.msra.mxu0 0
      %708 = vmatpush.bf16.xpose.msra.mxu0 0
      %709 = vmatpush.bf16.xpose.msra.mxu0 0
      %710 = vmatpush.bf16.xpose.msra.mxu0 0
      %711 = vmatpush.bf16.xpose.msra.mxu0 0
      %712 = vmatpush.bf16.xpose.msra.mxu0 0
      %713 = vmatpush.bf16.xpose.msra.mxu0 0
      %714 = vmatpush.bf16.xpose.msra.mxu0 %v705
      %715 = vmatmul.bf16.gmra.mxu0 %v702
      %v716 = vpop.f32.mrf.mxu0
      %v717 = vadd.f32 0.0, %v716
      %v718 = vpop.f32.mrf.mxu0
      %v719 = vadd.f32 0.0, %v718
      %720 = vdwg.mxu0
      %v721 = vmul.f32 %v717, 0.25
      %v722 = vmul.f32 %v719, 0.25
      %v724 = vperm.slane %v485, 0
      %v726 = vadd.f32 %v721, %v724
      %v727 = vadd.f32 %v722, %v724
      %v728 = vsel %vm700, %v726, -inf
      %729 = vmax.xlane.f32.xlu0 %v728
      %v730 = vpop.xlane.xlu0 %729
      %v731 = vsel %vm700, %v727, -inf
      %732 = vmax.xlane.f32.xlu0 %v731
      %v733 = vpop.xlane.xlu0 %732
      %v734 = vsub.f32 %v726, %v730
      %v735 = vsub.f32 %v727, %v733
      %v736 = vmul.f32 %v734, 1.442695
      %v737 = vpow.pop %v736
      %v738 = vmul.f32 %v735, 1.442695
      %v739 = vpow.pop %v738
      %v740 = vsel %vm700, %v737, 0.0
      %741 = vadd.xlane.f32.xlu0 %v740
      %v742 = vpop.xlane.xlu0 %741
      %v743 = vsel %vm700, %v739, 0.0
      %744 = vadd.xlane.f32.xlu0 %v743
      %v745 = vpop.xlane.xlu0 %744
      %v746 = vrcp.pop %v742
      %v747 = vrcp.pop %v745
      %v748 = vmul.f32 %v737, %v746
      %v749 = vmul.f32 %v739, %v747
      %v750 = vpack.c.bf16 %v749, %v748
      %v752 = vsel %vm700, %v750, 0
      %754 = vmatpush.bf16.msra.mxu0 0
      %755 = vmatpush.bf16.msra.mxu0 0
      %756 = vmatpush.bf16.msra.mxu0 0
      %757 = vmatpush.bf16.msra.mxu0 0
      %758 = vmatpush.bf16.msra.mxu0 0
      %759 = vmatpush.bf16.msra.mxu0 0
      %760 = vmatpush.bf16.msra.mxu0 0
      %761 = vmatpush.bf16.msra.mxu0 %v699
      %762 = vmatmul.bf16.gmra.mxu0 %v752
      %v763 = vpop.f32.mrf.mxu0
      %v764 = vadd.f32 0.0, %v763
      %v765 = vpop.f32.mrf.mxu0
      %v766 = vadd.f32 0.0, %v765
      %767 = vdwg.mxu0
      %769 = vrot.lane.b32.xlu0 %v697, 112
      %v770 = vpop.permute.xlu0 %769
      %772 = vrot.lane.b32.xlu0 %v698, 112
      %v773 = vpop.permute.xlu0 %772
      %v775 = vsel %vm700, %v770, 0
      %v778 = vsel %vm700, %v773, 0
      %780 = vmatpush.bf16.xpose.msra.mxu0 0
      %781 = vmatpush.bf16.xpose.msra.mxu0 0
      %782 = vmatpush.bf16.xpose.msra.mxu0 0
      %783 = vmatpush.bf16.xpose.msra.mxu0 0
      %784 = vmatpush.bf16.xpose.msra.mxu0 0
      %785 = vmatpush.bf16.xpose.msra.mxu0 0
      %786 = vmatpush.bf16.xpose.msra.mxu0 0
      %787 = vmatpush.bf16.xpose.msra.mxu0 %v778
      %788 = vmatmul.bf16.gmra.mxu0 %v775
      %v789 = vpop.f32.mrf.mxu0
      %v790 = vadd.f32 0.0, %v789
      %v791 = vpop.f32.mrf.mxu0
      %v792 = vadd.f32 0.0, %v791
      %793 = vdwg.mxu0
      %v794 = vmul.f32 %v790, 0.25
      %v795 = vmul.f32 %v792, 0.25
      %v796 = vadd.f32 %v794, %v724
      %v797 = vadd.f32 %v795, %v724
      %v798 = vsel %vm700, %v796, -inf
      %799 = vmax.xlane.f32.xlu0 %v798
      %v800 = vpop.xlane.xlu0 %799
      %v801 = vsel %vm700, %v797, -inf
      %802 = vmax.xlane.f32.xlu0 %v801
      %v803 = vpop.xlane.xlu0 %802
      %v804 = vsub.f32 %v796, %v800
      %v805 = vsub.f32 %v797, %v803
      %v806 = vmul.f32 %v804, 1.442695
      %v807 = vpow.pop %v806
      %v808 = vmul.f32 %v805, 1.442695
      %v809 = vpow.pop %v808
      %v810 = vsel %vm700, %v807, 0.0
      %811 = vadd.xlane.f32.xlu0 %v810
      %v812 = vpop.xlane.xlu0 %811
      %v813 = vsel %vm700, %v809, 0.0
      %814 = vadd.xlane.f32.xlu0 %v813
      %v815 = vpop.xlane.xlu0 %814
      %v816 = vrcp.pop %v812
      %v817 = vrcp.pop %v815
      %v818 = vmul.f32 %v807, %v816
      %v819 = vmul.f32 %v809, %v817
      %v820 = vpack.c.bf16 %v819, %v818
      %822 = vrot.lane.b32.xlu0 %v699, 112
      %v823 = vpop.permute.xlu0 %822
      %v826 = vsel %vm700, %v820, 0
      %828 = vmatpush.bf16.msra.mxu0 0
      %829 = vmatpush.bf16.msra.mxu0 0
      %830 = vmatpush.bf16.msra.mxu0 0
      %831 = vmatpush.bf16.msra.mxu0 0
      %832 = vmatpush.bf16.msra.mxu0 0
      %833 = vmatpush.bf16.msra.mxu0 0
      %834 = vmatpush.bf16.msra.mxu0 0
      %835 = vmatpush.bf16.msra.mxu0 %v823
      %836 = vmatmul.bf16.gmra.mxu0 %v826
      %v837 = vpop.f32.mrf.mxu0
      %v838 = vadd.f32 0.0, %v837
      %v839 = vpop.f32.mrf.mxu0
      %v840 = vadd.f32 0.0, %v839
      %841 = vdwg.mxu0
      %842 = vrot.lane.b32.xlu0 %v697, 96
      %v843 = vpop.permute.xlu0 %842
      %844 = vrot.lane.b32.xlu0 %v698, 96
      %v845 = vpop.permute.xlu0 %844
      %v847 = vsel %vm700, %v843, 0
      %v850 = vsel %vm700, %v845, 0
      %852 = vmatpush.bf16.xpose.msra.mxu0 0
      %853 = vmatpush.bf16.xpose.msra.mxu0 0
      %854 = vmatpush.bf16.xpose.msra.mxu0 0
      %855 = vmatpush.bf16.xpose.msra.mxu0 0
      %856 = vmatpush.bf16.xpose.msra.mxu0 0
      %857 = vmatpush.bf16.xpose.msra.mxu0 0
      %858 = vmatpush.bf16.xpose.msra.mxu0 0
      %859 = vmatpush.bf16.xpose.msra.mxu0 %v850
      %860 = vmatmul.bf16.gmra.mxu0 %v847
      %v861 = vpop.f32.mrf.mxu0
      %v862 = vadd.f32 0.0, %v861
      %v863 = vpop.f32.mrf.mxu0
      %v864 = vadd.f32 0.0, %v863
      %865 = vdwg.mxu0
      %v866 = vmul.f32 %v862, 0.25
      %v867 = vmul.f32 %v864, 0.25
      %v868 = vadd.f32 %v866, %v724
      %v869 = vadd.f32 %v867, %v724
      %v870 = vsel %vm700, %v868, -inf
      %871 = vmax.xlane.f32.xlu0 %v870
      %v872 = vpop.xlane.xlu0 %871
      %v873 = vsel %vm700, %v869, -inf
      %874 = vmax.xlane.f32.xlu0 %v873
      %v875 = vpop.xlane.xlu0 %874
      %v876 = vsub.f32 %v868, %v872
      %v877 = vsub.f32 %v869, %v875
      %v878 = vmul.f32 %v876, 1.442695
      %v879 = vpow.pop %v878
      %v880 = vmul.f32 %v877, 1.442695
      %v881 = vpow.pop %v880
      %v882 = vsel %vm700, %v879, 0.0
      %883 = vadd.xlane.f32.xlu0 %v882
      %v884 = vpop.xlane.xlu0 %883
      %v885 = vsel %vm700, %v881, 0.0
      %886 = vadd.xlane.f32.xlu0 %v885
      %v887 = vpop.xlane.xlu0 %886
      %v888 = vrcp.pop %v884
      %v889 = vrcp.pop %v887
      %v890 = vmul.f32 %v879, %v888
      %v891 = vmul.f32 %v881, %v889
      %v892 = vpack.c.bf16 %v891, %v890
      %893 = vrot.lane.b32.xlu0 %v699, 96
      %v894 = vpop.permute.xlu0 %893
      %v897 = vsel %vm700, %v892, 0
      %899 = vmatpush.bf16.msra.mxu0 0
      %900 = vmatpush.bf16.msra.mxu0 0
      %901 = vmatpush.bf16.msra.mxu0 0
      %902 = vmatpush.bf16.msra.mxu0 0
      %903 = vmatpush.bf16.msra.mxu0 0
      %904 = vmatpush.bf16.msra.mxu0 0
      %905 = vmatpush.bf16.msra.mxu0 0
      %906 = vmatpush.bf16.msra.mxu0 %v894
      %907 = vmatmul.bf16.gmra.mxu0 %v897
      %v908 = vpop.f32.mrf.mxu0
      %v909 = vadd.f32 0.0, %v908
      %v910 = vpop.f32.mrf.mxu0
      %v911 = vadd.f32 0.0, %v910
      %912 = vdwg.mxu0
      %913 = vrot.lane.b32.xlu0 %v697, 80
      %v914 = vpop.permute.xlu0 %913
      %915 = vrot.lane.b32.xlu0 %v698, 80
      %v916 = vpop.permute.xlu0 %915
      %v918 = vsel %vm700, %v914, 0
      %v921 = vsel %vm700, %v916, 0
      %923 = vmatpush.bf16.xpose.msra.mxu0 0
      %924 = vmatpush.bf16.xpose.msra.mxu0 0
      %925 = vmatpush.bf16.xpose.msra.mxu0 0
      %926 = vmatpush.bf16.xpose.msra.mxu0 0
      %927 = vmatpush.bf16.xpose.msra.mxu0 0
      %928 = vmatpush.bf16.xpose.msra.mxu0 0
      %929 = vmatpush.bf16.xpose.msra.mxu0 0
      %930 = vmatpush.bf16.xpose.msra.mxu0 %v921
      %931 = vmatmul.bf16.gmra.mxu0 %v918
      %v932 = vpop.f32.mrf.mxu0
      %v933 = vadd.f32 0.0, %v932
      %v934 = vpop.f32.mrf.mxu0
      %v935 = vadd.f32 0.0, %v934
      %936 = vdwg.mxu0
      %v937 = vmul.f32 %v933, 0.25
      %v938 = vmul.f32 %v935, 0.25
      %v939 = vadd.f32 %v937, %v724
      %v940 = vadd.f32 %v938, %v724
      %v941 = vsel %vm700, %v939, -inf
      %942 = vmax.xlane.f32.xlu0 %v941
      %v943 = vpop.xlane.xlu0 %942
      %v944 = vsel %vm700, %v940, -inf
      %945 = vmax.xlane.f32.xlu0 %v944
      %v946 = vpop.xlane.xlu0 %945
      %v947 = vsub.f32 %v939, %v943
      %v948 = vsub.f32 %v940, %v946
      %v949 = vmul.f32 %v947, 1.442695
      %v950 = vpow.pop %v949
      %v951 = vmul.f32 %v948, 1.442695
      %v952 = vpow.pop %v951
      %v953 = vsel %vm700, %v950, 0.0
      %954 = vadd.xlane.f32.xlu0 %v953
      %v955 = vpop.xlane.xlu0 %954
      %v956 = vsel %vm700, %v952, 0.0
      %957 = vadd.xlane.f32.xlu0 %v956
      %v958 = vpop.xlane.xlu0 %957
      %v959 = vrcp.pop %v955
      %v960 = vrcp.pop %v958
      %v961 = vmul.f32 %v950, %v959
      %v962 = vmul.f32 %v952, %v960
      %v963 = vpack.c.bf16 %v962, %v961
      %964 = vrot.lane.b32.xlu0 %v699, 80
      %v965 = vpop.permute.xlu0 %964
      %v968 = vsel %vm700, %v963, 0
      %970 = vmatpush.bf16.msra.mxu0 0
      %971 = vmatpush.bf16.msra.mxu0 0
      %972 = vmatpush.bf16.msra.mxu0 0
      %973 = vmatpush.bf16.msra.mxu0 0
      %974 = vmatpush.bf16.msra.mxu0 0
      %975 = vmatpush.bf16.msra.mxu0 0
      %976 = vmatpush.bf16.msra.mxu0 0
      %977 = vmatpush.bf16.msra.mxu0 %v965
      %978 = vmatmul.bf16.gmra.mxu0 %v968
      %v979 = vpop.f32.mrf.mxu0
      %v980 = vadd.f32 0.0, %v979
      %v981 = vpop.f32.mrf.mxu0
      %v982 = vadd.f32 0.0, %v981
      %983 = vdwg.mxu0
      %986 = vrot.lane.b32.xlu0 %v838, 16
      %v987 = vpop.permute.xlu0 %986
      %988 = vrot.lane.b32.xlu0 %v840, 16
      %v989 = vpop.permute.xlu0 %988
      %994 = vrot.lane.b32.xlu0 %v909, 32
      %v995 = vpop.permute.xlu0 %994
      %996 = vrot.lane.b32.xlu0 %v911, 32
      %v997 = vpop.permute.xlu0 %996
      %1002 = vrot.lane.b32.xlu0 %v980, 48
      %v1003 = vpop.permute.xlu0 %1002
      %1004 = vrot.lane.b32.xlu0 %v982, 48
      %v1005 = vpop.permute.xlu0 %1004
      %v1008 = vsel %vm700, %v764, %v987
      %v1009 = vsel %vm700, %v766, %v989
      %vm1010 = vcmask 261120
      %v1011 = vsel %vm1010, %v1008, %v995
      %v1012 = vsel %vm1010, %v1009, %v997
      %vm1013 = vcmask 392192
      %v1014 = vsel %vm1013, %v1011, %v1003
      %v1015 = vsel %vm1013, %v1012, %v1005
      %v1016 = vpack.c.bf16 %v1015, %v1014
      %v1017 = vld [vmem:[%s4] sm:$0xf]
      %v1018 = vld [vmem:[%s4 + $0x4] sm:$0xf]
      %v1019 = vld [vmem:[%s4 + $0x8] sm:$0xf]
      %v1020 = vld [vmem:[%s4 + $0xc] sm:$0xf]
      %v1021 = vld [vmem:[%s4 + $0x10] sm:$0xf]
      %v1022 = vld [vmem:[%s4 + $0x14] sm:$0xf]
      %v1023 = vld [vmem:[%s4 + $0x18] sm:$0xf]
      %v1024 = vld [vmem:[%s4 + $0x1c] sm:$0xf]
      %v1025 = vld [vmem:[%s5] sm:$0x1]
      %v1027 = vperm.slane %v1025, 0
      %v1037 = vunpack.c.l.b16 %v1017
      %v1038 = vunpack.c.l.b16 %v1018
      %v1039 = vunpack.c.l.b16 %v1019
      %v1040 = vunpack.c.l.b16 %v1020
      %v1041 = vunpack.c.l.b16 %v1021
      %v1042 = vunpack.c.l.b16 %v1022
      %v1043 = vunpack.c.l.b16 %v1023
      %v1044 = vunpack.c.l.b16 %v1024
      %v1045 = vpack.c.b16 %v1038, %v1037
      %v1046 = vpack.c.b16 %v1040, %v1039
      %v1047 = vpack.c.b16 %v1042, %v1041
      %v1048 = vpack.c.b16 %v1044, %v1043
      %vm1053 = vcmask 523264
      %v1055 = vsel %vm1053, %v1016, 0
      %1057 = vmatpush.bf16.msra.mxu0 0
      %1058 = vmatpush.bf16.msra.mxu0 0
      %1059 = vmatpush.bf16.msra.mxu0 0
      %1060 = vmatpush.bf16.msra.mxu0 0
      %1061 = vmatpush.bf16.msra.mxu0 %v1048
      %1062 = vmatpush.bf16.msra.mxu0 %v1047
      %1063 = vmatpush.bf16.msra.mxu0 %v1046
      %1064 = vmatpush.bf16.msra.mxu0 %v1045
      %1065 = vmatmul.bf16.gmra.mxu0 %v1055
      %v1066 = vpop.f32.mrf.mxu0
      %v1067 = vadd.f32 %v1027, %v1066
      %v1068 = vpop.f32.mrf.mxu0
      %v1069 = vadd.f32 %v1027, %v1068
      %1070 = vdwg.mxu0
      %v1071 = vadd.f32 %v1067, %v483
      %v1072 = vadd.f32 %v1069, %v484
      %v1073 = vld [vmem:[%s6] sm:$0x1]
      %v1074 = vld [vmem:[%s7] sm:$0x1]
      %1075 = vadd.xlane.f32.xlu0 %v1071
      %v1076 = vpop.xlane.xlu0 %1075
      %1077 = vadd.xlane.f32.xlu0 %v1072
      %v1078 = vpop.xlane.xlu0 %1077
      %v1079 = vmul.f32 %v1076, 0.015625
      %v1080 = vmul.f32 %v1078, 0.015625
      %v1081 = vmul.f32 %v1071, %v1071
      %v1082 = vmul.f32 %v1072, %v1072
      %1083 = vadd.xlane.f32.xlu0 %v1081
      %v1084 = vpop.xlane.xlu0 %1083
      %1085 = vadd.xlane.f32.xlu0 %v1082
      %v1086 = vpop.xlane.xlu0 %1085
      %v1087 = vmul.f32 %v1084, 0.015625
      %v1088 = vmul.f32 %v1086, 0.015625
      %v1089 = vmul.f32 %v1079, %v1079
      %v1090 = vmul.f32 %v1080, %v1080
      %v1091 = vsub.f32 %v1087, %v1089
      %v1092 = vsub.f32 %v1088, %v1090
      %v1093 = vmax.f32 %v1091, 0.0
      %v1094 = vmax.f32 %v1092, 0.0
      %v1095 = vadd.f32 %v1093, 1e-12
      %v1096 = vadd.f32 %v1094, 1e-12
      %v1097 = vrsqrt.pop %v1095
      %v1098 = vmul.f32 %v1097, %v1095
      %v1099 = vmul.f32 %v1098, %v1097
      %v1100 = vmul.f32 0.5, %v1099
      %v1101 = vsub.f32 1.5, %v1100
      %v1102 = vmul.f32 %v1097, %v1101
      %vm1103 = vweird.f32 %v1095
      %vm1104 = vweird.f32 %v1097
      %vm1105 = vmor %vm1103, %vm1104
      %v1106 = vsel %vm1105, %v1097, %v1102
      %v1107 = vrsqrt.pop %v1096
      %v1108 = vmul.f32 %v1107, %v1096
      %v1109 = vmul.f32 %v1108, %v1107
      %v1110 = vmul.f32 0.5, %v1109
      %v1111 = vsub.f32 1.5, %v1110
      %v1112 = vmul.f32 %v1107, %v1111
      %vm1113 = vweird.f32 %v1096
      %vm1114 = vweird.f32 %v1107
      %vm1115 = vmor %vm1113, %vm1114
      %v1116 = vsel %vm1115, %v1107, %v1112
      %v1117 = vsub.f32 %v1071, %v1079
      %v1118 = vsub.f32 %v1072, %v1080
      %v1119 = vmul.f32 %v1117, %v1106
      %v1120 = vmul.f32 %v1118, %v1116
      %v1122 = vperm.slane %v1073, 0
      %v1124 = vmul.f32 %v1119, %v1122
      %v1125 = vmul.f32 %v1120, %v1122
      %v1127 = vperm.slane %v1074, 0
      %v1129 = vadd.f32 %v1124, %v1127
      %v1130 = vadd.f32 %v1125, %v1127
      %v1131 = vpack.c.bf16 %v1130, %v1129
      %v1132 = vld [vmem:[%s8] sm:$0xff]
      %v1133 = vld [vmem:[%s8 + $0x8] sm:$0xff]
      %v1134 = vld [vmem:[%s8 + $0x10] sm:$0xff]
      %v1135 = vld [vmem:[%s8 + $0x18] sm:$0xff]
      %v1136 = vld [vmem:[%s8 + $0x20] sm:$0xff]
      %v1137 = vld [vmem:[%s8 + $0x28] sm:$0xff]
      %v1138 = vld [vmem:[%s8 + $0x30] sm:$0xff]
      %v1139 = vld [vmem:[%s8 + $0x38] sm:$0xff]
      %v1140 = vld [vmem:[%s8 + $0x40] sm:$0xff]
      %v1141 = vld [vmem:[%s8 + $0x48] sm:$0xff]
      %v1142 = vld [vmem:[%s8 + $0x50] sm:$0xff]
      %v1143 = vld [vmem:[%s8 + $0x58] sm:$0xff]
      %v1144 = vld [vmem:[%s8 + $0x60] sm:$0xff]
      %v1145 = vld [vmem:[%s8 + $0x68] sm:$0xff]
      %v1146 = vld [vmem:[%s8 + $0x70] sm:$0xff]
      %v1147 = vld [vmem:[%s8 + $0x78] sm:$0xff]
      %v1148 = vld [vmem:[%s9] sm:$0x3]
      %v1150 = vperm.slane %v1148, 0
      %v1151 = vperm.slane %v1148, 1
      %v1170 = vunpack.c.l.b16 %v1132
      %v1171 = vunpack.c.h.b16 %v1132
      %v1172 = vunpack.c.l.b16 %v1133
      %v1173 = vunpack.c.h.b16 %v1133
      %v1174 = vunpack.c.l.b16 %v1134
      %v1175 = vunpack.c.h.b16 %v1134
      %v1176 = vunpack.c.l.b16 %v1135
      %v1177 = vunpack.c.h.b16 %v1135
      %v1178 = vunpack.c.l.b16 %v1136
      %v1179 = vunpack.c.h.b16 %v1136
      %v1180 = vunpack.c.l.b16 %v1137
      %v1181 = vunpack.c.h.b16 %v1137
      %v1182 = vunpack.c.l.b16 %v1138
      %v1183 = vunpack.c.h.b16 %v1138
      %v1184 = vunpack.c.l.b16 %v1139
      %v1185 = vunpack.c.h.b16 %v1139
      %v1186 = vunpack.c.l.b16 %v1140
      %v1187 = vunpack.c.h.b16 %v1140
      %v1188 = vunpack.c.l.b16 %v1141
      %v1189 = vunpack.c.h.b16 %v1141
      %v1190 = vunpack.c.l.b16 %v1142
      %v1191 = vunpack.c.h.b16 %v1142
      %v1192 = vunpack.c.l.b16 %v1143
      %v1193 = vunpack.c.h.b16 %v1143
      %v1194 = vunpack.c.l.b16 %v1144
      %v1195 = vunpack.c.h.b16 %v1144
      %v1196 = vunpack.c.l.b16 %v1145
      %v1197 = vunpack.c.h.b16 %v1145
      %v1198 = vunpack.c.l.b16 %v1146
      %v1199 = vunpack.c.h.b16 %v1146
      %v1200 = vunpack.c.l.b16 %v1147
      %v1201 = vunpack.c.h.b16 %v1147
      %v1202 = vpack.c.b16 %v1172, %v1170
      %v1203 = vpack.c.b16 %v1173, %v1171
      %v1204 = vpack.c.b16 %v1176, %v1174
      %v1205 = vpack.c.b16 %v1177, %v1175
      %v1206 = vpack.c.b16 %v1180, %v1178
      %v1207 = vpack.c.b16 %v1181, %v1179
      %v1208 = vpack.c.b16 %v1184, %v1182
      %v1209 = vpack.c.b16 %v1185, %v1183
      %v1210 = vpack.c.b16 %v1188, %v1186
      %v1211 = vpack.c.b16 %v1189, %v1187
      %v1212 = vpack.c.b16 %v1192, %v1190
      %v1213 = vpack.c.b16 %v1193, %v1191
      %v1214 = vpack.c.b16 %v1196, %v1194
      %v1215 = vpack.c.b16 %v1197, %v1195
      %v1216 = vpack.c.b16 %v1200, %v1198
      %v1217 = vpack.c.b16 %v1201, %v1199
      %1234 = vmatpush.bf16.msra.mxu0 %v1216
      %1235 = vmatpush.bf16.msra.mxu0 %v1214
      %1236 = vmatpush.bf16.msra.mxu0 %v1212
      %1237 = vmatpush.bf16.msra.mxu0 %v1210
      %1238 = vmatpush.bf16.msra.mxu0 %v1208
      %1239 = vmatpush.bf16.msra.mxu0 %v1206
      %1240 = vmatpush.bf16.msra.mxu0 %v1204
      %1241 = vmatpush.bf16.msra.mxu0 %v1202
      %1242 = vmatmul.bf16.gmra.mxu0 %v1131
      %v1243 = vpop.f32.mrf.mxu0
      %v1244 = vadd.f32 %v1150, %v1243
      %v1245 = vpop.f32.mrf.mxu0
      %v1246 = vadd.f32 %v1150, %v1245
      %1247 = vdwg.mxu0
      %1248 = vmatpush.bf16.msra.mxu0 %v1217
      %1249 = vmatpush.bf16.msra.mxu0 %v1215
      %1250 = vmatpush.bf16.msra.mxu0 %v1213
      %1251 = vmatpush.bf16.msra.mxu0 %v1211
      %1252 = vmatpush.bf16.msra.mxu0 %v1209
      %1253 = vmatpush.bf16.msra.mxu0 %v1207
      %1254 = vmatpush.bf16.msra.mxu0 %v1205
      %1255 = vmatpush.bf16.msra.mxu0 %v1203
      %1256 = vmatmul.bf16.gmra.mxu0 %v1131
      %v1257 = vpop.f32.mrf.mxu0
      %v1258 = vadd.f32 %v1151, %v1257
      %v1259 = vpop.f32.mrf.mxu0
      %v1260 = vadd.f32 %v1151, %v1259
      %1261 = vdwg.mxu0
      %v1262 = vmul.f32 %v1244, %v1244
      %v1263 = vmul.f32 %v1258, %v1258
      %v1264 = vmul.f32 %v1246, %v1246
      %v1265 = vmul.f32 %v1260, %v1260
      %v1266 = vmul.f32 %v1244, %v1262
      %v1267 = vmul.f32 %v1258, %v1263
      %v1268 = vmul.f32 %v1246, %v1264
      %v1269 = vmul.f32 %v1260, %v1265
      %v1270 = vmul.f32 %v1266, 0.044715
      %v1271 = vmul.f32 %v1267, 0.044715
      %v1272 = vmul.f32 %v1268, 0.044715
      %v1273 = vmul.f32 %v1269, 0.044715
      %v1274 = vadd.f32 %v1244, %v1270
      %v1275 = vadd.f32 %v1258, %v1271
      %v1276 = vadd.f32 %v1246, %v1272
      %v1277 = vadd.f32 %v1260, %v1273
      %v1278 = vmul.f32 %v1274, 0.7978846
      %v1279 = vmul.f32 %v1275, 0.7978846
      %v1280 = vmul.f32 %v1276, 0.7978846
      %v1281 = vmul.f32 %v1277, 0.7978846
      %v1282 = vtanh.pop %v1278
      %v1283 = vtanh.pop %v1279
      %v1284 = vtanh.pop %v1280
      %v1285 = vtanh.pop %v1281
      %v1286 = vadd.f32 %v1282, 1.0
      %v1287 = vadd.f32 %v1283, 1.0
      %v1288 = vadd.f32 %v1284, 1.0
      %v1289 = vadd.f32 %v1285, 1.0
      %v1290 = vmul.f32 %v1286, 0.5
      %v1291 = vmul.f32 %v1287, 0.5
      %v1292 = vmul.f32 %v1288, 0.5
      %v1293 = vmul.f32 %v1289, 0.5
      %v1294 = vmul.f32 %v1244, %v1290
      %v1295 = vmul.f32 %v1258, %v1291
      %v1296 = vmul.f32 %v1246, %v1292
      %v1297 = vmul.f32 %v1260, %v1293
      %v1298 = vpack.c.bf16 %v1296, %v1294
      %v1299 = vpack.c.bf16 %v1297, %v1295
      %v1300 = vld [vmem:[%s10] sm:$0xf]
      %v1301 = vld [vmem:[%s10 + $0x4] sm:$0xf]
      %v1302 = vld [vmem:[%s10 + $0x8] sm:$0xf]
      %v1303 = vld [vmem:[%s10 + $0xc] sm:$0xf]
      %v1304 = vld [vmem:[%s10 + $0x10] sm:$0xf]
      %v1305 = vld [vmem:[%s10 + $0x14] sm:$0xf]
      %v1306 = vld [vmem:[%s10 + $0x18] sm:$0xf]
      %v1307 = vld [vmem:[%s10 + $0x1c] sm:$0xf]
      %v1308 = vld [vmem:[%s10 + $0x20] sm:$0xf]
      %v1309 = vld [vmem:[%s10 + $0x24] sm:$0xf]
      %v1310 = vld [vmem:[%s10 + $0x28] sm:$0xf]
      %v1311 = vld [vmem:[%s10 + $0x2c] sm:$0xf]
      %v1312 = vld [vmem:[%s10 + $0x30] sm:$0xf]
      %v1313 = vld [vmem:[%s10 + $0x34] sm:$0xf]
      %v1314 = vld [vmem:[%s10 + $0x38] sm:$0xf]
      %v1315 = vld [vmem:[%s10 + $0x3c] sm:$0xf]
      %v1316 = vld [vmem:[%s10 + $0x40] sm:$0xf]
      %v1317 = vld [vmem:[%s10 + $0x44] sm:$0xf]
      %v1318 = vld [vmem:[%s10 + $0x48] sm:$0xf]
      %v1319 = vld [vmem:[%s10 + $0x4c] sm:$0xf]
      %v1320 = vld [vmem:[%s10 + $0x50] sm:$0xf]
      %v1321 = vld [vmem:[%s10 + $0x54] sm:$0xf]
      %v1322 = vld [vmem:[%s10 + $0x58] sm:$0xf]
      %v1323 = vld [vmem:[%s10 + $0x5c] sm:$0xf]
      %v1324 = vld [vmem:[%s10 + $0x60] sm:$0xf]
      %v1325 = vld [vmem:[%s10 + $0x64] sm:$0xf]
      %v1326 = vld [vmem:[%s10 + $0x68] sm:$0xf]
      %v1327 = vld [vmem:[%s10 + $0x6c] sm:$0xf]
      %v1328 = vld [vmem:[%s10 + $0x70] sm:$0xf]
      %v1329 = vld [vmem:[%s10 + $0x74] sm:$0xf]
      %v1330 = vld [vmem:[%s10 + $0x78] sm:$0xf]
      %v1331 = vld [vmem:[%s10 + $0x7c] sm:$0xf]
      %v1332 = vld [vmem:[%s11] sm:$0x1]
      %v1334 = vperm.slane %v1332, 0
      %v1368 = vunpack.c.l.b16 %v1300
      %v1369 = vunpack.c.l.b16 %v1301
      %v1370 = vunpack.c.l.b16 %v1302
      %v1371 = vunpack.c.l.b16 %v1303
      %v1372 = vunpack.c.l.b16 %v1304
      %v1373 = vunpack.c.l.b16 %v1305
      %v1374 = vunpack.c.l.b16 %v1306
      %v1375 = vunpack.c.l.b16 %v1307
      %v1376 = vunpack.c.l.b16 %v1308
      %v1377 = vunpack.c.l.b16 %v1309
      %v1378 = vunpack.c.l.b16 %v1310
      %v1379 = vunpack.c.l.b16 %v1311
      %v1380 = vunpack.c.l.b16 %v1312
      %v1381 = vunpack.c.l.b16 %v1313
      %v1382 = vunpack.c.l.b16 %v1314
      %v1383 = vunpack.c.l.b16 %v1315
      %v1384 = vunpack.c.l.b16 %v1316
      %v1385 = vunpack.c.l.b16 %v1317
      %v1386 = vunpack.c.l.b16 %v1318
      %v1387 = vunpack.c.l.b16 %v1319
      %v1388 = vunpack.c.l.b16 %v1320
      %v1389 = vunpack.c.l.b16 %v1321
      %v1390 = vunpack.c.l.b16 %v1322
      %v1391 = vunpack.c.l.b16 %v1323
      %v1392 = vunpack.c.l.b16 %v1324
      %v1393 = vunpack.c.l.b16 %v1325
      %v1394 = vunpack.c.l.b16 %v1326
      %v1395 = vunpack.c.l.b16 %v1327
      %v1396 = vunpack.c.l.b16 %v1328
      %v1397 = vunpack.c.l.b16 %v1329
      %v1398 = vunpack.c.l.b16 %v1330
      %v1399 = vunpack.c.l.b16 %v1331
      %v1400 = vpack.c.b16 %v1369, %v1368
      %v1401 = vpack.c.b16 %v1371, %v1370
      %v1402 = vpack.c.b16 %v1373, %v1372
      %v1403 = vpack.c.b16 %v1375, %v1374
      %v1404 = vpack.c.b16 %v1377, %v1376
      %v1405 = vpack.c.b16 %v1379, %v1378
      %v1406 = vpack.c.b16 %v1381, %v1380
      %v1407 = vpack.c.b16 %v1383, %v1382
      %v1408 = vpack.c.b16 %v1385, %v1384
      %v1409 = vpack.c.b16 %v1387, %v1386
      %v1410 = vpack.c.b16 %v1389, %v1388
      %v1411 = vpack.c.b16 %v1391, %v1390
      %v1412 = vpack.c.b16 %v1393, %v1392
      %v1413 = vpack.c.b16 %v1395, %v1394
      %v1414 = vpack.c.b16 %v1397, %v1396
      %v1415 = vpack.c.b16 %v1399, %v1398
      %1432 = vmatpush.bf16.msra.mxu0 %v1407
      %1433 = vmatpush.bf16.msra.mxu0 %v1406
      %1434 = vmatpush.bf16.msra.mxu0 %v1405
      %1435 = vmatpush.bf16.msra.mxu0 %v1404
      %1436 = vmatpush.bf16.msra.mxu0 %v1403
      %1437 = vmatpush.bf16.msra.mxu0 %v1402
      %1438 = vmatpush.bf16.msra.mxu0 %v1401
      %1439 = vmatpush.bf16.msra.mxu0 %v1400
      %1440 = vmatmul.bf16.gmra.mxu0 %v1298
      %v1441 = vpop.f32.mrf.mxu0
      %v1442 = vadd.f32 %v1334, %v1441
      %v1443 = vpop.f32.mrf.mxu0
      %v1444 = vadd.f32 %v1334, %v1443
      %1445 = vdwg.mxu0
      %1446 = vmatpush.bf16.msra.mxu0 %v1415
      %1447 = vmatpush.bf16.msra.mxu0 %v1414
      %1448 = vmatpush.bf16.msra.mxu0 %v1413
      %1449 = vmatpush.bf16.msra.mxu0 %v1412
      %1450 = vmatpush.bf16.msra.mxu0 %v1411
      %1451 = vmatpush.bf16.msra.mxu0 %v1410
      %1452 = vmatpush.bf16.msra.mxu0 %v1409
      %1453 = vmatpush.bf16.msra.mxu0 %v1408
      %1454 = vmatmul.bf16.gmra.mxu0 %v1299
      %v1455 = vpop.f32.mrf.mxu0
      %v1456 = vadd.f32 %v1442, %v1455
      %v1457 = vpop.f32.mrf.mxu0
      %v1458 = vadd.f32 %v1444, %v1457
      %1459 = vdwg.mxu0
      %v1460 = vadd.f32 %v1456, %v1129
      %v1461 = vadd.f32 %v1458, %v1130
      %v1462 = vld [vmem:[%s12] sm:$0x1]
      %v1463 = vld [vmem:[%s13] sm:$0x1]
      %1464 = vadd.xlane.f32.xlu0 %v1460
      %v1465 = vpop.xlane.xlu0 %1464
      %1466 = vadd.xlane.f32.xlu0 %v1461
      %v1467 = vpop.xlane.xlu0 %1466
      %v1468 = vmul.f32 %v1465, 0.015625
      %v1469 = vmul.f32 %v1467, 0.015625
      %v1470 = vmul.f32 %v1460, %v1460
      %v1471 = vmul.f32 %v1461, %v1461
      %1472 = vadd.xlane.f32.xlu0 %v1470
      %v1473 = vpop.xlane.xlu0 %1472
      %1474 = vadd.xlane.f32.xlu0 %v1471
      %v1475 = vpop.xlane.xlu0 %1474
      %v1476 = vmul.f32 %v1473, 0.015625
      %v1477 = vmul.f32 %v1475, 0.015625
      %v1478 = vmul.f32 %v1468, %v1468
      %v1479 = vmul.f32 %v1469, %v1469
      %v1480 = vsub.f32 %v1476, %v1478
      %v1481 = vsub.f32 %v1477, %v1479
      %v1482 = vmax.f32 %v1480, 0.0
      %v1483 = vmax.f32 %v1481, 0.0
      %v1484 = vadd.f32 %v1482, 1e-12
      %v1485 = vadd.f32 %v1483, 1e-12
      %v1486 = vrsqrt.pop %v1484
      %v1487 = vmul.f32 %v1486, %v1484
      %v1488 = vmul.f32 %v1487, %v1486
      %v1489 = vmul.f32 0.5, %v1488
      %v1490 = vsub.f32 1.5, %v1489
      %v1491 = vmul.f32 %v1486, %v1490
      %vm1492 = vweird.f32 %v1484
      %vm1493 = vweird.f32 %v1486
      %vm1494 = vmor %vm1492, %vm1493
      %v1495 = vsel %vm1494, %v1486, %v1491
      %v1496 = vrsqrt.pop %v1485
      %v1497 = vmul.f32 %v1496, %v1485
      %v1498 = vmul.f32 %v1497, %v1496
      %v1499 = vmul.f32 0.5, %v1498
      %v1500 = vsub.f32 1.5, %v1499
      %v1501 = vmul.f32 %v1496, %v1500
      %vm1502 = vweird.f32 %v1485
      %vm1503 = vweird.f32 %v1496
      %vm1504 = vmor %vm1502, %vm1503
      %v1505 = vsel %vm1504, %v1496, %v1501
      %v1506 = vsub.f32 %v1460, %v1468
      %v1507 = vsub.f32 %v1461, %v1469
      %v1508 = vmul.f32 %v1506, %v1495
      %v1509 = vmul.f32 %v1507, %v1505
      %v1511 = vperm.slane %v1462, 0
      %v1513 = vmul.f32 %v1508, %v1511
      %v1514 = vmul.f32 %v1509, %v1511
      %v1516 = vperm.slane %v1463, 0
      %v1518 = vadd.f32 %v1513, %v1516
      %v1519 = vadd.f32 %v1514, %v1516
      %1520 = vst [vmem:[%s481] sm:$0xff] %v1518
      %1521 = vst [vmem:[%s481 + $0x8] sm:$0xff] %v1519
      %p1522 = scmp.lt.s32.totalorder %s25, 4
      %s1523 = scalar_select %p1522, %s25, 4
      %s1524 = smul.addr %s1523, 2
      %s1525 = smul.addr %s1524, 8
      %s1526 = scalar_lea.vmem %s14, %s1525
      // Predicated region
      $region77: #{_lambda_.6} parent=75 // pred_check
        %p1527 = pneg %p347
      $region78: #{_lambda_.6} parent=75 // pred_check_branch
        %1529 = sbr.rel (%p1527) target = $region80
      $region79: #{_lambda_.6} parent=75 // pred_region
        _
      $region80: #{_lambda_.6} parent=75 // pred_fallthru
        _
    $region76: #{_lambda_.6} parent=5 // pred_fallthru
      _
    %p1530 = scmp.le.s32.totalorder 2, %s20
    // Predicated region
    $region81: #{_lambda_.6} parent=5 // pred_check
      %p1531 = pneg %p1530
    $region82: #{_lambda_.6} parent=5 // pred_check_branch
      %1533 = sbr.rel (%p1531) target = $region84
    $region83: #{_lambda_.6} parent=5 // pred_region
      %s1534 = ssub.s32 %s20, 2
      // Predicated region
      $region85: #{_lambda_.6} parent=83 // pred_check
        %p1535 = pneg %p353
      $region86: #{_lambda_.6} parent=83 // pred_check_branch
        %1537 = sbr.rel (%p1535) target = $region88
      $region87: #{_lambda_.6} parent=83 // pred_region
        %p1538 = scmp.lt.s32.totalorder %s26, 4
        %s1539 = scalar_select %p1538, %s26, 4
        %s1540 = smul.addr %s1539, 2
        %s1541 = smul.addr %s1540, 8
        %s1542 = scalar_lea.vmem %s14, %s1541
      $region88: #{_lambda_.6} parent=83 // pred_fallthru
        _
    $region84: #{_lambda_.6} parent=5 // pred_fallthru
      _
  $region6: #{_lambda_.6} parent=0 // loop_footer
    %s24 = sadd.s32 1, %s20
  $region7: #{_lambda_.6} parent=0 // loop_footer_branch
    %19 = sbr.rel target = $region3
  $region8: #{_lambda_.6} parent=0 // loop_exit
    _

</llo_original>
